<compile_context>
chip_gen: v7x
topology: tpu7x:2x2x1
jax: 0.10.0
libtpu: 0.0.40
codegen_flags: <defaults>
</compile_context>

<pallas_src>
import jax
import jax.numpy as jnp
from jax.experimental import pallas as pl
from jax.experimental.pallas import tpu as pltpu

# ---------------- problem sizes --------------------------------------------------------
N = 8            # nodes per graph
F = 32           # in_channels
C = 32           # out_channels (== F, required by the residual in the module)
H = 3            # attention heads
E = 5            # edge_dim
NUM_EDGES = 20   # directed edges per graph (no self loops; self loops added like PyG)
B = 64           # graphs in the batch
GB = 16          # graphs packed into one grid block (block-diagonal super-graph)
M = GB * N       # 128 super-nodes per block -> lane-dense [128, 128] attention tiles
BLOCKS = B // GB
LN_EPS = 1e-5
NEG = -1e9       # masked-logit fill; exp underflows to exactly 0 after the row-max shift


# ----------------------------- Pallas kernel -------------------------------------------
def gt_block_kernel(x_ref, bias_ref, usrc_ref, udst_ref, g_ref, const_ref,
                    gamma_ref, beta_ref, out_ref, attn_scr, vals_scr):
    f32 = jnp.float32
    x = x_ref[...]                                                    # [M, F]
    heads = g_ref.shape[0]
    m = x.shape[0]

    # attention coefficients for ALL heads in two matmuls (att_* folded into W in wrapper)
    #   a_s[h, src] = x[src] . u_src[h]        a_d[dst, h] = x[dst] . u_dst[h]
    a_s = jax.lax.dot_general(usrc_ref[...], x, (((1,), (1,)), ((), ())),
                              preferred_element_type=f32)             # [H, M]
    a_d = jax.lax.dot_general(x, udst_ref[...], (((1,), (1,)), ((), ())),
                              preferred_element_type=f32)             # [M, H]

    for hh in range(heads):
        # bias_ref[hh]: edge-attention term on edges, NEG on non-edges / cross-graph pairs
        logits = a_d[:, hh:hh + 1] + a_s[hh:hh + 1, :] + bias_ref[hh]  # [M(dst), M(src)]
        logits = jnp.where(logits >= 0.0, logits, 0.2 * logits)        # LeakyReLU(0.2)
        logits = logits - jnp.max(logits, axis=1, keepdims=True)       # stable softmax
        p = jnp.exp(logits)                                            # non-edges -> 0
        attn = p / jnp.sum(p, axis=1, keepdims=True)                   # softmax over src
        attn_scr[:, hh * m:(hh + 1) * m] = attn                        # 128-aligned lane block
        # per-head values with GAT lin + output Linear folded: x @ (W_h @ W_lin_h)
        vals_scr[hh * m:(hh + 1) * m, :] = jnp.dot(x, g_ref[hh],
                                                   preferred_element_type=f32)

    # fused per-head aggregation + head-concat + output Linear: one MXU call, K = H*M
    lin = jnp.dot(attn_scr[...], vals_scr[...],
                  preferred_element_type=f32) + const_ref[...]         # [M, C]

    y = x + lin                                                        # residual
    mu = jnp.mean(y, axis=1, keepdims=True)
    var = jnp.mean((y - mu) ** 2, axis=1, keepdims=True)
    yn = (y - mu) * jax.lax.rsqrt(var + LN_EPS)
    out_ref[...] = yn * gamma_ref[...] + beta_ref[...]
    # dropout p = 0 -> identity (no RNG path needed)


# ----------------------------- glue + wrapper ------------------------------------------
def _add_self_loops_mean(edge_index, edge_attr, n):
    """PyG add_self_loops(fill_value='mean'): loop attr = mean of incoming edge_attr."""
    src, dst = edge_index[0], edge_index[1]
    deg = jax.ops.segment_sum(jnp.ones_like(dst, dtype=jnp.float32), dst, num_segments=n)
    esum = jax.ops.segment_sum(edge_attr, dst, num_segments=n)
    loop_attr = esum / jnp.maximum(deg, 1.0)[:, None]
    rng = jnp.arange(n, dtype=edge_index.dtype)
    src_f = jnp.concatenate([src, rng])
    dst_f = jnp.concatenate([dst, rng])
    ea_f = jnp.concatenate([edge_attr, loop_attr], axis=0)
    return src_f, dst_f, ea_f


def _edge_bias_one_graph(edge_index, edge_attr, W_edge, att_edge):
    """[H, N, N] additive bias: a_edge on edges (incl. self loops), NEG on non-edges."""
    src_f, dst_f, ea_f = _add_self_loops_mean(edge_index, edge_attr, N)
    e_proj = jnp.dot(ea_f, W_edge, precision="highest").reshape(-1, H, C)
    a_edge = (e_proj * att_edge[None]).sum(-1)                          # [Ef, H]
    bias = jnp.full((H, N, N), NEG, jnp.float32)
    return bias.at[:, dst_f, src_f].set(a_edge.T)


def graph_transformer_block(x_b, edge_index_b, edge_attr_b, params):
    """Forward pass for a batch of B graphs; hot path runs inside one gridded Pallas kernel."""
    (W, att_src, att_dst, att_edge, W_edge, b_gat, W_lin, b_lin, gamma, beta) = params

    # --- parameter folding (weights only; exact linear algebra, done once per call) -----
    W3 = W.reshape(F, H, C)
    u_src = jnp.einsum("fhc,hc->hf", W3, att_src, precision="highest")               # [H, F]
    u_dst = jnp.einsum("fhc,hc->hf", W3, att_dst, precision="highest")               # [H, F]
    G3 = jnp.einsum("fhc,hcd->hfd", W3, W_lin.reshape(H, C, C), precision="highest")  # [H, F, C]
    const = (jnp.dot(b_gat, W_lin, precision="highest") + b_lin).reshape(1, C)

    # --- glue: sparse edge list -> dense per-head bias (scatter has no Pallas equivalent),
    #     packed block-diagonally so GB graphs share one lane-dense [M, M] attention tile.
    bias_g = jax.vmap(_edge_bias_one_graph, in_axes=(0, 0, None, None))(
        edge_index_b, edge_attr_b, W_edge, att_edge)                                  # [B, H, N, N]
    bias_blk = jnp.full((BLOCKS, H, GB, N, GB, N), NEG, jnp.float32)
    bg = bias_g.reshape(BLOCKS, GB, H, N, N).transpose(1, 0, 2, 3, 4)                 # [GB, BLOCKS, H, N, N]
    gidx = jnp.arange(GB)
    bias_blk = bias_blk.at[:, :, gidx, :, gidx, :].set(bg)
    bias_all = bias_blk.reshape(BLOCKS * H, M, M)

    x_flat = x_b.reshape(B * N, F)

    out = pl.pallas_call(
        gt_block_kernel,
        out_shape=jax.ShapeDtypeStruct((B * N, C), jnp.float32),
        grid=(BLOCKS,),
        in_specs=[
            pl.BlockSpec((M, F), lambda i: (i, 0)),            # x        (per block)
            pl.BlockSpec((H, M, M), lambda i: (i, 0, 0)),      # bias     (per block, head-major)
            pl.BlockSpec((H, F), lambda i: (0, 0)),            # u_src    (broadcast)
            pl.BlockSpec((H, F), lambda i: (0, 0)),            # u_dst    (broadcast)
            pl.BlockSpec((H, F, C), lambda i: (0, 0, 0)),      # folded W_h @ W_lin_h
            pl.BlockSpec((1, C), lambda i: (0, 0)),            # folded bias
            pl.BlockSpec((1, C), lambda i: (0, 0)),            # LayerNorm gamma
            pl.BlockSpec((1, C), lambda i: (0, 0)),            # LayerNorm beta
        ],
        out_specs=pl.BlockSpec((M, C), lambda i: (i, 0)),
        scratch_shapes=[pltpu.VMEM((M, H * M), jnp.float32),   # stacked attention [M, H*M]
                        pltpu.VMEM((H * M, C), jnp.float32)],  # stacked values    [H*M, C]
        compiler_params=pltpu.CompilerParams(
            dimension_semantics=("parallel",)),
    )(x_flat, bias_all, u_src, u_dst, G3, const,
      gamma.reshape(1, C), beta.reshape(1, C))
    return out.reshape(B, N, C)


graph_transformer_block = jax.jit(graph_transformer_block)


# ----------------------------- pure-JAX reference (edge-list / PyG semantics) ----------
def reference(x, edge_index, edge_attr, params):
    (W, att_src, att_dst, att_edge, W_edge, b_gat, W_lin, b_lin, gamma, beta) = params
    n = x.shape[0]
    src_f, dst_f, ea_f = _add_self_loops_mean(edge_index, edge_attr, n)

    h = jnp.dot(x, W, precision="highest").reshape(n, H, C)
    a_src = (h * att_src[None]).sum(-1)                                  # [N, H]
    a_dst = (h * att_dst[None]).sum(-1)
    e_proj = jnp.dot(ea_f, W_edge, precision="highest").reshape(-1, H, C)
    a_edge = (e_proj * att_edge[None]).sum(-1)                           # [Ef, H]

    alpha = a_src[src_f] + a_dst[dst_f] + a_edge
    alpha = jnp.where(alpha >= 0.0, alpha, 0.2 * alpha)
    amax = jax.ops.segment_max(alpha, dst_f, num_segments=n)
    p = jnp.exp(alpha - amax[dst_f])
    denom = jax.ops.segment_sum(p, dst_f, num_segments=n)
    attn = p / denom[dst_f]
    msg = h[src_f] * attn[..., None]
    out = jax.ops.segment_sum(msg, dst_f, num_segments=n)                # [N, H, C]

    gat = out.reshape(n, H * C) + b_gat
    lin = jnp.dot(gat, W_lin, precision="highest") + b_lin
    y = x + lin
    mu = y.mean(axis=1, keepdims=True)
    var = ((y - mu) ** 2).mean(axis=1, keepdims=True)
    return (y - mu) / jnp.sqrt(var + LN_EPS) * gamma + beta


# ----------------------------- deterministic setup --------------------------------------
def init_params(key):
    ks = jax.random.split(key, 10)
    W = 0.2 * jax.random.normal(ks[0], (F, H * C), jnp.float32)          # lin_src/lin_dst (shared)
    att_src = 0.2 * jax.random.normal(ks[1], (H, C), jnp.float32)
    att_dst = 0.2 * jax.random.normal(ks[2], (H, C), jnp.float32)
    att_edge = 0.2 * jax.random.normal(ks[3], (H, C), jnp.float32)
    W_edge = 0.2 * jax.random.normal(ks[4], (E, H * C), jnp.float32)     # lin_edge
    b_gat = 0.1 * jax.random.normal(ks[5], (H * C,), jnp.float32)        # GATConv bias
    W_lin = 0.2 * jax.random.normal(ks[6], (H * C, C), jnp.float32)      # nn.Linear
    b_lin = 0.1 * jax.random.normal(ks[7], (C,), jnp.float32)
    gamma = 1.0 + 0.1 * jax.random.normal(ks[8], (C,), jnp.float32)      # LayerNorm weight
    beta = 0.1 * jax.random.normal(ks[9], (C,), jnp.float32)             # LayerNorm bias
    return (W, att_src, att_dst, att_edge, W_edge, b_gat, W_lin, b_lin, gamma, beta)


if __name__ == "__main__":
    key = jax.random.PRNGKey(0)
    k_x, k_e, k_a, k_p = jax.random.split(key, 4)

    x_b = jax.random.normal(k_x, (B, N, F), jnp.float32)

    # unique directed edges per graph, no self loops
    pairs = jnp.array([(s, d) for s in range(N) for d in range(N) if s != d], dtype=jnp.int32)

    def pick_edges(k):
        sel = jax.random.permutation(k, pairs.shape[0])[:NUM_EDGES]
        chosen = pairs[sel]
        return jnp.stack([chosen[:, 0], chosen[:, 1]], axis=0)           # [2, NUM_EDGES]

    edge_index_b = jax.vmap(pick_edges)(jax.random.split(k_e, B))        # [B, 2, NUM_EDGES]
    edge_attr_b = jax.random.normal(k_a, (B, NUM_EDGES, E), jnp.float32)

    params = init_params(k_p)

    out = graph_transformer_block(x_b, edge_index_b, edge_attr_b, params)
    out = jax.block_until_ready(out)

    ref = jax.vmap(lambda xx, ei, ea: reference(xx, ei, ea, params))(
        x_b, edge_index_b, edge_attr_b)
    assert out.shape == (B, N, C)
    err = float(jnp.max(jnp.abs(out - ref)))
    assert jnp.allclose(out, ref, atol=3e-3, rtol=3e-3), err

    print("KERNEL_OK")
</pallas_src>

<mosaic_0001>
module attributes {stable_mosaic.version = 11 : i64} {
  func.func private @main(%arg0: i32) attributes {dimension_semantics = [#tpu.dimension_semantics<core_parallel>], iteration_bounds = array<i64: 2>, tpu.core_type = #tpu.core_type<sc_scalar_subcore>, window_params = []} {
    return
  }
}

module attributes {stable_mosaic.version = 11 : i64} {
  func.func private @main(%arg0: i32) attributes {dimension_semantics = [#tpu.dimension_semantics<core_parallel>], iteration_bounds = array<i64: 2>, tpu.core_type = #tpu.core_type<sc_scalar_subcore>, window_params = []} {
    return
  }
}

module attributes {stable_mosaic.version = 11 : i64} {
  func.func @gt_block_kernel(%arg0: i32, %arg1: memref<128x32xf32, #tpu.memory_space<vmem>>, %arg2: memref<3x128x128xf32, #tpu.memory_space<vmem>>, %arg3: memref<3x32xf32, #tpu.memory_space<vmem>>, %arg4: memref<3x32xf32, #tpu.memory_space<vmem>>, %arg5: memref<3x32x32xf32, #tpu.memory_space<vmem>>, %arg6: memref<1x32xf32, #tpu.memory_space<vmem>>, %arg7: memref<1x32xf32, #tpu.memory_space<vmem>>, %arg8: memref<1x32xf32, #tpu.memory_space<vmem>>, %arg9: memref<128x32xf32, #tpu.memory_space<vmem>>, %arg10: memref<128x384xf32, #tpu.memory_space<vmem>>, %arg11: memref<384x32xf32, #tpu.memory_space<vmem>>) attributes {dimension_semantics = [#tpu.dimension_semantics<parallel>], iteration_bounds = array<i64: 4>, scalar_prefetch = 0 : i64, scratch_operands = 2 : i64, tpu.core_type = #tpu.core_type<tc>, window_params = [{transform_indices = @transform_0, window_bounds = array<i64: 128, 32>}, {transform_indices = @transform_1, window_bounds = array<i64: 3, 128, 128>}, {pipeline_mode = #tpu.pipeline_mode<synchronous>, transform_indices = @transform_2, window_bounds = array<i64: 3, 32>}, {pipeline_mode = #tpu.pipeline_mode<synchronous>, transform_indices = @transform_3, window_bounds = array<i64: 3, 32>}, {pipeline_mode = #tpu.pipeline_mode<synchronous>, transform_indices = @transform_4, window_bounds = array<i64: 3, 32, 32>}, {pipeline_mode = #tpu.pipeline_mode<synchronous>, transform_indices = @transform_5, window_bounds = array<i64: 1, 32>}, {pipeline_mode = #tpu.pipeline_mode<synchronous>, transform_indices = @transform_6, window_bounds = array<i64: 1, 32>}, {pipeline_mode = #tpu.pipeline_mode<synchronous>, transform_indices = @transform_7, window_bounds = array<i64: 1, 32>}, {transform_indices = @transform_8, window_bounds = array<i64: 128, 32>}]} {
    %c0 = arith.constant 0 : index
    %c0_0 = arith.constant 0 : index
    %0 = vector.load %arg1[%c0, %c0_0] : memref<128x32xf32, #tpu.memory_space<vmem>>, vector<128x32xf32>
    %c0_1 = arith.constant 0 : index
    %c0_2 = arith.constant 0 : index
    %1 = vector.load %arg3[%c0_1, %c0_2] : memref<3x32xf32, #tpu.memory_space<vmem>>, vector<3x32xf32>
    %cst = arith.constant dense<0.000000e+00> : vector<3x128xf32>
    %2 = tpu.matmul %1, %0, %cst {dimension_numbers = #tpu.dot_dimension_numbers<[1], [1], [0], [0], [0, 0, 1, 0], [], []>} : vector<3x32xf32>, vector<128x32xf32>, vector<3x128xf32> -> vector<3x128xf32>
    %c0_3 = arith.constant 0 : index
    %c0_4 = arith.constant 0 : index
    %3 = vector.load %arg4[%c0_3, %c0_4] : memref<3x32xf32, #tpu.memory_space<vmem>>, vector<3x32xf32>
    %cst_5 = arith.constant dense<0.000000e+00> : vector<128x3xf32>
    %4 = tpu.matmul %0, %3, %cst_5 {dimension_numbers = #tpu.dot_dimension_numbers<[1], [1], [0], [0], [0, 0, 1, 0], [], []>} : vector<128x32xf32>, vector<3x32xf32>, vector<128x3xf32> -> vector<128x3xf32>
    %5 = vector.extract_strided_slice %4 {offsets = [0, 0], sizes = [128, 1], strides = [1, 1]} : vector<128x3xf32> to vector<128x1xf32>
    %6 = vector.extract_strided_slice %2 {offsets = [0, 0], sizes = [1, 128], strides = [1, 1]} : vector<3x128xf32> to vector<1x128xf32>
    %7 = vector.broadcast %5 : vector<128x1xf32> to vector<128x128xf32>
    %8 = vector.broadcast %6 : vector<1x128xf32> to vector<128x128xf32>
    %9 = arith.addf %7, %8 : vector<128x128xf32>
    %c0_6 = arith.constant 0 : index
    %c0_7 = arith.constant 0 : index
    %c0_8 = arith.constant 0 : index
    %10 = vector.load %arg2[%c0_6, %c0_7, %c0_8] : memref<3x128x128xf32, #tpu.memory_space<vmem>>, vector<1x128x128xf32>
    %11 = vector.shape_cast %10 : vector<1x128x128xf32> to vector<128x128xf32>
    %12 = arith.addf %9, %11 : vector<128x128xf32>
    %cst_9 = arith.constant 0.000000e+00 : f32
    %13 = vector.broadcast %cst_9 : f32 to vector<128x128xf32>
    %14 = arith.cmpf oge, %12, %13 : vector<128x128xf32>
    %cst_10 = arith.constant 2.000000e-01 : f32
    %15 = vector.broadcast %cst_10 : f32 to vector<128x128xf32>
    %16 = arith.mulf %15, %12 : vector<128x128xf32>
    %17 = arith.select %14, %12, %16 : vector<128x128xi1>, vector<128x128xf32>
    %cst_11 = arith.constant dense<0xFF800000> : vector<128xf32>
    %18 = vector.multi_reduction <maximumf>, %17, %cst_11 [1] : vector<128x128xf32> to vector<128xf32>
    %19 = vector.shape_cast %18 : vector<128xf32> to vector<128x1xf32>
    %20 = vector.broadcast %19 : vector<128x1xf32> to vector<128x128xf32>
    %21 = arith.subf %17, %20 : vector<128x128xf32>
    %22 = math.exp %21 : vector<128x128xf32>
    %cst_12 = arith.constant dense<0.000000e+00> : vector<128xf32>
    %23 = vector.multi_reduction <add>, %22, %cst_12 [1] : vector<128x128xf32> to vector<128xf32>
    %24 = vector.shape_cast %23 : vector<128xf32> to vector<128x1xf32>
    %25 = vector.broadcast %24 : vector<128x1xf32> to vector<128x128xf32>
    %26 = arith.divf %22, %25 : vector<128x128xf32>
    %c0_13 = arith.constant 0 : index
    %c0_14 = arith.constant 0 : index
    %27 = vector.load %arg10[%c0_13, %c0_14] : memref<128x384xf32, #tpu.memory_space<vmem>>, vector<128x128xf32>
    tpu.vector_store %arg10[%c0_13, %c0_14], %26 {strides = array<i32>} : memref<128x384xf32, #tpu.memory_space<vmem>>, vector<128x128xf32>,
    %c0_15 = arith.constant 0 : index
    %c0_16 = arith.constant 0 : index
    %c0_17 = arith.constant 0 : index
    %28 = vector.load %arg5[%c0_15, %c0_16, %c0_17] : memref<3x32x32xf32, #tpu.memory_space<vmem>>, vector<1x32x32xf32>
    %29 = vector.shape_cast %28 : vector<1x32x32xf32> to vector<32x32xf32>
    %cst_18 = arith.constant dense<0.000000e+00> : vector<128x32xf32>
    %30 = tpu.matmul %0, %29, %cst_18 {dimension_numbers = #tpu.dot_dimension_numbers<[1], [0], [0], [1], [0, 0, 1, 1], [], []>} : vector<128x32xf32>, vector<32x32xf32>, vector<128x32xf32> -> vector<128x32xf32>
    %c0_19 = arith.constant 0 : index
    %c0_20 = arith.constant 0 : index
    %31 = vector.load %arg11[%c0_19, %c0_20] : memref<384x32xf32, #tpu.memory_space<vmem>>, vector<128x32xf32>
    tpu.vector_store %arg11[%c0_19, %c0_20], %30 {strides = array<i32>} : memref<384x32xf32, #tpu.memory_space<vmem>>, vector<128x32xf32>,
    %32 = vector.extract_strided_slice %4 {offsets = [0, 1], sizes = [128, 1], strides = [1, 1]} : vector<128x3xf32> to vector<128x1xf32>
    %33 = vector.extract_strided_slice %2 {offsets = [1, 0], sizes = [1, 128], strides = [1, 1]} : vector<3x128xf32> to vector<1x128xf32>
    %34 = vector.broadcast %32 : vector<128x1xf32> to vector<128x128xf32>
    %35 = vector.broadcast %33 : vector<1x128xf32> to vector<128x128xf32>
    %36 = arith.addf %34, %35 : vector<128x128xf32>
    %c1 = arith.constant 1 : index
    %c0_21 = arith.constant 0 : index
    %c0_22 = arith.constant 0 : index
    %37 = vector.load %arg2[%c1, %c0_21, %c0_22] : memref<3x128x128xf32, #tpu.memory_space<vmem>>, vector<1x128x128xf32>
    %38 = vector.shape_cast %37 : vector<1x128x128xf32> to vector<128x128xf32>
    %39 = arith.addf %36, %38 : vector<128x128xf32>
    %cst_23 = arith.constant 0.000000e+00 : f32
    %40 = vector.broadcast %cst_23 : f32 to vector<128x128xf32>
    %41 = arith.cmpf oge, %39, %40 : vector<128x128xf32>
    %cst_24 = arith.constant 2.000000e-01 : f32
    %42 = vector.broadcast %cst_24 : f32 to vector<128x128xf32>
    %43 = arith.mulf %42, %39 : vector<128x128xf32>
    %44 = arith.select %41, %39, %43 : vector<128x128xi1>, vector<128x128xf32>
    %cst_25 = arith.constant dense<0xFF800000> : vector<128xf32>
    %45 = vector.multi_reduction <maximumf>, %44, %cst_25 [1] : vector<128x128xf32> to vector<128xf32>
    %46 = vector.shape_cast %45 : vector<128xf32> to vector<128x1xf32>
    %47 = vector.broadcast %46 : vector<128x1xf32> to vector<128x128xf32>
    %48 = arith.subf %44, %47 : vector<128x128xf32>
    %49 = math.exp %48 : vector<128x128xf32>
    %cst_26 = arith.constant dense<0.000000e+00> : vector<128xf32>
    %50 = vector.multi_reduction <add>, %49, %cst_26 [1] : vector<128x128xf32> to vector<128xf32>
    %51 = vector.shape_cast %50 : vector<128xf32> to vector<128x1xf32>
    %52 = vector.broadcast %51 : vector<128x1xf32> to vector<128x128xf32>
    %53 = arith.divf %49, %52 : vector<128x128xf32>
    %c0_27 = arith.constant 0 : index
    %c128 = arith.constant 128 : index
    %54 = vector.load %arg10[%c0_27, %c128] : memref<128x384xf32, #tpu.memory_space<vmem>>, vector<128x128xf32>
    tpu.vector_store %arg10[%c0_27, %c128], %53 {strides = array<i32>} : memref<128x384xf32, #tpu.memory_space<vmem>>, vector<128x128xf32>,
    %c1_28 = arith.constant 1 : index
    %c0_29 = arith.constant 0 : index
    %c0_30 = arith.constant 0 : index
    %55 = vector.load %arg5[%c1_28, %c0_29, %c0_30] : memref<3x32x32xf32, #tpu.memory_space<vmem>>, vector<1x32x32xf32>
    %56 = vector.shape_cast %55 : vector<1x32x32xf32> to vector<32x32xf32>
    %cst_31 = arith.constant dense<0.000000e+00> : vector<128x32xf32>
    %57 = tpu.matmul %0, %56, %cst_31 {dimension_numbers = #tpu.dot_dimension_numbers<[1], [0], [0], [1], [0, 0, 1, 1], [], []>} : vector<128x32xf32>, vector<32x32xf32>, vector<128x32xf32> -> vector<128x32xf32>
    %c128_32 = arith.constant 128 : index
    %c0_33 = arith.constant 0 : index
    %58 = vector.load %arg11[%c128_32, %c0_33] : memref<384x32xf32, #tpu.memory_space<vmem>>, vector<128x32xf32>
    tpu.vector_store %arg11[%c128_32, %c0_33], %57 {strides = array<i32>} : memref<384x32xf32, #tpu.memory_space<vmem>>, vector<128x32xf32>,
    %59 = vector.extract_strided_slice %4 {offsets = [0, 2], sizes = [128, 1], strides = [1, 1]} : vector<128x3xf32> to vector<128x1xf32>
    %60 = vector.extract_strided_slice %2 {offsets = [2, 0], sizes = [1, 128], strides = [1, 1]} : vector<3x128xf32> to vector<1x128xf32>
    %61 = vector.broadcast %59 : vector<128x1xf32> to vector<128x128xf32>
    %62 = vector.broadcast %60 : vector<1x128xf32> to vector<128x128xf32>
    %63 = arith.addf %61, %62 : vector<128x128xf32>
    %c2 = arith.constant 2 : index
    %c0_34 = arith.constant 0 : index
    %c0_35 = arith.constant 0 : index
    %64 = vector.load %arg2[%c2, %c0_34, %c0_35] : memref<3x128x128xf32, #tpu.memory_space<vmem>>, vector<1x128x128xf32>
    %65 = vector.shape_cast %64 : vector<1x128x128xf32> to vector<128x128xf32>
    %66 = arith.addf %63, %65 : vector<128x128xf32>
    %cst_36 = arith.constant 0.000000e+00 : f32
    %67 = vector.broadcast %cst_36 : f32 to vector<128x128xf32>
    %68 = arith.cmpf oge, %66, %67 : vector<128x128xf32>
    %cst_37 = arith.constant 2.000000e-01 : f32
    %69 = vector.broadcast %cst_37 : f32 to vector<128x128xf32>
    %70 = arith.mulf %69, %66 : vector<128x128xf32>
    %71 = arith.select %68, %66, %70 : vector<128x128xi1>, vector<128x128xf32>
    %cst_38 = arith.constant dense<0xFF800000> : vector<128xf32>
    %72 = vector.multi_reduction <maximumf>, %71, %cst_38 [1] : vector<128x128xf32> to vector<128xf32>
    %73 = vector.shape_cast %72 : vector<128xf32> to vector<128x1xf32>
    %74 = vector.broadcast %73 : vector<128x1xf32> to vector<128x128xf32>
    %75 = arith.subf %71, %74 : vector<128x128xf32>
    %76 = math.exp %75 : vector<128x128xf32>
    %cst_39 = arith.constant dense<0.000000e+00> : vector<128xf32>
    %77 = vector.multi_reduction <add>, %76, %cst_39 [1] : vector<128x128xf32> to vector<128xf32>
    %78 = vector.shape_cast %77 : vector<128xf32> to vector<128x1xf32>
    %79 = vector.broadcast %78 : vector<128x1xf32> to vector<128x128xf32>
    %80 = arith.divf %76, %79 : vector<128x128xf32>
    %c0_40 = arith.constant 0 : index
    %c256 = arith.constant 256 : index
    %81 = vector.load %arg10[%c0_40, %c256] : memref<128x384xf32, #tpu.memory_space<vmem>>, vector<128x128xf32>
    tpu.vector_store %arg10[%c0_40, %c256], %80 {strides = array<i32>} : memref<128x384xf32, #tpu.memory_space<vmem>>, vector<128x128xf32>,
    %c2_41 = arith.constant 2 : index
    %c0_42 = arith.constant 0 : index
    %c0_43 = arith.constant 0 : index
    %82 = vector.load %arg5[%c2_41, %c0_42, %c0_43] : memref<3x32x32xf32, #tpu.memory_space<vmem>>, vector<1x32x32xf32>
    %83 = vector.shape_cast %82 : vector<1x32x32xf32> to vector<32x32xf32>
    %cst_44 = arith.constant dense<0.000000e+00> : vector<128x32xf32>
    %84 = tpu.matmul %0, %83, %cst_44 {dimension_numbers = #tpu.dot_dimension_numbers<[1], [0], [0], [1], [0, 0, 1, 1], [], []>} : vector<128x32xf32>, vector<32x32xf32>, vector<128x32xf32> -> vector<128x32xf32>
    %c256_45 = arith.constant 256 : index
    %c0_46 = arith.constant 0 : index
    %85 = vector.load %arg11[%c256_45, %c0_46] : memref<384x32xf32, #tpu.memory_space<vmem>>, vector<128x32xf32>
    tpu.vector_store %arg11[%c256_45, %c0_46], %84 {strides = array<i32>} : memref<384x32xf32, #tpu.memory_space<vmem>>, vector<128x32xf32>,
    %c0_47 = arith.constant 0 : index
    %c0_48 = arith.constant 0 : index
    %86 = vector.load %arg10[%c0_47, %c0_48] : memref<128x384xf32, #tpu.memory_space<vmem>>, vector<128x384xf32>
    %c0_49 = arith.constant 0 : index
    %c0_50 = arith.constant 0 : index
    %87 = vector.load %arg11[%c0_49, %c0_50] : memref<384x32xf32, #tpu.memory_space<vmem>>, vector<384x32xf32>
    %cst_51 = arith.constant dense<0.000000e+00> : vector<128x32xf32>
    %88 = tpu.matmul %86, %87, %cst_51 {dimension_numbers = #tpu.dot_dimension_numbers<[1], [0], [0], [1], [0, 0, 1, 1], [], []>} : vector<128x384xf32>, vector<384x32xf32>, vector<128x32xf32> -> vector<128x32xf32>
    %c0_52 = arith.constant 0 : index
    %c0_53 = arith.constant 0 : index
    %89 = vector.load %arg6[%c0_52, %c0_53] : memref<1x32xf32, #tpu.memory_space<vmem>>, vector<1x32xf32>
    %90 = vector.broadcast %89 : vector<1x32xf32> to vector<128x32xf32>
    %91 = arith.addf %88, %90 : vector<128x32xf32>
    %92 = arith.addf %0, %91 : vector<128x32xf32>
    %cst_54 = arith.constant dense<0.000000e+00> : vector<128xf32>
    %93 = vector.multi_reduction <add>, %92, %cst_54 [1] : vector<128x32xf32> to vector<128xf32>
    %94 = vector.shape_cast %93 : vector<128xf32> to vector<128x1xf32>
    %cst_55 = arith.constant 3.200000e+01 : f32
    %95 = vector.broadcast %cst_55 : f32 to vector<128x1xf32>
    %96 = arith.divf %94, %95 : vector<128x1xf32>
    %97 = vector.broadcast %96 : vector<128x1xf32> to vector<128x32xf32>
    %98 = arith.subf %92, %97 : vector<128x32xf32>
    %99 = arith.mulf %98, %98 : vector<128x32xf32>
    %cst_56 = arith.constant dense<0.000000e+00> : vector<128xf32>
    %100 = vector.multi_reduction <add>, %99, %cst_56 [1] : vector<128x32xf32> to vector<128xf32>
    %101 = vector.shape_cast %100 : vector<128xf32> to vector<128x1xf32>
    %cst_57 = arith.constant 3.200000e+01 : f32
    %102 = vector.broadcast %cst_57 : f32 to vector<128x1xf32>
    %103 = arith.divf %101, %102 : vector<128x1xf32>
    %104 = vector.broadcast %96 : vector<128x1xf32> to vector<128x32xf32>
    %105 = arith.subf %92, %104 : vector<128x32xf32>
    %cst_58 = arith.constant 9.99999974E-6 : f32
    %106 = vector.broadcast %cst_58 : f32 to vector<128x1xf32>
    %107 = arith.addf %103, %106 : vector<128x1xf32>
    %108 = math.rsqrt %107 : vector<128x1xf32>
    %109 = vector.broadcast %108 : vector<128x1xf32> to vector<128x32xf32>
    %110 = arith.mulf %105, %109 : vector<128x32xf32>
    %c0_59 = arith.constant 0 : index
    %c0_60 = arith.constant 0 : index
    %111 = vector.load %arg7[%c0_59, %c0_60] : memref<1x32xf32, #tpu.memory_space<vmem>>, vector<1x32xf32>
    %112 = vector.broadcast %111 : vector<1x32xf32> to vector<128x32xf32>
    %113 = arith.mulf %110, %112 : vector<128x32xf32>
    %c0_61 = arith.constant 0 : index
    %c0_62 = arith.constant 0 : index
    %114 = vector.load %arg8[%c0_61, %c0_62] : memref<1x32xf32, #tpu.memory_space<vmem>>, vector<1x32xf32>
    %115 = vector.broadcast %114 : vector<1x32xf32> to vector<128x32xf32>
    %116 = arith.addf %113, %115 : vector<128x32xf32>
    %c0_63 = arith.constant 0 : index
    %c0_64 = arith.constant 0 : index
    %117 = vector.load %arg9[%c0_63, %c0_64] : memref<128x32xf32, #tpu.memory_space<vmem>>, vector<128x32xf32>
    tpu.vector_store %arg9[%c0_63, %c0_64], %116 {strides = array<i32>} : memref<128x32xf32, #tpu.memory_space<vmem>>, vector<128x32xf32>,
    return
  }
  func.func @transform_0(%arg0: i32) -> (i32, i32) {
    %c0_i32 = arith.constant 0 : i32
    %c0_i32_0 = arith.constant 0 : i32
    return %arg0, %c0_i32 : i32, i32
  }
  func.func @transform_1(%arg0: i32) -> (i32, i32, i32) {
    %c0_i32 = arith.constant 0 : i32
    %c0_i32_0 = arith.constant 0 : i32
    %c0_i32_1 = arith.constant 0 : i32
    return %arg0, %c0_i32, %c0_i32_0 : i32, i32, i32
  }
  func.func @transform_2(%arg0: i32) -> (i32, i32) {
    %c0_i32 = arith.constant 0 : i32
    %c0_i32_0 = arith.constant 0 : i32
    %c0_i32_1 = arith.constant 0 : i32
    return %c0_i32, %c0_i32_0 : i32, i32
  }
  func.func @transform_3(%arg0: i32) -> (i32, i32) {
    %c0_i32 = arith.constant 0 : i32
    %c0_i32_0 = arith.constant 0 : i32
    %c0_i32_1 = arith.constant 0 : i32
    return %c0_i32, %c0_i32_0 : i32, i32
  }
  func.func @transform_4(%arg0: i32) -> (i32, i32, i32) {
    %c0_i32 = arith.constant 0 : i32
    %c0_i32_0 = arith.constant 0 : i32
    %c0_i32_1 = arith.constant 0 : i32
    %c0_i32_2 = arith.constant 0 : i32
    return %c0_i32, %c0_i32_0, %c0_i32_1 : i32, i32, i32
  }
  func.func @transform_5(%arg0: i32) -> (i32, i32) {
    %c0_i32 = arith.constant 0 : i32
    %c0_i32_0 = arith.constant 0 : i32
    %c0_i32_1 = arith.constant 0 : i32
    return %c0_i32, %c0_i32_0 : i32, i32
  }
  func.func @transform_6(%arg0: i32) -> (i32, i32) {
    %c0_i32 = arith.constant 0 : i32
    %c0_i32_0 = arith.constant 0 : i32
    %c0_i32_1 = arith.constant 0 : i32
    return %c0_i32, %c0_i32_0 : i32, i32
  }
  func.func @transform_7(%arg0: i32) -> (i32, i32) {
    %c0_i32 = arith.constant 0 : i32
    %c0_i32_0 = arith.constant 0 : i32
    %c0_i32_1 = arith.constant 0 : i32
    return %c0_i32, %c0_i32_0 : i32, i32
  }
  func.func @transform_8(%arg0: i32) -> (i32, i32) {
    %c0_i32 = arith.constant 0 : i32
    %c0_i32_0 = arith.constant 0 : i32
    return %arg0, %c0_i32 : i32, i32
  }
}

</mosaic_0001>

<llo_original>
// kernel: graph_transformer_block.1
$region0: #{graph_transformer_block.1}
  #allocation0 [shape = 'u32[]', space=smem, size = 0x4, offset = 0x4, fixed_abs, tag = 'smem constant byte address 0x4 - core index']
  #allocation1 [shape = 'u32[144,128]{1,0:T(1,128)}', space=vmem, size = 0x12000, scoped, tag = 'internal scratch']
  #allocation2 [shape = 'f32[128,384]{1,0:T(8,128)}', space=vmem, size = 0x30000, scoped, tag = 'scratch operand']
  #allocation3 [shape = 'f32[384,32]{1,0:T(8,128)}', space=vmem, size = 0x30000, scoped, tag = 'scratch operand']
  %s0 = inlined_call_operand.vmem [shape: f32[512,32], index: 0, kind: input, shape index: {}]
  %s1 = inlined_call_operand.vmem [shape: f32[12,128,128], index: 1, kind: input, shape index: {}]
  %s2 = inlined_call_operand.vmem [shape: f32[3,32], index: 2, kind: input, shape index: {}]
  %s3 = inlined_call_operand.vmem [shape: f32[3,32], index: 3, kind: input, shape index: {}]
  %s4 = inlined_call_operand.vmem [shape: f32[3,32,32], index: 4, kind: input, shape index: {}]
  %s5 = inlined_call_operand.vmem [shape: f32[1,32], index: 5, kind: input, shape index: {}]
  %s6 = inlined_call_operand.vmem [shape: f32[1,32], index: 6, kind: input, shape index: {}]
  %s7 = inlined_call_operand.vmem [shape: f32[1,32], index: 7, kind: input, shape index: {}]
  %s8 = inlined_call_operand.vmem [shape: f32[512,32], index: 8, kind: output, shape index: {}]
  %s9 = sld [smem:[#allocation0]]
  $region65: #{graph_transformer_block.1} parent=0
    _
  %s11 = ssub.s32 1, %s9
  %s12 = scalar_select 0, %s11, %s9
  loop: start=0, step=1, limit=6
  $region2: #{graph_transformer_block.1} parent=0 // loop_pre_header
    _
  $region3: #{graph_transformer_block.1} parent=0 // loop_header
    %s14 = sphi 0, %s18
    %p15 = scmp.ge.s32.totalorder %s14, 6
    %s24 = sphi 0, %s26
    %s27 = sphi 0, %s24
    %s28 = sphi 0, %s27
    %s44 = sphi 0, %s28
    %s50 = sphi 0, %s52
    %s53 = sphi 0, %s50
    %s54 = sphi 0, %s53
    %s70 = sphi 0, %s54
    %s74 = sphi 0, %s74
    %s76 = sphi 0, %s74
    %s77 = sphi 0, %s76
    %s91 = sphi 0, %s77
    %s95 = sphi 0, %s95
    %s97 = sphi 0, %s95
    %s98 = sphi 0, %s97
    %s112 = sphi 0, %s98
    %s116 = sphi 0, %s116
    %s118 = sphi 0, %s116
    %s119 = sphi 0, %s118
    %s133 = sphi 0, %s119
    %s137 = sphi 0, %s137
    %s139 = sphi 0, %s137
    %s140 = sphi 0, %s139
    %s154 = sphi 0, %s140
    %s158 = sphi 0, %s158
    %s160 = sphi 0, %s158
    %s161 = sphi 0, %s160
    %s175 = sphi 0, %s161
    %s179 = sphi 0, %s179
    %s181 = sphi 0, %s179
    %s182 = sphi 0, %s181
    %s196 = sphi 0, %s182
    %s202 = sphi 0, %s204
    %s205 = sphi 0, %s202
    %s206 = sphi 0, %s205
    %s222 = sphi 0, %s206
  $region4: #{graph_transformer_block.1} parent=0 // loop_header_branch
    %17 = sbr.rel (%p15) target = $region8
  $region5: #{graph_transformer_block.1} parent=0 // loop_body
    %s19 = ssub.s32 %s14, 1
    %s20 = ssub.s32 %s14, 2
    %s21 = sadd.s32 %s14, 1
    %s22 = ssub.s32 %s14, %s21
    %p23 = scmp.eq.s32.totalorder %s22, 0
    %s25 = sadd.s32 %s24, 1
    %s26 = scalar_select %p23, %s24, %s25
    %p29 = pneg %p23
    %p30 = scmp.eq.s32.totalorder %s14, 3
    %p31 = por %p29, %p30
    %p32 = scmp.ne.s32.totalorder %s24, %s27
    %p33 = scmp.eq.s32.totalorder %s14, 0
    %p34 = por %p32, %p33
    %p35 = scmp.ne.s32.totalorder %s24, %s27
    %p36 = scmp.eq.s32.totalorder %s19, 3
    %p37 = por %p35, %p36
    %p38 = scmp.ne.s32.totalorder %s27, %s28
    %p39 = scmp.eq.s32.totalorder %s19, 0
    %p40 = por %p38, %p39
    %p41 = scmp.ne.s32.totalorder %s27, %s28
    %p42 = scmp.eq.s32.totalorder %s20, 3
    %p43 = por %p41, %p42
    %p45 = scmp.ne.s32.totalorder %s28, %s44
    %p46 = scmp.eq.s32.totalorder %s20, 0
    %p47 = por %p45, %p46
    %s48 = ssub.s32 %s14, %s21
    %p49 = scmp.eq.s32.totalorder %s48, 0
    %s51 = sadd.s32 %s50, 1
    %s52 = scalar_select %p49, %s50, %s51
    %p55 = pneg %p49
    %p56 = scmp.eq.s32.totalorder %s14, 3
    %p57 = por %p55, %p56
    %p58 = scmp.ne.s32.totalorder %s50, %s53
    %p59 = scmp.eq.s32.totalorder %s14, 0
    %p60 = por %p58, %p59
    %p61 = scmp.ne.s32.totalorder %s50, %s53
    %p62 = scmp.eq.s32.totalorder %s19, 3
    %p63 = por %p61, %p62
    %p64 = scmp.ne.s32.totalorder %s53, %s54
    %p65 = scmp.eq.s32.totalorder %s19, 0
    %p66 = por %p64, %p65
    %p67 = scmp.ne.s32.totalorder %s53, %s54
    %p68 = scmp.eq.s32.totalorder %s20, 3
    %p69 = por %p67, %p68
    %p71 = scmp.ne.s32.totalorder %s54, %s70
    %p72 = scmp.eq.s32.totalorder %s20, 0
    %p73 = por %p71, %p72
    %s75 = sadd.s32 %s74, 1
    %p78 = scmp.eq.s32.totalorder %s14, 3
    %p79 = scmp.ne.s32.totalorder %s74, %s76
    %p80 = scmp.eq.s32.totalorder %s14, 0
    %p81 = por %p79, %p80
    %p82 = scmp.ne.s32.totalorder %s74, %s76
    %p83 = scmp.eq.s32.totalorder %s19, 3
    %p84 = por %p82, %p83
    %p85 = scmp.ne.s32.totalorder %s76, %s77
    %p86 = scmp.eq.s32.totalorder %s19, 0
    %p87 = por %p85, %p86
    %p88 = scmp.ne.s32.totalorder %s76, %s77
    %p89 = scmp.eq.s32.totalorder %s20, 3
    %p90 = por %p88, %p89
    %p92 = scmp.ne.s32.totalorder %s77, %s91
    %p93 = scmp.eq.s32.totalorder %s20, 0
    %p94 = por %p92, %p93
    %s96 = sadd.s32 %s95, 1
    %p99 = scmp.eq.s32.totalorder %s14, 3
    %p100 = scmp.ne.s32.totalorder %s95, %s97
    %p101 = scmp.eq.s32.totalorder %s14, 0
    %p102 = por %p100, %p101
    %p103 = scmp.ne.s32.totalorder %s95, %s97
    %p104 = scmp.eq.s32.totalorder %s19, 3
    %p105 = por %p103, %p104
    %p106 = scmp.ne.s32.totalorder %s97, %s98
    %p107 = scmp.eq.s32.totalorder %s19, 0
    %p108 = por %p106, %p107
    %p109 = scmp.ne.s32.totalorder %s97, %s98
    %p110 = scmp.eq.s32.totalorder %s20, 3
    %p111 = por %p109, %p110
    %p113 = scmp.ne.s32.totalorder %s98, %s112
    %p114 = scmp.eq.s32.totalorder %s20, 0
    %p115 = por %p113, %p114
    %s117 = sadd.s32 %s116, 1
    %p120 = scmp.eq.s32.totalorder %s14, 3
    %p121 = scmp.ne.s32.totalorder %s116, %s118
    %p122 = scmp.eq.s32.totalorder %s14, 0
    %p123 = por %p121, %p122
    %p124 = scmp.ne.s32.totalorder %s116, %s118
    %p125 = scmp.eq.s32.totalorder %s19, 3
    %p126 = por %p124, %p125
    %p127 = scmp.ne.s32.totalorder %s118, %s119
    %p128 = scmp.eq.s32.totalorder %s19, 0
    %p129 = por %p127, %p128
    %p130 = scmp.ne.s32.totalorder %s118, %s119
    %p131 = scmp.eq.s32.totalorder %s20, 3
    %p132 = por %p130, %p131
    %p134 = scmp.ne.s32.totalorder %s119, %s133
    %p135 = scmp.eq.s32.totalorder %s20, 0
    %p136 = por %p134, %p135
    %s138 = sadd.s32 %s137, 1
    %p141 = scmp.eq.s32.totalorder %s14, 3
    %p142 = scmp.ne.s32.totalorder %s137, %s139
    %p143 = scmp.eq.s32.totalorder %s14, 0
    %p144 = por %p142, %p143
    %p145 = scmp.ne.s32.totalorder %s137, %s139
    %p146 = scmp.eq.s32.totalorder %s19, 3
    %p147 = por %p145, %p146
    %p148 = scmp.ne.s32.totalorder %s139, %s140
    %p149 = scmp.eq.s32.totalorder %s19, 0
    %p150 = por %p148, %p149
    %p151 = scmp.ne.s32.totalorder %s139, %s140
    %p152 = scmp.eq.s32.totalorder %s20, 3
    %p153 = por %p151, %p152
    %p155 = scmp.ne.s32.totalorder %s140, %s154
    %p156 = scmp.eq.s32.totalorder %s20, 0
    %p157 = por %p155, %p156
    %s159 = sadd.s32 %s158, 1
    %p162 = scmp.eq.s32.totalorder %s14, 3
    %p163 = scmp.ne.s32.totalorder %s158, %s160
    %p164 = scmp.eq.s32.totalorder %s14, 0
    %p165 = por %p163, %p164
    %p166 = scmp.ne.s32.totalorder %s158, %s160
    %p167 = scmp.eq.s32.totalorder %s19, 3
    %p168 = por %p166, %p167
    %p169 = scmp.ne.s32.totalorder %s160, %s161
    %p170 = scmp.eq.s32.totalorder %s19, 0
    %p171 = por %p169, %p170
    %p172 = scmp.ne.s32.totalorder %s160, %s161
    %p173 = scmp.eq.s32.totalorder %s20, 3
    %p174 = por %p172, %p173
    %p176 = scmp.ne.s32.totalorder %s161, %s175
    %p177 = scmp.eq.s32.totalorder %s20, 0
    %p178 = por %p176, %p177
    %s180 = sadd.s32 %s179, 1
    %p183 = scmp.eq.s32.totalorder %s14, 3
    %p184 = scmp.ne.s32.totalorder %s179, %s181
    %p185 = scmp.eq.s32.totalorder %s14, 0
    %p186 = por %p184, %p185
    %p187 = scmp.ne.s32.totalorder %s179, %s181
    %p188 = scmp.eq.s32.totalorder %s19, 3
    %p189 = por %p187, %p188
    %p190 = scmp.ne.s32.totalorder %s181, %s182
    %p191 = scmp.eq.s32.totalorder %s19, 0
    %p192 = por %p190, %p191
    %p193 = scmp.ne.s32.totalorder %s181, %s182
    %p194 = scmp.eq.s32.totalorder %s20, 3
    %p195 = por %p193, %p194
    %p197 = scmp.ne.s32.totalorder %s182, %s196
    %p198 = scmp.eq.s32.totalorder %s20, 0
    %p199 = por %p197, %p198
    %s200 = ssub.s32 %s14, %s21
    %p201 = scmp.eq.s32.totalorder %s200, 0
    %s203 = sadd.s32 %s202, 1
    %s204 = scalar_select %p201, %s202, %s203
    %p207 = pneg %p201
    %p208 = scmp.eq.s32.totalorder %s14, 3
    %p209 = por %p207, %p208
    %p210 = scmp.ne.s32.totalorder %s202, %s205
    %p211 = scmp.eq.s32.totalorder %s14, 0
    %p212 = por %p210, %p211
    %p213 = scmp.ne.s32.totalorder %s202, %s205
    %p214 = scmp.eq.s32.totalorder %s19, 3
    %p215 = por %p213, %p214
    %p216 = scmp.ne.s32.totalorder %s205, %s206
    %p217 = scmp.eq.s32.totalorder %s19, 0
    %p218 = por %p216, %p217
    %p219 = scmp.ne.s32.totalorder %s205, %s206
    %p220 = scmp.eq.s32.totalorder %s20, 3
    %p221 = por %p219, %p220
    %p223 = scmp.ne.s32.totalorder %s206, %s222
    %p224 = scmp.eq.s32.totalorder %s20, 0
    %p225 = por %p223, %p224
    %p226 = scmp.le.s32.totalorder 1, %s14
    %p227 = scmp.lt.s32.totalorder %s14, 5
    %p228 = pnand %p226, %p227
    %p229 = pneg %p228
    // Predicated region
    $region9: #{graph_transformer_block.1} parent=5 // pred_check
      _
    $region10: #{graph_transformer_block.1} parent=5 // pred_check_branch
      %231 = sbr.rel (%p228) target = $region12
    $region11: #{graph_transformer_block.1} parent=5 // pred_region
      %s232 = ssub.s32 %s14, 1
      // Predicated region
      $region13: #{graph_transformer_block.1} parent=11 // pred_check
        %p233 = pneg %p87
      $region14: #{graph_transformer_block.1} parent=11 // pred_check_branch
        %235 = sbr.rel (%p233) target = $region16
      $region15: #{graph_transformer_block.1} parent=11 // pred_region
        _
      $region16: #{graph_transformer_block.1} parent=11 // pred_fallthru
        _
      // Predicated region
      $region17: #{graph_transformer_block.1} parent=11 // pred_check
        %p236 = pneg %p108
      $region18: #{graph_transformer_block.1} parent=11 // pred_check_branch
        %238 = sbr.rel (%p236) target = $region20
      $region19: #{graph_transformer_block.1} parent=11 // pred_region
        _
      $region20: #{graph_transformer_block.1} parent=11 // pred_fallthru
        _
      // Predicated region
      $region21: #{graph_transformer_block.1} parent=11 // pred_check
        %p239 = pneg %p129
      $region22: #{graph_transformer_block.1} parent=11 // pred_check_branch
        %241 = sbr.rel (%p239) target = $region24
      $region23: #{graph_transformer_block.1} parent=11 // pred_region
        _
      $region24: #{graph_transformer_block.1} parent=11 // pred_fallthru
        _
      // Predicated region
      $region25: #{graph_transformer_block.1} parent=11 // pred_check
        %p242 = pneg %p150
      $region26: #{graph_transformer_block.1} parent=11 // pred_check_branch
        %244 = sbr.rel (%p242) target = $region28
      $region27: #{graph_transformer_block.1} parent=11 // pred_region
        _
      $region28: #{graph_transformer_block.1} parent=11 // pred_fallthru
        _
      // Predicated region
      $region29: #{graph_transformer_block.1} parent=11 // pred_check
        %p245 = pneg %p171
      $region30: #{graph_transformer_block.1} parent=11 // pred_check_branch
        %247 = sbr.rel (%p245) target = $region32
      $region31: #{graph_transformer_block.1} parent=11 // pred_region
        _
      $region32: #{graph_transformer_block.1} parent=11 // pred_fallthru
        _
      // Predicated region
      $region33: #{graph_transformer_block.1} parent=11 // pred_check
        %p248 = pneg %p192
      $region34: #{graph_transformer_block.1} parent=11 // pred_check_branch
        %250 = sbr.rel (%p248) target = $region36
      $region35: #{graph_transformer_block.1} parent=11 // pred_region
        _
      $region36: #{graph_transformer_block.1} parent=11 // pred_fallthru
        _
    $region12: #{graph_transformer_block.1} parent=5 // pred_fallthru
      _
    %p251 = scmp.lt.s32.totalorder %s14, 4
    // Predicated region
    $region37: #{graph_transformer_block.1} parent=5 // pred_check
      %p252 = pneg %p251
    $region38: #{graph_transformer_block.1} parent=5 // pred_check_branch
      %254 = sbr.rel (%p252) target = $region40
    $region39: #{graph_transformer_block.1} parent=5 // pred_region
      // Predicated region
      $region41: #{graph_transformer_block.1} parent=39 // pred_check
        %p255 = pneg %p34
      $region42: #{graph_transformer_block.1} parent=39 // pred_check_branch
        %257 = sbr.rel (%p255) target = $region44
      $region43: #{graph_transformer_block.1} parent=39 // pred_region
        %s258 = smul.u32 16, %s14
        %p259 = scmp.lt.s32.totalorder %s258, 63
        %s260 = scalar_select %p259, %s258, 63
        %s261 = smul.addr %s260, 8
        %s262 = scalar_lea.vmem %s0, %s261
        %s263 = smul.u32 16, %s14
      $region44: #{graph_transformer_block.1} parent=39 // pred_fallthru
        _
      // Predicated region
      $region45: #{graph_transformer_block.1} parent=39 // pred_check
        %p264 = pneg %p60
      $region46: #{graph_transformer_block.1} parent=39 // pred_check_branch
        %266 = sbr.rel (%p264) target = $region48
      $region47: #{graph_transformer_block.1} parent=39 // pred_region
        %s267 = smul.u32 3, %s14
        %p268 = scmp.lt.s32.totalorder %s267, 11
        %s269 = scalar_select %p268, %s267, 11
        %s270 = smul.addr %s269, 16
        %s271 = smul.addr %s270, 8
        %s272 = scalar_lea.vmem %s1, %s271
        %s273 = smul.u32 3, %s14
      $region48: #{graph_transformer_block.1} parent=39 // pred_fallthru
        _
    $region40: #{graph_transformer_block.1} parent=5 // pred_fallthru
      _
    %p274 = scmp.le.s32.totalorder 1, %s14
    %p275 = scmp.lt.s32.totalorder %s14, 5
    %p276 = pnand %p274, %p275
    %p277 = pneg %p276
    // Predicated region
    $region49: #{graph_transformer_block.1} parent=5 // pred_check
      _
    $region50: #{graph_transformer_block.1} parent=5 // pred_check_branch
      %279 = sbr.rel (%p276) target = $region52
    $region51: #{graph_transformer_block.1} parent=5 // pred_region
      %s280 = ssub.s32 %s14, 1
      %s281 = smul.u32 16, %s19
      %p282 = scmp.lt.s32.totalorder %s281, 63
      %s283 = scalar_select %p282, %s281, 63
      %s284 = smul.addr %s283, 8
      %s285 = scalar_lea.vmem %s0, %s284
      %p286 = pneg %p40
      %p287 = pneg %p37
      %s288 = smul.u32 3, %s19
      %p289 = scmp.lt.s32.totalorder %s288, 11
      %s290 = scalar_select %p289, %s288, 11
      %s291 = smul.addr %s290, 16
      %s292 = smul.addr %s291, 8
      %s293 = scalar_lea.vmem %s1, %s292
      %p294 = pneg %p66
      %p295 = pneg %p63
      %p296 = pneg %p87
      %p297 = pneg %p84
      %p298 = pneg %p108
      %p299 = pneg %p105
      %p300 = pneg %p129
      %p301 = pneg %p126
      %p302 = pneg %p150
      %p303 = pneg %p147
      %p304 = pneg %p171
      %p305 = pneg %p168
      %p306 = pneg %p192
      %p307 = pneg %p189
      %p308 = pneg %p218
      %p309 = pneg %p215
      %s310 = smul.u32 16, %s19
      %p311 = scmp.lt.s32.totalorder %s310, 63
      %s312 = scalar_select %p311, %s310, 63
      %s313 = smul.addr %s312, 8
      %s314 = scalar_lea.vmem %s8, %s313
      %s315 = smul.u32 16, %s19
      %p316 = scmp.lt.s32.totalorder %s315, 63
      %s317 = scalar_select %p316, %s315, 63
      %s318 = smul.addr %s317, 8
      %s319 = scalar_lea.vmem %s0, %s318
      %s320 = smul.u32 16, %s19
      %s321 = smul.u32 3, %s19
      %p322 = scmp.lt.s32.totalorder %s321, 11
      %s323 = scalar_select %p322, %s321, 11
      %s324 = smul.addr %s323, 16
      %s325 = smul.addr %s324, 8
      %s326 = scalar_lea.vmem %s1, %s325
      %s327 = smul.u32 3, %s19
      %s328 = smul.u32 16, %s19
      %p329 = scmp.lt.s32.totalorder %s328, 63
      %s330 = scalar_select %p329, %s328, 63
      %s331 = smul.addr %s330, 8
      %s332 = scalar_lea.vmem %s8, %s331
      %s333 = smul.u32 16, %s19
      %v334 = vld [vmem:[%s319] sm:$0xff]
      %v335 = vld [vmem:[%s319 + $0x8] sm:$0xff]
      %v336 = vld [vmem:[%s319 + $0x10] sm:$0xff]
      %v337 = vld [vmem:[%s319 + $0x18] sm:$0xff]
      %v338 = vld [vmem:[%s319 + $0x20] sm:$0xff]
      %v339 = vld [vmem:[%s319 + $0x28] sm:$0xff]
      %v340 = vld [vmem:[%s319 + $0x30] sm:$0xff]
      %v341 = vld [vmem:[%s319 + $0x38] sm:$0xff]
      %v342 = vld [vmem:[%s319 + $0x40] sm:$0xff]
      %v343 = vld [vmem:[%s319 + $0x48] sm:$0xff]
      %v344 = vld [vmem:[%s319 + $0x50] sm:$0xff]
      %v345 = vld [vmem:[%s319 + $0x58] sm:$0xff]
      %v346 = vld [vmem:[%s319 + $0x60] sm:$0xff]
      %v347 = vld [vmem:[%s319 + $0x68] sm:$0xff]
      %v348 = vld [vmem:[%s319 + $0x70] sm:$0xff]
      %v349 = vld [vmem:[%s319 + $0x78] sm:$0xff]
      %v350 = vld [vmem:[%s2] sm:$0x7]
      %vm351 = vcmask 261120
      %v353 = vsel %vm351, %v350, 0
      %v356 = vsel %vm351, %v334, 0
      %v359 = vsel %vm351, %v335, 0
      %v362 = vsel %vm351, %v336, 0
      %v365 = vsel %vm351, %v337, 0
      %v368 = vsel %vm351, %v338, 0
      %v371 = vsel %vm351, %v339, 0
      %v374 = vsel %vm351, %v340, 0
      %v377 = vsel %vm351, %v341, 0
      %v380 = vsel %vm351, %v342, 0
      %v383 = vsel %vm351, %v343, 0
      %v386 = vsel %vm351, %v344, 0
      %v389 = vsel %vm351, %v345, 0
      %v392 = vsel %vm351, %v346, 0
      %v395 = vsel %vm351, %v347, 0
      %v398 = vsel %vm351, %v348, 0
      %v401 = vsel %vm351, %v349, 0
      %403 = vmatprep.subr.mxu0 0.0
      %404 = vmatpush1.xpose.msra.mxu0 %v356
      %405 = vmatprep.subr.mxu0 0.0
      %406 = vmatpush1.xpose.msra.mxu0 %v359
      %407 = vmatprep.subr.mxu0 0.0
      %408 = vmatpush1.xpose.msra.mxu0 %v362
      %409 = vmatprep.subr.mxu0 0.0
      %410 = vmatpush1.xpose.msra.mxu0 %v365
      %411 = vmatprep.subr.mxu0 0.0
      %412 = vmatpush1.xpose.msra.mxu0 %v368
      %413 = vmatprep.subr.mxu0 0.0
      %414 = vmatpush1.xpose.msra.mxu0 %v371
      %415 = vmatprep.subr.mxu0 0.0
      %416 = vmatpush1.xpose.msra.mxu0 %v374
      %417 = vmatprep.subr.mxu0 0.0
      %418 = vmatpush1.xpose.msra.mxu0 %v377
      %419 = vmatprep.subr.mxu0 0.0
      %420 = vmatpush1.xpose.msra.mxu0 %v380
      %421 = vmatprep.subr.mxu0 0.0
      %422 = vmatpush1.xpose.msra.mxu0 %v383
      %423 = vmatprep.subr.mxu0 0.0
      %424 = vmatpush1.xpose.msra.mxu0 %v386
      %425 = vmatprep.subr.mxu0 0.0
      %426 = vmatpush1.xpose.msra.mxu0 %v389
      %427 = vmatprep.subr.mxu0 0.0
      %428 = vmatpush1.xpose.msra.mxu0 %v392
      %429 = vmatprep.subr.mxu0 0.0
      %430 = vmatpush1.xpose.msra.mxu0 %v395
      %431 = vmatprep.subr.mxu0 0.0
      %432 = vmatpush1.xpose.msra.mxu0 %v398
      %433 = vmatprep.subr.mxu0 0.0
      %434 = vmatpush1.xpose.msra.mxu0 %v401
      %435 = vmatprep.subr.mxu0 0.0
      %436 = vmatpush1.xpose.msra.mxu0 0.0
      %437 = vmatprep.subr.mxu0 0.0
      %438 = vmatpush1.xpose.msra.mxu0 0.0
      %439 = vmatprep.subr.mxu0 0.0
      %440 = vmatpush1.xpose.msra.mxu0 0.0
      %441 = vmatprep.subr.mxu0 0.0
      %442 = vmatpush1.xpose.msra.mxu0 0.0
      %443 = vmatprep.subr.mxu0 0.0
      %444 = vmatpush1.xpose.msra.mxu0 0.0
      %445 = vmatprep.subr.mxu0 0.0
      %446 = vmatpush1.xpose.msra.mxu0 0.0
      %447 = vmatprep.subr.mxu0 0.0
      %448 = vmatpush1.xpose.msra.mxu0 0.0
      %449 = vmatprep.subr.mxu0 0.0
      %450 = vmatpush1.xpose.msra.mxu0 0.0
      %451 = vmatprep.subr.mxu0 0.0
      %452 = vmatpush1.xpose.msra.mxu0 0.0
      %453 = vmatprep.subr.mxu0 0.0
      %454 = vmatpush1.xpose.msra.mxu0 0.0
      %455 = vmatprep.subr.mxu0 0.0
      %456 = vmatpush1.xpose.msra.mxu0 0.0
      %457 = vmatprep.subr.mxu0 0.0
      %458 = vmatpush1.xpose.msra.mxu0 0.0
      %459 = vmatprep.subr.mxu0 0.0
      %460 = vmatpush1.xpose.msra.mxu0 0.0
      %461 = vmatprep.subr.mxu0 0.0
      %462 = vmatpush1.xpose.msra.mxu0 0.0
      %463 = vmatprep.subr.mxu0 0.0
      %464 = vmatpush1.xpose.msra.mxu0 0.0
      %465 = vmatprep.subr.mxu0 0.0
      %466 = vmatpush1.xpose.msra.mxu0 0.0
      %467 = vmatprep.mubr.f32.mxu0 0.0
      %468 = vmatmul.mubr.f32.gmra.mrb[0].mxu0 %v353
      %v469 = vpop.f32.mrb[0].mxu0
      %v470 = vadd.f32 0.0, %v469
      %v471 = vpop.f32.mrb[0].mxu0
      %472 = vdwg.mxu0
      %v473 = vld [vmem:[%s3] sm:$0x7]
      %v475 = vsel %vm351, %v473, 0
      %477 = vmatprep.subr.mxu0 0.0
      %478 = vmatpush1.xpose.msra.mxu0 %v475
      %479 = vmatprep.subr.mxu0 0.0
      %480 = vmatpush1.xpose.msra.mxu0 0.0
      %481 = vmatprep.subr.mxu0 0.0
      %482 = vmatpush1.xpose.msra.mxu0 0.0
      %483 = vmatprep.subr.mxu0 0.0
      %484 = vmatpush1.xpose.msra.mxu0 0.0
      %485 = vmatprep.subr.mxu0 0.0
      %486 = vmatpush1.xpose.msra.mxu0 0.0
      %487 = vmatprep.subr.mxu0 0.0
      %488 = vmatpush1.xpose.msra.mxu0 0.0
      %489 = vmatprep.subr.mxu0 0.0
      %490 = vmatpush1.xpose.msra.mxu0 0.0
      %491 = vmatprep.subr.mxu0 0.0
      %492 = vmatpush1.xpose.msra.mxu0 0.0
      %493 = vmatprep.subr.mxu0 0.0
      %494 = vmatpush1.xpose.msra.mxu0 0.0
      %495 = vmatprep.subr.mxu0 0.0
      %496 = vmatpush1.xpose.msra.mxu0 0.0
      %497 = vmatprep.subr.mxu0 0.0
      %498 = vmatpush1.xpose.msra.mxu0 0.0
      %499 = vmatprep.subr.mxu0 0.0
      %500 = vmatpush1.xpose.msra.mxu0 0.0
      %501 = vmatprep.subr.mxu0 0.0
      %502 = vmatpush1.xpose.msra.mxu0 0.0
      %503 = vmatprep.subr.mxu0 0.0
      %504 = vmatpush1.xpose.msra.mxu0 0.0
      %505 = vmatprep.subr.mxu0 0.0
      %506 = vmatpush1.xpose.msra.mxu0 0.0
      %507 = vmatprep.subr.mxu0 0.0
      %508 = vmatpush1.xpose.msra.mxu0 0.0
      %509 = vmatprep.subr.mxu0 0.0
      %510 = vmatpush1.xpose.msra.mxu0 0.0
      %511 = vmatprep.subr.mxu0 0.0
      %512 = vmatpush1.xpose.msra.mxu0 0.0
      %513 = vmatprep.subr.mxu0 0.0
      %514 = vmatpush1.xpose.msra.mxu0 0.0
      %515 = vmatprep.subr.mxu0 0.0
      %516 = vmatpush1.xpose.msra.mxu0 0.0
      %517 = vmatprep.subr.mxu0 0.0
      %518 = vmatpush1.xpose.msra.mxu0 0.0
      %519 = vmatprep.subr.mxu0 0.0
      %520 = vmatpush1.xpose.msra.mxu0 0.0
      %521 = vmatprep.subr.mxu0 0.0
      %522 = vmatpush1.xpose.msra.mxu0 0.0
      %523 = vmatprep.subr.mxu0 0.0
      %524 = vmatpush1.xpose.msra.mxu0 0.0
      %525 = vmatprep.subr.mxu0 0.0
      %526 = vmatpush1.xpose.msra.mxu0 0.0
      %527 = vmatprep.subr.mxu0 0.0
      %528 = vmatpush1.xpose.msra.mxu0 0.0
      %529 = vmatprep.subr.mxu0 0.0
      %530 = vmatpush1.xpose.msra.mxu0 0.0
      %531 = vmatprep.subr.mxu0 0.0
      %532 = vmatpush1.xpose.msra.mxu0 0.0
      %533 = vmatprep.subr.mxu0 0.0
      %534 = vmatpush1.xpose.msra.mxu0 0.0
      %535 = vmatprep.subr.mxu0 0.0
      %536 = vmatpush1.xpose.msra.mxu0 0.0
      %537 = vmatprep.subr.mxu0 0.0
      %538 = vmatpush1.xpose.msra.mxu0 0.0
      %539 = vmatprep.subr.mxu0 0.0
      %540 = vmatpush1.xpose.msra.mxu0 0.0
      %541 = vmatprep.mubr.f32.mxu0 0.0
      %542 = vmatmul.mubr.f32.gmra.mrb[0].mxu0 %v356
      %v543 = vpop.f32.mrb[0].mxu0
      %v544 = vadd.f32 0.0, %v543
      %v545 = vpop.f32.mrb[0].mxu0
      %546 = vmatprep.mubr.f32.mxu0 0.0
      %547 = vmatmul.mubr.f32.gmra.mrb[0].mxu0 %v359
      %v548 = vpop.f32.mrb[0].mxu0
      %v549 = vadd.f32 0.0, %v548
      %v550 = vpop.f32.mrb[0].mxu0
      %551 = vmatprep.mubr.f32.mxu0 0.0
      %552 = vmatmul.mubr.f32.gmra.mrb[0].mxu0 %v362
      %v553 = vpop.f32.mrb[0].mxu0
      %v554 = vadd.f32 0.0, %v553
      %v555 = vpop.f32.mrb[0].mxu0
      %556 = vmatprep.mubr.f32.mxu0 0.0
      %557 = vmatmul.mubr.f32.gmra.mrb[0].mxu0 %v365
      %v558 = vpop.f32.mrb[0].mxu0
      %v559 = vadd.f32 0.0, %v558
      %v560 = vpop.f32.mrb[0].mxu0
      %561 = vmatprep.mubr.f32.mxu0 0.0
      %562 = vmatmul.mubr.f32.gmra.mrb[0].mxu0 %v368
      %v563 = vpop.f32.mrb[0].mxu0
      %v564 = vadd.f32 0.0, %v563
      %v565 = vpop.f32.mrb[0].mxu0
      %566 = vmatprep.mubr.f32.mxu0 0.0
      %567 = vmatmul.mubr.f32.gmra.mrb[0].mxu0 %v371
      %v568 = vpop.f32.mrb[0].mxu0
      %v569 = vadd.f32 0.0, %v568
      %v570 = vpop.f32.mrb[0].mxu0
      %571 = vmatprep.mubr.f32.mxu0 0.0
      %572 = vmatmul.mubr.f32.gmra.mrb[0].mxu0 %v374
      %v573 = vpop.f32.mrb[0].mxu0
      %v574 = vadd.f32 0.0, %v573
      %v575 = vpop.f32.mrb[0].mxu0
      %576 = vmatprep.mubr.f32.mxu0 0.0
      %577 = vmatmul.mubr.f32.gmra.mrb[0].mxu0 %v377
      %v578 = vpop.f32.mrb[0].mxu0
      %v579 = vadd.f32 0.0, %v578
      %v580 = vpop.f32.mrb[0].mxu0
      %581 = vmatprep.mubr.f32.mxu0 0.0
      %582 = vmatmul.mubr.f32.gmra.mrb[0].mxu0 %v380
      %v583 = vpop.f32.mrb[0].mxu0
      %v584 = vadd.f32 0.0, %v583
      %v585 = vpop.f32.mrb[0].mxu0
      %586 = vmatprep.mubr.f32.mxu0 0.0
      %587 = vmatmul.mubr.f32.gmra.mrb[0].mxu0 %v383
      %v588 = vpop.f32.mrb[0].mxu0
      %v589 = vadd.f32 0.0, %v588
      %v590 = vpop.f32.mrb[0].mxu0
      %591 = vmatprep.mubr.f32.mxu0 0.0
      %592 = vmatmul.mubr.f32.gmra.mrb[0].mxu0 %v386
      %v593 = vpop.f32.mrb[0].mxu0
      %v594 = vadd.f32 0.0, %v593
      %v595 = vpop.f32.mrb[0].mxu0
      %596 = vmatprep.mubr.f32.mxu0 0.0
      %597 = vmatmul.mubr.f32.gmra.mrb[0].mxu0 %v389
      %v598 = vpop.f32.mrb[0].mxu0
      %v599 = vadd.f32 0.0, %v598
      %v600 = vpop.f32.mrb[0].mxu0
      %601 = vmatprep.mubr.f32.mxu0 0.0
      %602 = vmatmul.mubr.f32.gmra.mrb[0].mxu0 %v392
      %v603 = vpop.f32.mrb[0].mxu0
      %v604 = vadd.f32 0.0, %v603
      %v605 = vpop.f32.mrb[0].mxu0
      %606 = vmatprep.mubr.f32.mxu0 0.0
      %607 = vmatmul.mubr.f32.gmra.mrb[0].mxu0 %v395
      %v608 = vpop.f32.mrb[0].mxu0
      %v609 = vadd.f32 0.0, %v608
      %v610 = vpop.f32.mrb[0].mxu0
      %611 = vmatprep.mubr.f32.mxu0 0.0
      %612 = vmatmul.mubr.f32.gmra.mrb[0].mxu0 %v398
      %v613 = vpop.f32.mrb[0].mxu0
      %v614 = vadd.f32 0.0, %v613
      %v615 = vpop.f32.mrb[0].mxu0
      %616 = vmatprep.mubr.f32.mxu0 0.0
      %617 = vmatmul.mubr.f32.gmra.mrb[0].mxu0 %v401
      %v618 = vpop.f32.mrb[0].mxu0
      %v619 = vadd.f32 0.0, %v618
      %v620 = vpop.f32.mrb[0].mxu0
      %621 = vdwg.mxu0
      %623 = vset.pattern.permute.xlu0 0
      %624 = vperm.xlu0 %623, %v544
      %v625 = vpop.permute.xlu0 %624
      %628 = vset.pattern.permute.xlu0 0
      %629 = vperm.xlu0 %628, %v549
      %v630 = vpop.permute.xlu0 %629
      %633 = vset.pattern.permute.xlu0 0
      %634 = vperm.xlu0 %633, %v554
      %v635 = vpop.permute.xlu0 %634
      %638 = vset.pattern.permute.xlu0 0
      %639 = vperm.xlu0 %638, %v559
      %v640 = vpop.permute.xlu0 %639
      %643 = vset.pattern.permute.xlu0 0
      %644 = vperm.xlu0 %643, %v564
      %v645 = vpop.permute.xlu0 %644
      %648 = vset.pattern.permute.xlu0 0
      %649 = vperm.xlu0 %648, %v569
      %v650 = vpop.permute.xlu0 %649
      %653 = vset.pattern.permute.xlu0 0
      %654 = vperm.xlu0 %653, %v574
      %v655 = vpop.permute.xlu0 %654
      %658 = vset.pattern.permute.xlu0 0
      %659 = vperm.xlu0 %658, %v579
      %v660 = vpop.permute.xlu0 %659
      %663 = vset.pattern.permute.xlu0 0
      %664 = vperm.xlu0 %663, %v584
      %v665 = vpop.permute.xlu0 %664
      %668 = vset.pattern.permute.xlu0 0
      %669 = vperm.xlu0 %668, %v589
      %v670 = vpop.permute.xlu0 %669
      %673 = vset.pattern.permute.xlu0 0
      %674 = vperm.xlu0 %673, %v594
      %v675 = vpop.permute.xlu0 %674
      %678 = vset.pattern.permute.xlu0 0
      %679 = vperm.xlu0 %678, %v599
      %v680 = vpop.permute.xlu0 %679
      %683 = vset.pattern.permute.xlu0 0
      %684 = vperm.xlu0 %683, %v604
      %v685 = vpop.permute.xlu0 %684
      %688 = vset.pattern.permute.xlu0 0
      %689 = vperm.xlu0 %688, %v609
      %v690 = vpop.permute.xlu0 %689
      %693 = vset.pattern.permute.xlu0 0
      %694 = vperm.xlu0 %693, %v614
      %v695 = vpop.permute.xlu0 %694
      %698 = vset.pattern.permute.xlu0 0
      %699 = vperm.xlu0 %698, %v619
      %v700 = vpop.permute.xlu0 %699
      %v702 = vlaneseq
      %v703 = vshrl.u32 %v702, 7
      %v704 = vsub.s32 0, %v703
      %v705 = vrot.slane %v470, %v704
      %v706 = vadd.f32 %v625, %v705
      %v707 = vadd.f32 %v630, %v705
      %v708 = vadd.f32 %v635, %v705
      %v709 = vadd.f32 %v640, %v705
      %v710 = vadd.f32 %v645, %v705
      %v711 = vadd.f32 %v650, %v705
      %v712 = vadd.f32 %v655, %v705
      %v713 = vadd.f32 %v660, %v705
      %v714 = vadd.f32 %v665, %v705
      %v715 = vadd.f32 %v670, %v705
      %v716 = vadd.f32 %v675, %v705
      %v717 = vadd.f32 %v680, %v705
      %v718 = vadd.f32 %v685, %v705
      %v719 = vadd.f32 %v690, %v705
      %v720 = vadd.f32 %v695, %v705
      %v721 = vadd.f32 %v700, %v705
      %v722 = vld [vmem:[%s326] sm:$0xff]
      %v723 = vld [vmem:[%s326 + $0x8] sm:$0xff]
      %v724 = vld [vmem:[%s326 + $0x10] sm:$0xff]
      %v725 = vld [vmem:[%s326 + $0x18] sm:$0xff]
      %v726 = vld [vmem:[%s326 + $0x20] sm:$0xff]
      %v727 = vld [vmem:[%s326 + $0x28] sm:$0xff]
      %v728 = vld [vmem:[%s326 + $0x30] sm:$0xff]
      %v729 = vld [vmem:[%s326 + $0x38] sm:$0xff]
      %v730 = vld [vmem:[%s326 + $0x40] sm:$0xff]
      %v731 = vld [vmem:[%s326 + $0x48] sm:$0xff]
      %v732 = vld [vmem:[%s326 + $0x50] sm:$0xff]
      %v733 = vld [vmem:[%s326 + $0x58] sm:$0xff]
      %v734 = vld [vmem:[%s326 + $0x60] sm:$0xff]
      %v735 = vld [vmem:[%s326 + $0x68] sm:$0xff]
      %v736 = vld [vmem:[%s326 + $0x70] sm:$0xff]
      %v737 = vld [vmem:[%s326 + $0x78] sm:$0xff]
      %v738 = vadd.f32 %v706, %v722
      %v739 = vadd.f32 %v707, %v723
      %v740 = vadd.f32 %v708, %v724
      %v741 = vadd.f32 %v709, %v725
      %v742 = vadd.f32 %v710, %v726
      %v743 = vadd.f32 %v711, %v727
      %v744 = vadd.f32 %v712, %v728
      %v745 = vadd.f32 %v713, %v729
      %v746 = vadd.f32 %v714, %v730
      %v747 = vadd.f32 %v715, %v731
      %v748 = vadd.f32 %v716, %v732
      %v749 = vadd.f32 %v717, %v733
      %v750 = vadd.f32 %v718, %v734
      %v751 = vadd.f32 %v719, %v735
      %v752 = vadd.f32 %v720, %v736
      %v753 = vadd.f32 %v721, %v737
      %vm754 = vcmp.ge.f32.partialorder %v738, 0.0
      %vm755 = vcmp.ge.f32.partialorder %v739, 0.0
      %vm756 = vcmp.ge.f32.partialorder %v740, 0.0
      %vm757 = vcmp.ge.f32.partialorder %v741, 0.0
      %vm758 = vcmp.ge.f32.partialorder %v742, 0.0
      %vm759 = vcmp.ge.f32.partialorder %v743, 0.0
      %vm760 = vcmp.ge.f32.partialorder %v744, 0.0
      %vm761 = vcmp.ge.f32.partialorder %v745, 0.0
      %vm762 = vcmp.ge.f32.partialorder %v746, 0.0
      %vm763 = vcmp.ge.f32.partialorder %v747, 0.0
      %vm764 = vcmp.ge.f32.partialorder %v748, 0.0
      %vm765 = vcmp.ge.f32.partialorder %v749, 0.0
      %vm766 = vcmp.ge.f32.partialorder %v750, 0.0
      %vm767 = vcmp.ge.f32.partialorder %v751, 0.0
      %vm768 = vcmp.ge.f32.partialorder %v752, 0.0
      %vm769 = vcmp.ge.f32.partialorder %v753, 0.0
      %v770 = vmul.f32 %v738, 0.2
      %v771 = vmul.f32 %v739, 0.2
      %v772 = vmul.f32 %v740, 0.2
      %v773 = vmul.f32 %v741, 0.2
      %v774 = vmul.f32 %v742, 0.2
      %v775 = vmul.f32 %v743, 0.2
      %v776 = vmul.f32 %v744, 0.2
      %v777 = vmul.f32 %v745, 0.2
      %v778 = vmul.f32 %v746, 0.2
      %v779 = vmul.f32 %v747, 0.2
      %v780 = vmul.f32 %v748, 0.2
      %v781 = vmul.f32 %v749, 0.2
      %v782 = vmul.f32 %v750, 0.2
      %v783 = vmul.f32 %v751, 0.2
      %v784 = vmul.f32 %v752, 0.2
      %v785 = vmul.f32 %v753, 0.2
      %v786 = vsel %vm754, %v738, %v770
      %v787 = vsel %vm755, %v739, %v771
      %v788 = vsel %vm756, %v740, %v772
      %v789 = vsel %vm757, %v741, %v773
      %v790 = vsel %vm758, %v742, %v774
      %v791 = vsel %vm759, %v743, %v775
      %v792 = vsel %vm760, %v744, %v776
      %v793 = vsel %vm761, %v745, %v777
      %v794 = vsel %vm762, %v746, %v778
      %v795 = vsel %vm763, %v747, %v779
      %v796 = vsel %vm764, %v748, %v780
      %v797 = vsel %vm765, %v749, %v781
      %v798 = vsel %vm766, %v750, %v782
      %v799 = vsel %vm767, %v751, %v783
      %v800 = vsel %vm768, %v752, %v784
      %v801 = vsel %vm769, %v753, %v785
      %802 = vmax.xlane.f32.xlu0 %v786
      %v803 = vpop.xlane.xlu0 %802
      %804 = vmax.xlane.f32.xlu0 %v787
      %v805 = vpop.xlane.xlu0 %804
      %806 = vmax.xlane.f32.xlu0 %v788
      %v807 = vpop.xlane.xlu0 %806
      %808 = vmax.xlane.f32.xlu0 %v789
      %v809 = vpop.xlane.xlu0 %808
      %810 = vmax.xlane.f32.xlu0 %v790
      %v811 = vpop.xlane.xlu0 %810
      %812 = vmax.xlane.f32.xlu0 %v791
      %v813 = vpop.xlane.xlu0 %812
      %814 = vmax.xlane.f32.xlu0 %v792
      %v815 = vpop.xlane.xlu0 %814
      %816 = vmax.xlane.f32.xlu0 %v793
      %v817 = vpop.xlane.xlu0 %816
      %818 = vmax.xlane.f32.xlu0 %v794
      %v819 = vpop.xlane.xlu0 %818
      %820 = vmax.xlane.f32.xlu0 %v795
      %v821 = vpop.xlane.xlu0 %820
      %822 = vmax.xlane.f32.xlu0 %v796
      %v823 = vpop.xlane.xlu0 %822
      %824 = vmax.xlane.f32.xlu0 %v797
      %v825 = vpop.xlane.xlu0 %824
      %826 = vmax.xlane.f32.xlu0 %v798
      %v827 = vpop.xlane.xlu0 %826
      %828 = vmax.xlane.f32.xlu0 %v799
      %v829 = vpop.xlane.xlu0 %828
      %830 = vmax.xlane.f32.xlu0 %v800
      %v831 = vpop.xlane.xlu0 %830
      %832 = vmax.xlane.f32.xlu0 %v801
      %v833 = vpop.xlane.xlu0 %832
      %v834 = vsub.f32 %v786, %v803
      %v835 = vsub.f32 %v787, %v805
      %v836 = vsub.f32 %v788, %v807
      %v837 = vsub.f32 %v789, %v809
      %v838 = vsub.f32 %v790, %v811
      %v839 = vsub.f32 %v791, %v813
      %v840 = vsub.f32 %v792, %v815
      %v841 = vsub.f32 %v793, %v817
      %v842 = vsub.f32 %v794, %v819
      %v843 = vsub.f32 %v795, %v821
      %v844 = vsub.f32 %v796, %v823
      %v845 = vsub.f32 %v797, %v825
      %v846 = vsub.f32 %v798, %v827
      %v847 = vsub.f32 %v799, %v829
      %v848 = vsub.f32 %v800, %v831
      %v849 = vsub.f32 %v801, %v833
      %v850 = vmul.f32 %v834, 1.442695
      %v851 = vpow.pop %v850
      %v852 = vmul.f32 %v835, 1.442695
      %v853 = vpow.pop %v852
      %v854 = vmul.f32 %v836, 1.442695
      %v855 = vpow.pop %v854
      %v856 = vmul.f32 %v837, 1.442695
      %v857 = vpow.pop %v856
      %v858 = vmul.f32 %v838, 1.442695
      %v859 = vpow.pop %v858
      %v860 = vmul.f32 %v839, 1.442695
      %v861 = vpow.pop %v860
      %v862 = vmul.f32 %v840, 1.442695
      %v863 = vpow.pop %v862
      %v864 = vmul.f32 %v841, 1.442695
      %v865 = vpow.pop %v864
      %v866 = vmul.f32 %v842, 1.442695
      %v867 = vpow.pop %v866
      %v868 = vmul.f32 %v843, 1.442695
      %v869 = vpow.pop %v868
      %v870 = vmul.f32 %v844, 1.442695
      %v871 = vpow.pop %v870
      %v872 = vmul.f32 %v845, 1.442695
      %v873 = vpow.pop %v872
      %v874 = vmul.f32 %v846, 1.442695
      %v875 = vpow.pop %v874
      %v876 = vmul.f32 %v847, 1.442695
      %v877 = vpow.pop %v876
      %v878 = vmul.f32 %v848, 1.442695
      %v879 = vpow.pop %v878
      %v880 = vmul.f32 %v849, 1.442695
      %v881 = vpow.pop %v880
      %882 = vadd.xlane.f32.xlu0 %v851
      %v883 = vpop.xlane.xlu0 %882
      %884 = vadd.xlane.f32.xlu0 %v853
      %v885 = vpop.xlane.xlu0 %884
      %886 = vadd.xlane.f32.xlu0 %v855
      %v887 = vpop.xlane.xlu0 %886
      %888 = vadd.xlane.f32.xlu0 %v857
      %v889 = vpop.xlane.xlu0 %888
      %890 = vadd.xlane.f32.xlu0 %v859
      %v891 = vpop.xlane.xlu0 %890
      %892 = vadd.xlane.f32.xlu0 %v861
      %v893 = vpop.xlane.xlu0 %892
      %894 = vadd.xlane.f32.xlu0 %v863
      %v895 = vpop.xlane.xlu0 %894
      %896 = vadd.xlane.f32.xlu0 %v865
      %v897 = vpop.xlane.xlu0 %896
      %898 = vadd.xlane.f32.xlu0 %v867
      %v899 = vpop.xlane.xlu0 %898
      %900 = vadd.xlane.f32.xlu0 %v869
      %v901 = vpop.xlane.xlu0 %900
      %902 = vadd.xlane.f32.xlu0 %v871
      %v903 = vpop.xlane.xlu0 %902
      %904 = vadd.xlane.f32.xlu0 %v873
      %v905 = vpop.xlane.xlu0 %904
      %906 = vadd.xlane.f32.xlu0 %v875
      %v907 = vpop.xlane.xlu0 %906
      %908 = vadd.xlane.f32.xlu0 %v877
      %v909 = vpop.xlane.xlu0 %908
      %910 = vadd.xlane.f32.xlu0 %v879
      %v911 = vpop.xlane.xlu0 %910
      %912 = vadd.xlane.f32.xlu0 %v881
      %v913 = vpop.xlane.xlu0 %912
      %v914 = vrcp.pop %v883
      %v915 = vmul.f32 %v851, %v914
      %v916 = vrcp.pop %v885
      %v917 = vmul.f32 %v853, %v916
      %v918 = vrcp.pop %v887
      %v919 = vmul.f32 %v855, %v918
      %v920 = vrcp.pop %v889
      %v921 = vmul.f32 %v857, %v920
      %v922 = vrcp.pop %v891
      %v923 = vmul.f32 %v859, %v922
      %v924 = vrcp.pop %v893
      %v925 = vmul.f32 %v861, %v924
      %v926 = vrcp.pop %v895
      %v927 = vmul.f32 %v863, %v926
      %v928 = vrcp.pop %v897
      %v929 = vmul.f32 %v865, %v928
      %v930 = vrcp.pop %v899
      %v931 = vmul.f32 %v867, %v930
      %v932 = vrcp.pop %v901
      %v933 = vmul.f32 %v869, %v932
      %v934 = vrcp.pop %v903
      %v935 = vmul.f32 %v871, %v934
      %v936 = vrcp.pop %v905
      %v937 = vmul.f32 %v873, %v936
      %v938 = vrcp.pop %v907
      %v939 = vmul.f32 %v875, %v938
      %v940 = vrcp.pop %v909
      %v941 = vmul.f32 %v877, %v940
      %v942 = vrcp.pop %v911
      %v943 = vmul.f32 %v879, %v942
      %v944 = vrcp.pop %v913
      %v945 = vmul.f32 %v881, %v944
      %946 = vst [vmem:[#allocation2] sm:$0xff] %v915
      %947 = vst [vmem:[#allocation2 + $0x18] sm:$0xff] %v917
      %948 = vst [vmem:[#allocation2 + $0x30] sm:$0xff] %v919
      %949 = vst [vmem:[#allocation2 + $0x48] sm:$0xff] %v921
      %950 = vst [vmem:[#allocation2 + $0x60] sm:$0xff] %v923
      %951 = vst [vmem:[#allocation2 + $0x78] sm:$0xff] %v925
      %952 = vst [vmem:[#allocation2 + $0x90] sm:$0xff] %v927
      %953 = vst [vmem:[#allocation2 + $0xa8] sm:$0xff] %v929
      %954 = vst [vmem:[#allocation2 + $0xc0] sm:$0xff] %v931
      %955 = vst [vmem:[#allocation2 + $0xd8] sm:$0xff] %v933
      %956 = vst [vmem:[#allocation2 + $0xf0] sm:$0xff] %v935
      %957 = vst [vmem:[#allocation2 + $0x108] sm:$0xff] %v937
      %958 = vst [vmem:[#allocation2 + $0x120] sm:$0xff] %v939
      %959 = vst [vmem:[#allocation2 + $0x138] sm:$0xff] %v941
      %960 = vst [vmem:[#allocation2 + $0x150] sm:$0xff] %v943
      %961 = vst [vmem:[#allocation2 + $0x168] sm:$0xff] %v945
      %v962 = vld [vmem:[%s4] sm:$0xff]
      %v963 = vld [vmem:[%s4 + $0x8] sm:$0xff]
      %v964 = vld [vmem:[%s4 + $0x10] sm:$0xff]
      %v965 = vld [vmem:[%s4 + $0x18] sm:$0xff]
      %966 = vmatprep.subr.mxu0 0.0
      %967 = vmatpush1.msra.mxu0 %v962
      %968 = vmatprep.subr.mxu0 0.0
      %969 = vmatpush1.msra.mxu0 %v963
      %970 = vmatprep.subr.mxu0 0.0
      %971 = vmatpush1.msra.mxu0 %v964
      %972 = vmatprep.subr.mxu0 0.0
      %973 = vmatpush1.msra.mxu0 %v965
      %974 = vmatprep.subr.mxu0 0.0
      %975 = vmatpush1.msra.mxu0 0.0
      %976 = vmatprep.subr.mxu0 0.0
      %977 = vmatpush1.msra.mxu0 0.0
      %978 = vmatprep.subr.mxu0 0.0
      %979 = vmatpush1.msra.mxu0 0.0
      %980 = vmatprep.subr.mxu0 0.0
      %981 = vmatpush1.msra.mxu0 0.0
      %982 = vmatprep.subr.mxu0 0.0
      %983 = vmatpush1.msra.mxu0 0.0
      %984 = vmatprep.subr.mxu0 0.0
      %985 = vmatpush1.msra.mxu0 0.0
      %986 = vmatprep.subr.mxu0 0.0
      %987 = vmatpush1.msra.mxu0 0.0
      %988 = vmatprep.subr.mxu0 0.0
      %989 = vmatpush1.msra.mxu0 0.0
      %990 = vmatprep.subr.mxu0 0.0
      %991 = vmatpush1.msra.mxu0 0.0
      %992 = vmatprep.subr.mxu0 0.0
      %993 = vmatpush1.msra.mxu0 0.0
      %994 = vmatprep.subr.mxu0 0.0
      %995 = vmatpush1.msra.mxu0 0.0
      %996 = vmatprep.subr.mxu0 0.0
      %997 = vmatpush1.msra.mxu0 0.0
      %998 = vmatprep.subr.mxu0 0.0
      %999 = vmatpush1.msra.mxu0 0.0
      %1000 = vmatprep.subr.mxu0 0.0
      %1001 = vmatpush1.msra.mxu0 0.0
      %1002 = vmatprep.subr.mxu0 0.0
      %1003 = vmatpush1.msra.mxu0 0.0
      %1004 = vmatprep.subr.mxu0 0.0
      %1005 = vmatpush1.msra.mxu0 0.0
      %1006 = vmatprep.subr.mxu0 0.0
      %1007 = vmatpush1.msra.mxu0 0.0
      %1008 = vmatprep.subr.mxu0 0.0
      %1009 = vmatpush1.msra.mxu0 0.0
      %1010 = vmatprep.subr.mxu0 0.0
      %1011 = vmatpush1.msra.mxu0 0.0
      %1012 = vmatprep.subr.mxu0 0.0
      %1013 = vmatpush1.msra.mxu0 0.0
      %1014 = vmatprep.subr.mxu0 0.0
      %1015 = vmatpush1.msra.mxu0 0.0
      %1016 = vmatprep.subr.mxu0 0.0
      %1017 = vmatpush1.msra.mxu0 0.0
      %1018 = vmatprep.subr.mxu0 0.0
      %1019 = vmatpush1.msra.mxu0 0.0
      %1020 = vmatprep.subr.mxu0 0.0
      %1021 = vmatpush1.msra.mxu0 0.0
      %1022 = vmatprep.subr.mxu0 0.0
      %1023 = vmatpush1.msra.mxu0 0.0
      %1024 = vmatprep.subr.mxu0 0.0
      %1025 = vmatpush1.msra.mxu0 0.0
      %1026 = vmatprep.subr.mxu0 0.0
      %1027 = vmatpush1.msra.mxu0 0.0
      %1028 = vmatprep.subr.mxu0 0.0
      %1029 = vmatpush1.msra.mxu0 0.0
      %1030 = vmatprep.mubr.f32.mxu0 0.0
      %1031 = vmatmul.mubr.f32.gmra.mrb[0].mxu0 %v356
      %v1032 = vpop.f32.mrb[0].mxu0
      %v1033 = vadd.f32 0.0, %v1032
      %v1034 = vpop.f32.mrb[0].mxu0
      %1035 = vmatprep.mubr.f32.mxu0 0.0
      %1036 = vmatmul.mubr.f32.gmra.mrb[0].mxu0 %v359
      %v1037 = vpop.f32.mrb[0].mxu0
      %v1038 = vadd.f32 0.0, %v1037
      %v1039 = vpop.f32.mrb[0].mxu0
      %1040 = vmatprep.mubr.f32.mxu0 0.0
      %1041 = vmatmul.mubr.f32.gmra.mrb[0].mxu0 %v362
      %v1042 = vpop.f32.mrb[0].mxu0
      %v1043 = vadd.f32 0.0, %v1042
      %v1044 = vpop.f32.mrb[0].mxu0
      %1045 = vmatprep.mubr.f32.mxu0 0.0
      %1046 = vmatmul.mubr.f32.gmra.mrb[0].mxu0 %v365
      %v1047 = vpop.f32.mrb[0].mxu0
      %v1048 = vadd.f32 0.0, %v1047
      %v1049 = vpop.f32.mrb[0].mxu0
      %1050 = vmatprep.mubr.f32.mxu0 0.0
      %1051 = vmatmul.mubr.f32.gmra.mrb[0].mxu0 %v368
      %v1052 = vpop.f32.mrb[0].mxu0
      %v1053 = vadd.f32 0.0, %v1052
      %v1054 = vpop.f32.mrb[0].mxu0
      %1055 = vmatprep.mubr.f32.mxu0 0.0
      %1056 = vmatmul.mubr.f32.gmra.mrb[0].mxu0 %v371
      %v1057 = vpop.f32.mrb[0].mxu0
      %v1058 = vadd.f32 0.0, %v1057
      %v1059 = vpop.f32.mrb[0].mxu0
      %1060 = vmatprep.mubr.f32.mxu0 0.0
      %1061 = vmatmul.mubr.f32.gmra.mrb[0].mxu0 %v374
      %v1062 = vpop.f32.mrb[0].mxu0
      %v1063 = vadd.f32 0.0, %v1062
      %v1064 = vpop.f32.mrb[0].mxu0
      %1065 = vmatprep.mubr.f32.mxu0 0.0
      %1066 = vmatmul.mubr.f32.gmra.mrb[0].mxu0 %v377
      %v1067 = vpop.f32.mrb[0].mxu0
      %v1068 = vadd.f32 0.0, %v1067
      %v1069 = vpop.f32.mrb[0].mxu0
      %1070 = vmatprep.mubr.f32.mxu0 0.0
      %1071 = vmatmul.mubr.f32.gmra.mrb[0].mxu0 %v380
      %v1072 = vpop.f32.mrb[0].mxu0
      %v1073 = vadd.f32 0.0, %v1072
      %v1074 = vpop.f32.mrb[0].mxu0
      %1075 = vmatprep.mubr.f32.mxu0 0.0
      %1076 = vmatmul.mubr.f32.gmra.mrb[0].mxu0 %v383
      %v1077 = vpop.f32.mrb[0].mxu0
      %v1078 = vadd.f32 0.0, %v1077
      %v1079 = vpop.f32.mrb[0].mxu0
      %1080 = vmatprep.mubr.f32.mxu0 0.0
      %1081 = vmatmul.mubr.f32.gmra.mrb[0].mxu0 %v386
      %v1082 = vpop.f32.mrb[0].mxu0
      %v1083 = vadd.f32 0.0, %v1082
      %v1084 = vpop.f32.mrb[0].mxu0
      %1085 = vmatprep.mubr.f32.mxu0 0.0
      %1086 = vmatmul.mubr.f32.gmra.mrb[0].mxu0 %v389
      %v1087 = vpop.f32.mrb[0].mxu0
      %v1088 = vadd.f32 0.0, %v1087
      %v1089 = vpop.f32.mrb[0].mxu0
      %1090 = vmatprep.mubr.f32.mxu0 0.0
      %1091 = vmatmul.mubr.f32.gmra.mrb[0].mxu0 %v392
      %v1092 = vpop.f32.mrb[0].mxu0
      %v1093 = vadd.f32 0.0, %v1092
      %v1094 = vpop.f32.mrb[0].mxu0
      %1095 = vmatprep.mubr.f32.mxu0 0.0
      %1096 = vmatmul.mubr.f32.gmra.mrb[0].mxu0 %v395
      %v1097 = vpop.f32.mrb[0].mxu0
      %v1098 = vadd.f32 0.0, %v1097
      %v1099 = vpop.f32.mrb[0].mxu0
      %1100 = vmatprep.mubr.f32.mxu0 0.0
      %1101 = vmatmul.mubr.f32.gmra.mrb[0].mxu0 %v398
      %v1102 = vpop.f32.mrb[0].mxu0
      %v1103 = vadd.f32 0.0, %v1102
      %v1104 = vpop.f32.mrb[0].mxu0
      %1105 = vmatprep.mubr.f32.mxu0 0.0
      %1106 = vmatmul.mubr.f32.gmra.mrb[0].mxu0 %v401
      %v1107 = vpop.f32.mrb[0].mxu0
      %v1108 = vadd.f32 0.0, %v1107
      %v1109 = vpop.f32.mrb[0].mxu0
      %1110 = vdwg.mxu0
      %1111 = vst.msk [vmem:[#allocation3] sm:$0xff] %vm351, %v1033
      %1112 = vst.msk [vmem:[#allocation3 + $0x8] sm:$0xff] %vm351, %v1038
      %1113 = vst.msk [vmem:[#allocation3 + $0x10] sm:$0xff] %vm351, %v1043
      %1114 = vst.msk [vmem:[#allocation3 + $0x18] sm:$0xff] %vm351, %v1048
      %1115 = vst.msk [vmem:[#allocation3 + $0x20] sm:$0xff] %vm351, %v1053
      %1116 = vst.msk [vmem:[#allocation3 + $0x28] sm:$0xff] %vm351, %v1058
      %1117 = vst.msk [vmem:[#allocation3 + $0x30] sm:$0xff] %vm351, %v1063
      %1118 = vst.msk [vmem:[#allocation3 + $0x38] sm:$0xff] %vm351, %v1068
      %1119 = vst.msk [vmem:[#allocation3 + $0x40] sm:$0xff] %vm351, %v1073
      %1120 = vst.msk [vmem:[#allocation3 + $0x48] sm:$0xff] %vm351, %v1078
      %1121 = vst.msk [vmem:[#allocation3 + $0x50] sm:$0xff] %vm351, %v1083
      %1122 = vst.msk [vmem:[#allocation3 + $0x58] sm:$0xff] %vm351, %v1088
      %1123 = vst.msk [vmem:[#allocation3 + $0x60] sm:$0xff] %vm351, %v1093
      %1124 = vst.msk [vmem:[#allocation3 + $0x68] sm:$0xff] %vm351, %v1098
      %1125 = vst.msk [vmem:[#allocation3 + $0x70] sm:$0xff] %vm351, %v1103
      %1126 = vst.msk [vmem:[#allocation3 + $0x78] sm:$0xff] %vm351, %v1108
      %1127 = vset.pattern.permute.xlu0 1
      %1128 = vperm.xlu0 %1127, %v544
      %v1129 = vpop.permute.xlu0 %1128
      %1131 = vset.pattern.permute.xlu0 1
      %1132 = vperm.xlu0 %1131, %v549
      %v1133 = vpop.permute.xlu0 %1132
      %1135 = vset.pattern.permute.xlu0 1
      %1136 = vperm.xlu0 %1135, %v554
      %v1137 = vpop.permute.xlu0 %1136
      %1139 = vset.pattern.permute.xlu0 1
      %1140 = vperm.xlu0 %1139, %v559
      %v1141 = vpop.permute.xlu0 %1140
      %1143 = vset.pattern.permute.xlu0 1
      %1144 = vperm.xlu0 %1143, %v564
      %v1145 = vpop.permute.xlu0 %1144
      %1147 = vset.pattern.permute.xlu0 1
      %1148 = vperm.xlu0 %1147, %v569
      %v1149 = vpop.permute.xlu0 %1148
      %1151 = vset.pattern.permute.xlu0 1
      %1152 = vperm.xlu0 %1151, %v574
      %v1153 = vpop.permute.xlu0 %1152
      %1155 = vset.pattern.permute.xlu0 1
      %1156 = vperm.xlu0 %1155, %v579
      %v1157 = vpop.permute.xlu0 %1156
      %1159 = vset.pattern.permute.xlu0 1
      %1160 = vperm.xlu0 %1159, %v584
      %v1161 = vpop.permute.xlu0 %1160
      %1163 = vset.pattern.permute.xlu0 1
      %1164 = vperm.xlu0 %1163, %v589
      %v1165 = vpop.permute.xlu0 %1164
      %1167 = vset.pattern.permute.xlu0 1
      %1168 = vperm.xlu0 %1167, %v594
      %v1169 = vpop.permute.xlu0 %1168
      %1171 = vset.pattern.permute.xlu0 1
      %1172 = vperm.xlu0 %1171, %v599
      %v1173 = vpop.permute.xlu0 %1172
      %1175 = vset.pattern.permute.xlu0 1
      %1176 = vperm.xlu0 %1175, %v604
      %v1177 = vpop.permute.xlu0 %1176
      %1179 = vset.pattern.permute.xlu0 1
      %1180 = vperm.xlu0 %1179, %v609
      %v1181 = vpop.permute.xlu0 %1180
      %1183 = vset.pattern.permute.xlu0 1
      %1184 = vperm.xlu0 %1183, %v614
      %v1185 = vpop.permute.xlu0 %1184
      %1187 = vset.pattern.permute.xlu0 1
      %1188 = vperm.xlu0 %1187, %v619
      %v1189 = vpop.permute.xlu0 %1188
      %v1191 = vlaneseq
      %v1192 = vshrl.u32 %v1191, 7
      %v1193 = vsub.s32 1, %v1192
      %v1194 = vrot.slane %v470, %v1193
      %v1195 = vadd.f32 %v1129, %v1194
      %v1196 = vadd.f32 %v1133, %v1194
      %v1197 = vadd.f32 %v1137, %v1194
      %v1198 = vadd.f32 %v1141, %v1194
      %v1199 = vadd.f32 %v1145, %v1194
      %v1200 = vadd.f32 %v1149, %v1194
      %v1201 = vadd.f32 %v1153, %v1194
      %v1202 = vadd.f32 %v1157, %v1194
      %v1203 = vadd.f32 %v1161, %v1194
      %v1204 = vadd.f32 %v1165, %v1194
      %v1205 = vadd.f32 %v1169, %v1194
      %v1206 = vadd.f32 %v1173, %v1194
      %v1207 = vadd.f32 %v1177, %v1194
      %v1208 = vadd.f32 %v1181, %v1194
      %v1209 = vadd.f32 %v1185, %v1194
      %v1210 = vadd.f32 %v1189, %v1194
      %s1211 = scalar_lea.vmem %s326, 128
      %v1212 = vld [vmem:[%s1211] sm:$0xff]
      %v1213 = vld [vmem:[%s1211 + $0x8] sm:$0xff]
      %v1214 = vld [vmem:[%s1211 + $0x10] sm:$0xff]
      %v1215 = vld [vmem:[%s1211 + $0x18] sm:$0xff]
      %v1216 = vld [vmem:[%s1211 + $0x20] sm:$0xff]
      %v1217 = vld [vmem:[%s1211 + $0x28] sm:$0xff]
      %v1218 = vld [vmem:[%s1211 + $0x30] sm:$0xff]
      %v1219 = vld [vmem:[%s1211 + $0x38] sm:$0xff]
      %v1220 = vld [vmem:[%s1211 + $0x40] sm:$0xff]
      %v1221 = vld [vmem:[%s1211 + $0x48] sm:$0xff]
      %v1222 = vld [vmem:[%s1211 + $0x50] sm:$0xff]
      %v1223 = vld [vmem:[%s1211 + $0x58] sm:$0xff]
      %v1224 = vld [vmem:[%s1211 + $0x60] sm:$0xff]
      %v1225 = vld [vmem:[%s1211 + $0x68] sm:$0xff]
      %v1226 = vld [vmem:[%s1211 + $0x70] sm:$0xff]
      %v1227 = vld [vmem:[%s1211 + $0x78] sm:$0xff]
      %v1228 = vadd.f32 %v1195, %v1212
      %v1229 = vadd.f32 %v1196, %v1213
      %v1230 = vadd.f32 %v1197, %v1214
      %v1231 = vadd.f32 %v1198, %v1215
      %v1232 = vadd.f32 %v1199, %v1216
      %v1233 = vadd.f32 %v1200, %v1217
      %v1234 = vadd.f32 %v1201, %v1218
      %v1235 = vadd.f32 %v1202, %v1219
      %v1236 = vadd.f32 %v1203, %v1220
      %v1237 = vadd.f32 %v1204, %v1221
      %v1238 = vadd.f32 %v1205, %v1222
      %v1239 = vadd.f32 %v1206, %v1223
      %v1240 = vadd.f32 %v1207, %v1224
      %v1241 = vadd.f32 %v1208, %v1225
      %v1242 = vadd.f32 %v1209, %v1226
      %v1243 = vadd.f32 %v1210, %v1227
      %vm1244 = vcmp.ge.f32.partialorder %v1228, 0.0
      %vm1245 = vcmp.ge.f32.partialorder %v1229, 0.0
      %vm1246 = vcmp.ge.f32.partialorder %v1230, 0.0
      %vm1247 = vcmp.ge.f32.partialorder %v1231, 0.0
      %vm1248 = vcmp.ge.f32.partialorder %v1232, 0.0
      %vm1249 = vcmp.ge.f32.partialorder %v1233, 0.0
      %vm1250 = vcmp.ge.f32.partialorder %v1234, 0.0
      %vm1251 = vcmp.ge.f32.partialorder %v1235, 0.0
      %vm1252 = vcmp.ge.f32.partialorder %v1236, 0.0
      %vm1253 = vcmp.ge.f32.partialorder %v1237, 0.0
      %vm1254 = vcmp.ge.f32.partialorder %v1238, 0.0
      %vm1255 = vcmp.ge.f32.partialorder %v1239, 0.0
      %vm1256 = vcmp.ge.f32.partialorder %v1240, 0.0
      %vm1257 = vcmp.ge.f32.partialorder %v1241, 0.0
      %vm1258 = vcmp.ge.f32.partialorder %v1242, 0.0
      %vm1259 = vcmp.ge.f32.partialorder %v1243, 0.0
      %v1260 = vmul.f32 %v1228, 0.2
      %v1261 = vmul.f32 %v1229, 0.2
      %v1262 = vmul.f32 %v1230, 0.2
      %v1263 = vmul.f32 %v1231, 0.2
      %v1264 = vmul.f32 %v1232, 0.2
      %v1265 = vmul.f32 %v1233, 0.2
      %v1266 = vmul.f32 %v1234, 0.2
      %v1267 = vmul.f32 %v1235, 0.2
      %v1268 = vmul.f32 %v1236, 0.2
      %v1269 = vmul.f32 %v1237, 0.2
      %v1270 = vmul.f32 %v1238, 0.2
      %v1271 = vmul.f32 %v1239, 0.2
      %v1272 = vmul.f32 %v1240, 0.2
      %v1273 = vmul.f32 %v1241, 0.2
      %v1274 = vmul.f32 %v1242, 0.2
      %v1275 = vmul.f32 %v1243, 0.2
      %v1276 = vsel %vm1244, %v1228, %v1260
      %v1277 = vsel %vm1245, %v1229, %v1261
      %v1278 = vsel %vm1246, %v1230, %v1262
      %v1279 = vsel %vm1247, %v1231, %v1263
      %v1280 = vsel %vm1248, %v1232, %v1264
      %v1281 = vsel %vm1249, %v1233, %v1265
      %v1282 = vsel %vm1250, %v1234, %v1266
      %v1283 = vsel %vm1251, %v1235, %v1267
      %v1284 = vsel %vm1252, %v1236, %v1268
      %v1285 = vsel %vm1253, %v1237, %v1269
      %v1286 = vsel %vm1254, %v1238, %v1270
      %v1287 = vsel %vm1255, %v1239, %v1271
      %v1288 = vsel %vm1256, %v1240, %v1272
      %v1289 = vsel %vm1257, %v1241, %v1273
      %v1290 = vsel %vm1258, %v1242, %v1274
      %v1291 = vsel %vm1259, %v1243, %v1275
      %1292 = vmax.xlane.f32.xlu0 %v1276
      %v1293 = vpop.xlane.xlu0 %1292
      %1294 = vmax.xlane.f32.xlu0 %v1277
      %v1295 = vpop.xlane.xlu0 %1294
      %1296 = vmax.xlane.f32.xlu0 %v1278
      %v1297 = vpop.xlane.xlu0 %1296
      %1298 = vmax.xlane.f32.xlu0 %v1279
      %v1299 = vpop.xlane.xlu0 %1298
      %1300 = vmax.xlane.f32.xlu0 %v1280
      %v1301 = vpop.xlane.xlu0 %1300
      %1302 = vmax.xlane.f32.xlu0 %v1281
      %v1303 = vpop.xlane.xlu0 %1302
      %1304 = vmax.xlane.f32.xlu0 %v1282
      %v1305 = vpop.xlane.xlu0 %1304
      %1306 = vmax.xlane.f32.xlu0 %v1283
      %v1307 = vpop.xlane.xlu0 %1306
      %1308 = vmax.xlane.f32.xlu0 %v1284
      %v1309 = vpop.xlane.xlu0 %1308
      %1310 = vmax.xlane.f32.xlu0 %v1285
      %v1311 = vpop.xlane.xlu0 %1310
      %1312 = vmax.xlane.f32.xlu0 %v1286
      %v1313 = vpop.xlane.xlu0 %1312
      %1314 = vmax.xlane.f32.xlu0 %v1287
      %v1315 = vpop.xlane.xlu0 %1314
      %1316 = vmax.xlane.f32.xlu0 %v1288
      %v1317 = vpop.xlane.xlu0 %1316
      %1318 = vmax.xlane.f32.xlu0 %v1289
      %v1319 = vpop.xlane.xlu0 %1318
      %1320 = vmax.xlane.f32.xlu0 %v1290
      %v1321 = vpop.xlane.xlu0 %1320
      %1322 = vmax.xlane.f32.xlu0 %v1291
      %v1323 = vpop.xlane.xlu0 %1322
      %v1324 = vsub.f32 %v1276, %v1293
      %v1325 = vsub.f32 %v1277, %v1295
      %v1326 = vsub.f32 %v1278, %v1297
      %v1327 = vsub.f32 %v1279, %v1299
      %v1328 = vsub.f32 %v1280, %v1301
      %v1329 = vsub.f32 %v1281, %v1303
      %v1330 = vsub.f32 %v1282, %v1305
      %v1331 = vsub.f32 %v1283, %v1307
      %v1332 = vsub.f32 %v1284, %v1309
      %v1333 = vsub.f32 %v1285, %v1311
      %v1334 = vsub.f32 %v1286, %v1313
      %v1335 = vsub.f32 %v1287, %v1315
      %v1336 = vsub.f32 %v1288, %v1317
      %v1337 = vsub.f32 %v1289, %v1319
      %v1338 = vsub.f32 %v1290, %v1321
      %v1339 = vsub.f32 %v1291, %v1323
      %v1340 = vmul.f32 %v1324, 1.442695
      %v1341 = vpow.pop %v1340
      %v1342 = vmul.f32 %v1325, 1.442695
      %v1343 = vpow.pop %v1342
      %v1344 = vmul.f32 %v1326, 1.442695
      %v1345 = vpow.pop %v1344
      %v1346 = vmul.f32 %v1327, 1.442695
      %v1347 = vpow.pop %v1346
      %v1348 = vmul.f32 %v1328, 1.442695
      %v1349 = vpow.pop %v1348
      %v1350 = vmul.f32 %v1329, 1.442695
      %v1351 = vpow.pop %v1350
      %v1352 = vmul.f32 %v1330, 1.442695
      %v1353 = vpow.pop %v1352
      %v1354 = vmul.f32 %v1331, 1.442695
      %v1355 = vpow.pop %v1354
      %v1356 = vmul.f32 %v1332, 1.442695
      %v1357 = vpow.pop %v1356
      %v1358 = vmul.f32 %v1333, 1.442695
      %v1359 = vpow.pop %v1358
      %v1360 = vmul.f32 %v1334, 1.442695
      %v1361 = vpow.pop %v1360
      %v1362 = vmul.f32 %v1335, 1.442695
      %v1363 = vpow.pop %v1362
      %v1364 = vmul.f32 %v1336, 1.442695
      %v1365 = vpow.pop %v1364
      %v1366 = vmul.f32 %v1337, 1.442695
      %v1367 = vpow.pop %v1366
      %v1368 = vmul.f32 %v1338, 1.442695
      %v1369 = vpow.pop %v1368
      %v1370 = vmul.f32 %v1339, 1.442695
      %v1371 = vpow.pop %v1370
      %1372 = vadd.xlane.f32.xlu0 %v1341
      %v1373 = vpop.xlane.xlu0 %1372
      %1374 = vadd.xlane.f32.xlu0 %v1343
      %v1375 = vpop.xlane.xlu0 %1374
      %1376 = vadd.xlane.f32.xlu0 %v1345
      %v1377 = vpop.xlane.xlu0 %1376
      %1378 = vadd.xlane.f32.xlu0 %v1347
      %v1379 = vpop.xlane.xlu0 %1378
      %1380 = vadd.xlane.f32.xlu0 %v1349
      %v1381 = vpop.xlane.xlu0 %1380
      %1382 = vadd.xlane.f32.xlu0 %v1351
      %v1383 = vpop.xlane.xlu0 %1382
      %1384 = vadd.xlane.f32.xlu0 %v1353
      %v1385 = vpop.xlane.xlu0 %1384
      %1386 = vadd.xlane.f32.xlu0 %v1355
      %v1387 = vpop.xlane.xlu0 %1386
      %1388 = vadd.xlane.f32.xlu0 %v1357
      %v1389 = vpop.xlane.xlu0 %1388
      %1390 = vadd.xlane.f32.xlu0 %v1359
      %v1391 = vpop.xlane.xlu0 %1390
      %1392 = vadd.xlane.f32.xlu0 %v1361
      %v1393 = vpop.xlane.xlu0 %1392
      %1394 = vadd.xlane.f32.xlu0 %v1363
      %v1395 = vpop.xlane.xlu0 %1394
      %1396 = vadd.xlane.f32.xlu0 %v1365
      %v1397 = vpop.xlane.xlu0 %1396
      %1398 = vadd.xlane.f32.xlu0 %v1367
      %v1399 = vpop.xlane.xlu0 %1398
      %1400 = vadd.xlane.f32.xlu0 %v1369
      %v1401 = vpop.xlane.xlu0 %1400
      %1402 = vadd.xlane.f32.xlu0 %v1371
      %v1403 = vpop.xlane.xlu0 %1402
      %v1404 = vrcp.pop %v1373
      %v1405 = vmul.f32 %v1341, %v1404
      %v1406 = vrcp.pop %v1375
      %v1407 = vmul.f32 %v1343, %v1406
      %v1408 = vrcp.pop %v1377
      %v1409 = vmul.f32 %v1345, %v1408
      %v1410 = vrcp.pop %v1379
      %v1411 = vmul.f32 %v1347, %v1410
      %v1412 = vrcp.pop %v1381
      %v1413 = vmul.f32 %v1349, %v1412
      %v1414 = vrcp.pop %v1383
      %v1415 = vmul.f32 %v1351, %v1414
      %v1416 = vrcp.pop %v1385
      %v1417 = vmul.f32 %v1353, %v1416
      %v1418 = vrcp.pop %v1387
      %v1419 = vmul.f32 %v1355, %v1418
      %v1420 = vrcp.pop %v1389
      %v1421 = vmul.f32 %v1357, %v1420
      %v1422 = vrcp.pop %v1391
      %v1423 = vmul.f32 %v1359, %v1422
      %v1424 = vrcp.pop %v1393
      %v1425 = vmul.f32 %v1361, %v1424
      %v1426 = vrcp.pop %v1395
      %v1427 = vmul.f32 %v1363, %v1426
      %v1428 = vrcp.pop %v1397
      %v1429 = vmul.f32 %v1365, %v1428
      %v1430 = vrcp.pop %v1399
      %v1431 = vmul.f32 %v1367, %v1430
      %v1432 = vrcp.pop %v1401
      %v1433 = vmul.f32 %v1369, %v1432
      %v1434 = vrcp.pop %v1403
      %v1435 = vmul.f32 %v1371, %v1434
      %1436 = vst [vmem:[#allocation2 + $0x8] sm:$0xff] %v1405
      %1437 = vst [vmem:[#allocation2 + $0x20] sm:$0xff] %v1407
      %1438 = vst [vmem:[#allocation2 + $0x38] sm:$0xff] %v1409
      %1439 = vst [vmem:[#allocation2 + $0x50] sm:$0xff] %v1411
      %1440 = vst [vmem:[#allocation2 + $0x68] sm:$0xff] %v1413
      %1441 = vst [vmem:[#allocation2 + $0x80] sm:$0xff] %v1415
      %1442 = vst [vmem:[#allocation2 + $0x98] sm:$0xff] %v1417
      %1443 = vst [vmem:[#allocation2 + $0xb0] sm:$0xff] %v1419
      %1444 = vst [vmem:[#allocation2 + $0xc8] sm:$0xff] %v1421
      %1445 = vst [vmem:[#allocation2 + $0xe0] sm:$0xff] %v1423
      %1446 = vst [vmem:[#allocation2 + $0xf8] sm:$0xff] %v1425
      %1447 = vst [vmem:[#allocation2 + $0x110] sm:$0xff] %v1427
      %1448 = vst [vmem:[#allocation2 + $0x128] sm:$0xff] %v1429
      %1449 = vst [vmem:[#allocation2 + $0x140] sm:$0xff] %v1431
      %1450 = vst [vmem:[#allocation2 + $0x158] sm:$0xff] %v1433
      %1451 = vst [vmem:[#allocation2 + $0x170] sm:$0xff] %v1435
      %s1452 = scalar_lea.vmem %s4, 32
      %v1453 = vld [vmem:[%s1452] sm:$0xff]
      %v1454 = vld [vmem:[%s1452 + $0x8] sm:$0xff]
      %v1455 = vld [vmem:[%s1452 + $0x10] sm:$0xff]
      %v1456 = vld [vmem:[%s1452 + $0x18] sm:$0xff]
      %1457 = vmatprep.subr.mxu0 0.0
      %1458 = vmatpush1.msra.mxu0 %v1453
      %1459 = vmatprep.subr.mxu0 0.0
      %1460 = vmatpush1.msra.mxu0 %v1454
      %1461 = vmatprep.subr.mxu0 0.0
      %1462 = vmatpush1.msra.mxu0 %v1455
      %1463 = vmatprep.subr.mxu0 0.0
      %1464 = vmatpush1.msra.mxu0 %v1456
      %1465 = vmatprep.subr.mxu0 0.0
      %1466 = vmatpush1.msra.mxu0 0.0
      %1467 = vmatprep.subr.mxu0 0.0
      %1468 = vmatpush1.msra.mxu0 0.0
      %1469 = vmatprep.subr.mxu0 0.0
      %1470 = vmatpush1.msra.mxu0 0.0
      %1471 = vmatprep.subr.mxu0 0.0
      %1472 = vmatpush1.msra.mxu0 0.0
      %1473 = vmatprep.subr.mxu0 0.0
      %1474 = vmatpush1.msra.mxu0 0.0
      %1475 = vmatprep.subr.mxu0 0.0
      %1476 = vmatpush1.msra.mxu0 0.0
      %1477 = vmatprep.subr.mxu0 0.0
      %1478 = vmatpush1.msra.mxu0 0.0
      %1479 = vmatprep.subr.mxu0 0.0
      %1480 = vmatpush1.msra.mxu0 0.0
      %1481 = vmatprep.subr.mxu0 0.0
      %1482 = vmatpush1.msra.mxu0 0.0
      %1483 = vmatprep.subr.mxu0 0.0
      %1484 = vmatpush1.msra.mxu0 0.0
      %1485 = vmatprep.subr.mxu0 0.0
      %1486 = vmatpush1.msra.mxu0 0.0
      %1487 = vmatprep.subr.mxu0 0.0
      %1488 = vmatpush1.msra.mxu0 0.0
      %1489 = vmatprep.subr.mxu0 0.0
      %1490 = vmatpush1.msra.mxu0 0.0
      %1491 = vmatprep.subr.mxu0 0.0
      %1492 = vmatpush1.msra.mxu0 0.0
      %1493 = vmatprep.subr.mxu0 0.0
      %1494 = vmatpush1.msra.mxu0 0.0
      %1495 = vmatprep.subr.mxu0 0.0
      %1496 = vmatpush1.msra.mxu0 0.0
      %1497 = vmatprep.subr.mxu0 0.0
      %1498 = vmatpush1.msra.mxu0 0.0
      %1499 = vmatprep.subr.mxu0 0.0
      %1500 = vmatpush1.msra.mxu0 0.0
      %1501 = vmatprep.subr.mxu0 0.0
      %1502 = vmatpush1.msra.mxu0 0.0
      %1503 = vmatprep.subr.mxu0 0.0
      %1504 = vmatpush1.msra.mxu0 0.0
      %1505 = vmatprep.subr.mxu0 0.0
      %1506 = vmatpush1.msra.mxu0 0.0
      %1507 = vmatprep.subr.mxu0 0.0
      %1508 = vmatpush1.msra.mxu0 0.0
      %1509 = vmatprep.subr.mxu0 0.0
      %1510 = vmatpush1.msra.mxu0 0.0
      %1511 = vmatprep.subr.mxu0 0.0
      %1512 = vmatpush1.msra.mxu0 0.0
      %1513 = vmatprep.subr.mxu0 0.0
      %1514 = vmatpush1.msra.mxu0 0.0
      %1515 = vmatprep.subr.mxu0 0.0
      %1516 = vmatpush1.msra.mxu0 0.0
      %1517 = vmatprep.subr.mxu0 0.0
      %1518 = vmatpush1.msra.mxu0 0.0
      %1519 = vmatprep.subr.mxu0 0.0
      %1520 = vmatpush1.msra.mxu0 0.0
      %1521 = vmatprep.mubr.f32.mxu0 0.0
      %1522 = vmatmul.mubr.f32.gmra.mrb[0].mxu0 %v356
      %v1523 = vpop.f32.mrb[0].mxu0
      %v1524 = vadd.f32 0.0, %v1523
      %v1525 = vpop.f32.mrb[0].mxu0
      %1526 = vmatprep.mubr.f32.mxu0 0.0
      %1527 = vmatmul.mubr.f32.gmra.mrb[0].mxu0 %v359
      %v1528 = vpop.f32.mrb[0].mxu0
      %v1529 = vadd.f32 0.0, %v1528
      %v1530 = vpop.f32.mrb[0].mxu0
      %1531 = vmatprep.mubr.f32.mxu0 0.0
      %1532 = vmatmul.mubr.f32.gmra.mrb[0].mxu0 %v362
      %v1533 = vpop.f32.mrb[0].mxu0
      %v1534 = vadd.f32 0.0, %v1533
      %v1535 = vpop.f32.mrb[0].mxu0
      %1536 = vmatprep.mubr.f32.mxu0 0.0
      %1537 = vmatmul.mubr.f32.gmra.mrb[0].mxu0 %v365
      %v1538 = vpop.f32.mrb[0].mxu0
      %v1539 = vadd.f32 0.0, %v1538
      %v1540 = vpop.f32.mrb[0].mxu0
      %1541 = vmatprep.mubr.f32.mxu0 0.0
      %1542 = vmatmul.mubr.f32.gmra.mrb[0].mxu0 %v368
      %v1543 = vpop.f32.mrb[0].mxu0
      %v1544 = vadd.f32 0.0, %v1543
      %v1545 = vpop.f32.mrb[0].mxu0
      %1546 = vmatprep.mubr.f32.mxu0 0.0
      %1547 = vmatmul.mubr.f32.gmra.mrb[0].mxu0 %v371
      %v1548 = vpop.f32.mrb[0].mxu0
      %v1549 = vadd.f32 0.0, %v1548
      %v1550 = vpop.f32.mrb[0].mxu0
      %1551 = vmatprep.mubr.f32.mxu0 0.0
      %1552 = vmatmul.mubr.f32.gmra.mrb[0].mxu0 %v374
      %v1553 = vpop.f32.mrb[0].mxu0
      %v1554 = vadd.f32 0.0, %v1553
      %v1555 = vpop.f32.mrb[0].mxu0
      %1556 = vmatprep.mubr.f32.mxu0 0.0
      %1557 = vmatmul.mubr.f32.gmra.mrb[0].mxu0 %v377
      %v1558 = vpop.f32.mrb[0].mxu0
      %v1559 = vadd.f32 0.0, %v1558
      %v1560 = vpop.f32.mrb[0].mxu0
      %1561 = vmatprep.mubr.f32.mxu0 0.0
      %1562 = vmatmul.mubr.f32.gmra.mrb[0].mxu0 %v380
      %v1563 = vpop.f32.mrb[0].mxu0
      %v1564 = vadd.f32 0.0, %v1563
      %v1565 = vpop.f32.mrb[0].mxu0
      %1566 = vmatprep.mubr.f32.mxu0 0.0
      %1567 = vmatmul.mubr.f32.gmra.mrb[0].mxu0 %v383
      %v1568 = vpop.f32.mrb[0].mxu0
      %v1569 = vadd.f32 0.0, %v1568
      %v1570 = vpop.f32.mrb[0].mxu0
      %1571 = vmatprep.mubr.f32.mxu0 0.0
      %1572 = vmatmul.mubr.f32.gmra.mrb[0].mxu0 %v386
      %v1573 = vpop.f32.mrb[0].mxu0
      %v1574 = vadd.f32 0.0, %v1573
      %v1575 = vpop.f32.mrb[0].mxu0
      %1576 = vmatprep.mubr.f32.mxu0 0.0
      %1577 = vmatmul.mubr.f32.gmra.mrb[0].mxu0 %v389
      %v1578 = vpop.f32.mrb[0].mxu0
      %v1579 = vadd.f32 0.0, %v1578
      %v1580 = vpop.f32.mrb[0].mxu0
      %1581 = vmatprep.mubr.f32.mxu0 0.0
      %1582 = vmatmul.mubr.f32.gmra.mrb[0].mxu0 %v392
      %v1583 = vpop.f32.mrb[0].mxu0
      %v1584 = vadd.f32 0.0, %v1583
      %v1585 = vpop.f32.mrb[0].mxu0
      %1586 = vmatprep.mubr.f32.mxu0 0.0
      %1587 = vmatmul.mubr.f32.gmra.mrb[0].mxu0 %v395
      %v1588 = vpop.f32.mrb[0].mxu0
      %v1589 = vadd.f32 0.0, %v1588
      %v1590 = vpop.f32.mrb[0].mxu0
      %1591 = vmatprep.mubr.f32.mxu0 0.0
      %1592 = vmatmul.mubr.f32.gmra.mrb[0].mxu0 %v398
      %v1593 = vpop.f32.mrb[0].mxu0
      %v1594 = vadd.f32 0.0, %v1593
      %v1595 = vpop.f32.mrb[0].mxu0
      %1596 = vmatprep.mubr.f32.mxu0 0.0
      %1597 = vmatmul.mubr.f32.gmra.mrb[0].mxu0 %v401
      %v1598 = vpop.f32.mrb[0].mxu0
      %v1599 = vadd.f32 0.0, %v1598
      %v1600 = vpop.f32.mrb[0].mxu0
      %1601 = vdwg.mxu0
      %1602 = vst.msk [vmem:[#allocation3 + $0x80] sm:$0xff] %vm351, %v1524
      %1603 = vst.msk [vmem:[#allocation3 + $0x88] sm:$0xff] %vm351, %v1529
      %1604 = vst.msk [vmem:[#allocation3 + $0x90] sm:$0xff] %vm351, %v1534
      %1605 = vst.msk [vmem:[#allocation3 + $0x98] sm:$0xff] %vm351, %v1539
      %1606 = vst.msk [vmem:[#allocation3 + $0xa0] sm:$0xff] %vm351, %v1544
      %1607 = vst.msk [vmem:[#allocation3 + $0xa8] sm:$0xff] %vm351, %v1549
      %1608 = vst.msk [vmem:[#allocation3 + $0xb0] sm:$0xff] %vm351, %v1554
      %1609 = vst.msk [vmem:[#allocation3 + $0xb8] sm:$0xff] %vm351, %v1559
      %1610 = vst.msk [vmem:[#allocation3 + $0xc0] sm:$0xff] %vm351, %v1564
      %1611 = vst.msk [vmem:[#allocation3 + $0xc8] sm:$0xff] %vm351, %v1569
      %1612 = vst.msk [vmem:[#allocation3 + $0xd0] sm:$0xff] %vm351, %v1574
      %1613 = vst.msk [vmem:[#allocation3 + $0xd8] sm:$0xff] %vm351, %v1579
      %1614 = vst.msk [vmem:[#allocation3 + $0xe0] sm:$0xff] %vm351, %v1584
      %1615 = vst.msk [vmem:[#allocation3 + $0xe8] sm:$0xff] %vm351, %v1589
      %1616 = vst.msk [vmem:[#allocation3 + $0xf0] sm:$0xff] %vm351, %v1594
      %1617 = vst.msk [vmem:[#allocation3 + $0xf8] sm:$0xff] %vm351, %v1599
      %1618 = vset.pattern.permute.xlu0 2
      %1619 = vperm.xlu0 %1618, %v544
      %v1620 = vpop.permute.xlu0 %1619
      %1622 = vset.pattern.permute.xlu0 2
      %1623 = vperm.xlu0 %1622, %v549
      %v1624 = vpop.permute.xlu0 %1623
      %1626 = vset.pattern.permute.xlu0 2
      %1627 = vperm.xlu0 %1626, %v554
      %v1628 = vpop.permute.xlu0 %1627
      %1630 = vset.pattern.permute.xlu0 2
      %1631 = vperm.xlu0 %1630, %v559
      %v1632 = vpop.permute.xlu0 %1631
      %1634 = vset.pattern.permute.xlu0 2
      %1635 = vperm.xlu0 %1634, %v564
      %v1636 = vpop.permute.xlu0 %1635
      %1638 = vset.pattern.permute.xlu0 2
      %1639 = vperm.xlu0 %1638, %v569
      %v1640 = vpop.permute.xlu0 %1639
      %1642 = vset.pattern.permute.xlu0 2
      %1643 = vperm.xlu0 %1642, %v574
      %v1644 = vpop.permute.xlu0 %1643
      %1646 = vset.pattern.permute.xlu0 2
      %1647 = vperm.xlu0 %1646, %v579
      %v1648 = vpop.permute.xlu0 %1647
      %1650 = vset.pattern.permute.xlu0 2
      %1651 = vperm.xlu0 %1650, %v584
      %v1652 = vpop.permute.xlu0 %1651
      %1654 = vset.pattern.permute.xlu0 2
      %1655 = vperm.xlu0 %1654, %v589
      %v1656 = vpop.permute.xlu0 %1655
      %1658 = vset.pattern.permute.xlu0 2
      %1659 = vperm.xlu0 %1658, %v594
      %v1660 = vpop.permute.xlu0 %1659
      %1662 = vset.pattern.permute.xlu0 2
      %1663 = vperm.xlu0 %1662, %v599
      %v1664 = vpop.permute.xlu0 %1663
      %1666 = vset.pattern.permute.xlu0 2
      %1667 = vperm.xlu0 %1666, %v604
      %v1668 = vpop.permute.xlu0 %1667
      %1670 = vset.pattern.permute.xlu0 2
      %1671 = vperm.xlu0 %1670, %v609
      %v1672 = vpop.permute.xlu0 %1671
      %1674 = vset.pattern.permute.xlu0 2
      %1675 = vperm.xlu0 %1674, %v614
      %v1676 = vpop.permute.xlu0 %1675
      %1678 = vset.pattern.permute.xlu0 2
      %1679 = vperm.xlu0 %1678, %v619
      %v1680 = vpop.permute.xlu0 %1679
      %v1682 = vlaneseq
      %v1683 = vshrl.u32 %v1682, 7
      %v1684 = vsub.s32 2, %v1683
      %v1685 = vrot.slane %v470, %v1684
      %v1686 = vadd.f32 %v1620, %v1685
      %v1687 = vadd.f32 %v1624, %v1685
      %v1688 = vadd.f32 %v1628, %v1685
      %v1689 = vadd.f32 %v1632, %v1685
      %v1690 = vadd.f32 %v1636, %v1685
      %v1691 = vadd.f32 %v1640, %v1685
      %v1692 = vadd.f32 %v1644, %v1685
      %v1693 = vadd.f32 %v1648, %v1685
      %v1694 = vadd.f32 %v1652, %v1685
      %v1695 = vadd.f32 %v1656, %v1685
      %v1696 = vadd.f32 %v1660, %v1685
      %v1697 = vadd.f32 %v1664, %v1685
      %v1698 = vadd.f32 %v1668, %v1685
      %v1699 = vadd.f32 %v1672, %v1685
      %v1700 = vadd.f32 %v1676, %v1685
      %v1701 = vadd.f32 %v1680, %v1685
      %s1702 = scalar_lea.vmem %s326, 256
      %v1703 = vld [vmem:[%s1702] sm:$0xff]
      %v1704 = vld [vmem:[%s1702 + $0x8] sm:$0xff]
      %v1705 = vld [vmem:[%s1702 + $0x10] sm:$0xff]
      %v1706 = vld [vmem:[%s1702 + $0x18] sm:$0xff]
      %v1707 = vld [vmem:[%s1702 + $0x20] sm:$0xff]
      %v1708 = vld [vmem:[%s1702 + $0x28] sm:$0xff]
      %v1709 = vld [vmem:[%s1702 + $0x30] sm:$0xff]
      %v1710 = vld [vmem:[%s1702 + $0x38] sm:$0xff]
      %v1711 = vld [vmem:[%s1702 + $0x40] sm:$0xff]
      %v1712 = vld [vmem:[%s1702 + $0x48] sm:$0xff]
      %v1713 = vld [vmem:[%s1702 + $0x50] sm:$0xff]
      %v1714 = vld [vmem:[%s1702 + $0x58] sm:$0xff]
      %v1715 = vld [vmem:[%s1702 + $0x60] sm:$0xff]
      %v1716 = vld [vmem:[%s1702 + $0x68] sm:$0xff]
      %v1717 = vld [vmem:[%s1702 + $0x70] sm:$0xff]
      %v1718 = vld [vmem:[%s1702 + $0x78] sm:$0xff]
      %v1719 = vadd.f32 %v1686, %v1703
      %v1720 = vadd.f32 %v1687, %v1704
      %v1721 = vadd.f32 %v1688, %v1705
      %v1722 = vadd.f32 %v1689, %v1706
      %v1723 = vadd.f32 %v1690, %v1707
      %v1724 = vadd.f32 %v1691, %v1708
      %v1725 = vadd.f32 %v1692, %v1709
      %v1726 = vadd.f32 %v1693, %v1710
      %v1727 = vadd.f32 %v1694, %v1711
      %v1728 = vadd.f32 %v1695, %v1712
      %v1729 = vadd.f32 %v1696, %v1713
      %v1730 = vadd.f32 %v1697, %v1714
      %v1731 = vadd.f32 %v1698, %v1715
      %v1732 = vadd.f32 %v1699, %v1716
      %v1733 = vadd.f32 %v1700, %v1717
      %v1734 = vadd.f32 %v1701, %v1718
      %vm1735 = vcmp.ge.f32.partialorder %v1719, 0.0
      %vm1736 = vcmp.ge.f32.partialorder %v1720, 0.0
      %vm1737 = vcmp.ge.f32.partialorder %v1721, 0.0
      %vm1738 = vcmp.ge.f32.partialorder %v1722, 0.0
      %vm1739 = vcmp.ge.f32.partialorder %v1723, 0.0
      %vm1740 = vcmp.ge.f32.partialorder %v1724, 0.0
      %vm1741 = vcmp.ge.f32.partialorder %v1725, 0.0
      %vm1742 = vcmp.ge.f32.partialorder %v1726, 0.0
      %vm1743 = vcmp.ge.f32.partialorder %v1727, 0.0
      %vm1744 = vcmp.ge.f32.partialorder %v1728, 0.0
      %vm1745 = vcmp.ge.f32.partialorder %v1729, 0.0
      %vm1746 = vcmp.ge.f32.partialorder %v1730, 0.0
      %vm1747 = vcmp.ge.f32.partialorder %v1731, 0.0
      %vm1748 = vcmp.ge.f32.partialorder %v1732, 0.0
      %vm1749 = vcmp.ge.f32.partialorder %v1733, 0.0
      %vm1750 = vcmp.ge.f32.partialorder %v1734, 0.0
      %v1751 = vmul.f32 %v1719, 0.2
      %v1752 = vmul.f32 %v1720, 0.2
      %v1753 = vmul.f32 %v1721, 0.2
      %v1754 = vmul.f32 %v1722, 0.2
      %v1755 = vmul.f32 %v1723, 0.2
      %v1756 = vmul.f32 %v1724, 0.2
      %v1757 = vmul.f32 %v1725, 0.2
      %v1758 = vmul.f32 %v1726, 0.2
      %v1759 = vmul.f32 %v1727, 0.2
      %v1760 = vmul.f32 %v1728, 0.2
      %v1761 = vmul.f32 %v1729, 0.2
      %v1762 = vmul.f32 %v1730, 0.2
      %v1763 = vmul.f32 %v1731, 0.2
      %v1764 = vmul.f32 %v1732, 0.2
      %v1765 = vmul.f32 %v1733, 0.2
      %v1766 = vmul.f32 %v1734, 0.2
      %v1767 = vsel %vm1735, %v1719, %v1751
      %v1768 = vsel %vm1736, %v1720, %v1752
      %v1769 = vsel %vm1737, %v1721, %v1753
      %v1770 = vsel %vm1738, %v1722, %v1754
      %v1771 = vsel %vm1739, %v1723, %v1755
      %v1772 = vsel %vm1740, %v1724, %v1756
      %v1773 = vsel %vm1741, %v1725, %v1757
      %v1774 = vsel %vm1742, %v1726, %v1758
      %v1775 = vsel %vm1743, %v1727, %v1759
      %v1776 = vsel %vm1744, %v1728, %v1760
      %v1777 = vsel %vm1745, %v1729, %v1761
      %v1778 = vsel %vm1746, %v1730, %v1762
      %v1779 = vsel %vm1747, %v1731, %v1763
      %v1780 = vsel %vm1748, %v1732, %v1764
      %v1781 = vsel %vm1749, %v1733, %v1765
      %v1782 = vsel %vm1750, %v1734, %v1766
      %1783 = vmax.xlane.f32.xlu0 %v1767
      %v1784 = vpop.xlane.xlu0 %1783
      %1785 = vmax.xlane.f32.xlu0 %v1768
      %v1786 = vpop.xlane.xlu0 %1785
      %1787 = vmax.xlane.f32.xlu0 %v1769
      %v1788 = vpop.xlane.xlu0 %1787
      %1789 = vmax.xlane.f32.xlu0 %v1770
      %v1790 = vpop.xlane.xlu0 %1789
      %1791 = vmax.xlane.f32.xlu0 %v1771
      %v1792 = vpop.xlane.xlu0 %1791
      %1793 = vmax.xlane.f32.xlu0 %v1772
      %v1794 = vpop.xlane.xlu0 %1793
      %1795 = vmax.xlane.f32.xlu0 %v1773
      %v1796 = vpop.xlane.xlu0 %1795
      %1797 = vmax.xlane.f32.xlu0 %v1774
      %v1798 = vpop.xlane.xlu0 %1797
      %1799 = vmax.xlane.f32.xlu0 %v1775
      %v1800 = vpop.xlane.xlu0 %1799
      %1801 = vmax.xlane.f32.xlu0 %v1776
      %v1802 = vpop.xlane.xlu0 %1801
      %1803 = vmax.xlane.f32.xlu0 %v1777
      %v1804 = vpop.xlane.xlu0 %1803
      %1805 = vmax.xlane.f32.xlu0 %v1778
      %v1806 = vpop.xlane.xlu0 %1805
      %1807 = vmax.xlane.f32.xlu0 %v1779
      %v1808 = vpop.xlane.xlu0 %1807
      %1809 = vmax.xlane.f32.xlu0 %v1780
      %v1810 = vpop.xlane.xlu0 %1809
      %1811 = vmax.xlane.f32.xlu0 %v1781
      %v1812 = vpop.xlane.xlu0 %1811
      %1813 = vmax.xlane.f32.xlu0 %v1782
      %v1814 = vpop.xlane.xlu0 %1813
      %v1815 = vsub.f32 %v1767, %v1784
      %v1816 = vsub.f32 %v1768, %v1786
      %v1817 = vsub.f32 %v1769, %v1788
      %v1818 = vsub.f32 %v1770, %v1790
      %v1819 = vsub.f32 %v1771, %v1792
      %v1820 = vsub.f32 %v1772, %v1794
      %v1821 = vsub.f32 %v1773, %v1796
      %v1822 = vsub.f32 %v1774, %v1798
      %v1823 = vsub.f32 %v1775, %v1800
      %v1824 = vsub.f32 %v1776, %v1802
      %v1825 = vsub.f32 %v1777, %v1804
      %v1826 = vsub.f32 %v1778, %v1806
      %v1827 = vsub.f32 %v1779, %v1808
      %v1828 = vsub.f32 %v1780, %v1810
      %v1829 = vsub.f32 %v1781, %v1812
      %v1830 = vsub.f32 %v1782, %v1814
      %v1831 = vmul.f32 %v1815, 1.442695
      %v1832 = vpow.pop %v1831
      %v1833 = vmul.f32 %v1816, 1.442695
      %v1834 = vpow.pop %v1833
      %v1835 = vmul.f32 %v1817, 1.442695
      %v1836 = vpow.pop %v1835
      %v1837 = vmul.f32 %v1818, 1.442695
      %v1838 = vpow.pop %v1837
      %v1839 = vmul.f32 %v1819, 1.442695
      %v1840 = vpow.pop %v1839
      %v1841 = vmul.f32 %v1820, 1.442695
      %v1842 = vpow.pop %v1841
      %v1843 = vmul.f32 %v1821, 1.442695
      %v1844 = vpow.pop %v1843
      %v1845 = vmul.f32 %v1822, 1.442695
      %v1846 = vpow.pop %v1845
      %v1847 = vmul.f32 %v1823, 1.442695
      %v1848 = vpow.pop %v1847
      %v1849 = vmul.f32 %v1824, 1.442695
      %v1850 = vpow.pop %v1849
      %v1851 = vmul.f32 %v1825, 1.442695
      %v1852 = vpow.pop %v1851
      %v1853 = vmul.f32 %v1826, 1.442695
      %v1854 = vpow.pop %v1853
      %v1855 = vmul.f32 %v1827, 1.442695
      %v1856 = vpow.pop %v1855
      %v1857 = vmul.f32 %v1828, 1.442695
      %v1858 = vpow.pop %v1857
      %v1859 = vmul.f32 %v1829, 1.442695
      %v1860 = vpow.pop %v1859
      %v1861 = vmul.f32 %v1830, 1.442695
      %v1862 = vpow.pop %v1861
      %1863 = vadd.xlane.f32.xlu0 %v1832
      %v1864 = vpop.xlane.xlu0 %1863
      %1865 = vadd.xlane.f32.xlu0 %v1834
      %v1866 = vpop.xlane.xlu0 %1865
      %1867 = vadd.xlane.f32.xlu0 %v1836
      %v1868 = vpop.xlane.xlu0 %1867
      %1869 = vadd.xlane.f32.xlu0 %v1838
      %v1870 = vpop.xlane.xlu0 %1869
      %1871 = vadd.xlane.f32.xlu0 %v1840
      %v1872 = vpop.xlane.xlu0 %1871
      %1873 = vadd.xlane.f32.xlu0 %v1842
      %v1874 = vpop.xlane.xlu0 %1873
      %1875 = vadd.xlane.f32.xlu0 %v1844
      %v1876 = vpop.xlane.xlu0 %1875
      %1877 = vadd.xlane.f32.xlu0 %v1846
      %v1878 = vpop.xlane.xlu0 %1877
      %1879 = vadd.xlane.f32.xlu0 %v1848
      %v1880 = vpop.xlane.xlu0 %1879
      %1881 = vadd.xlane.f32.xlu0 %v1850
      %v1882 = vpop.xlane.xlu0 %1881
      %1883 = vadd.xlane.f32.xlu0 %v1852
      %v1884 = vpop.xlane.xlu0 %1883
      %1885 = vadd.xlane.f32.xlu0 %v1854
      %v1886 = vpop.xlane.xlu0 %1885
      %1887 = vadd.xlane.f32.xlu0 %v1856
      %v1888 = vpop.xlane.xlu0 %1887
      %1889 = vadd.xlane.f32.xlu0 %v1858
      %v1890 = vpop.xlane.xlu0 %1889
      %1891 = vadd.xlane.f32.xlu0 %v1860
      %v1892 = vpop.xlane.xlu0 %1891
      %1893 = vadd.xlane.f32.xlu0 %v1862
      %v1894 = vpop.xlane.xlu0 %1893
      %v1895 = vrcp.pop %v1864
      %v1896 = vmul.f32 %v1832, %v1895
      %v1897 = vrcp.pop %v1866
      %v1898 = vmul.f32 %v1834, %v1897
      %v1899 = vrcp.pop %v1868
      %v1900 = vmul.f32 %v1836, %v1899
      %v1901 = vrcp.pop %v1870
      %v1902 = vmul.f32 %v1838, %v1901
      %v1903 = vrcp.pop %v1872
      %v1904 = vmul.f32 %v1840, %v1903
      %v1905 = vrcp.pop %v1874
      %v1906 = vmul.f32 %v1842, %v1905
      %v1907 = vrcp.pop %v1876
      %v1908 = vmul.f32 %v1844, %v1907
      %v1909 = vrcp.pop %v1878
      %v1910 = vmul.f32 %v1846, %v1909
      %v1911 = vrcp.pop %v1880
      %v1912 = vmul.f32 %v1848, %v1911
      %v1913 = vrcp.pop %v1882
      %v1914 = vmul.f32 %v1850, %v1913
      %v1915 = vrcp.pop %v1884
      %v1916 = vmul.f32 %v1852, %v1915
      %v1917 = vrcp.pop %v1886
      %v1918 = vmul.f32 %v1854, %v1917
      %v1919 = vrcp.pop %v1888
      %v1920 = vmul.f32 %v1856, %v1919
      %v1921 = vrcp.pop %v1890
      %v1922 = vmul.f32 %v1858, %v1921
      %v1923 = vrcp.pop %v1892
      %v1924 = vmul.f32 %v1860, %v1923
      %v1925 = vrcp.pop %v1894
      %v1926 = vmul.f32 %v1862, %v1925
      %1927 = vst [vmem:[#allocation2 + $0x10] sm:$0xff] %v1896
      %1928 = vst [vmem:[#allocation2 + $0x28] sm:$0xff] %v1898
      %1929 = vst [vmem:[#allocation2 + $0x40] sm:$0xff] %v1900
      %1930 = vst [vmem:[#allocation2 + $0x58] sm:$0xff] %v1902
      %1931 = vst [vmem:[#allocation2 + $0x70] sm:$0xff] %v1904
      %1932 = vst [vmem:[#allocation2 + $0x88] sm:$0xff] %v1906
      %1933 = vst [vmem:[#allocation2 + $0xa0] sm:$0xff] %v1908
      %1934 = vst [vmem:[#allocation2 + $0xb8] sm:$0xff] %v1910
      %1935 = vst [vmem:[#allocation2 + $0xd0] sm:$0xff] %v1912
      %1936 = vst [vmem:[#allocation2 + $0xe8] sm:$0xff] %v1914
      %1937 = vst [vmem:[#allocation2 + $0x100] sm:$0xff] %v1916
      %1938 = vst [vmem:[#allocation2 + $0x118] sm:$0xff] %v1918
      %1939 = vst [vmem:[#allocation2 + $0x130] sm:$0xff] %v1920
      %1940 = vst [vmem:[#allocation2 + $0x148] sm:$0xff] %v1922
      %1941 = vst [vmem:[#allocation2 + $0x160] sm:$0xff] %v1924
      %1942 = vst [vmem:[#allocation2 + $0x178] sm:$0xff] %v1926
      %s1943 = scalar_lea.vmem %s4, 64
      %v1944 = vld [vmem:[%s1943] sm:$0xff]
      %v1945 = vld [vmem:[%s1943 + $0x8] sm:$0xff]
      %v1946 = vld [vmem:[%s1943 + $0x10] sm:$0xff]
      %v1947 = vld [vmem:[%s1943 + $0x18] sm:$0xff]
      %1948 = vmatprep.subr.mxu0 0.0
      %1949 = vmatpush1.msra.mxu0 %v1944
      %1950 = vmatprep.subr.mxu0 0.0
      %1951 = vmatpush1.msra.mxu0 %v1945
      %1952 = vmatprep.subr.mxu0 0.0
      %1953 = vmatpush1.msra.mxu0 %v1946
      %1954 = vmatprep.subr.mxu0 0.0
      %1955 = vmatpush1.msra.mxu0 %v1947
      %1956 = vmatprep.subr.mxu0 0.0
      %1957 = vmatpush1.msra.mxu0 0.0
      %1958 = vmatprep.subr.mxu0 0.0
      %1959 = vmatpush1.msra.mxu0 0.0
      %1960 = vmatprep.subr.mxu0 0.0
      %1961 = vmatpush1.msra.mxu0 0.0
      %1962 = vmatprep.subr.mxu0 0.0
      %1963 = vmatpush1.msra.mxu0 0.0
      %1964 = vmatprep.subr.mxu0 0.0
      %1965 = vmatpush1.msra.mxu0 0.0
      %1966 = vmatprep.subr.mxu0 0.0
      %1967 = vmatpush1.msra.mxu0 0.0
      %1968 = vmatprep.subr.mxu0 0.0
      %1969 = vmatpush1.msra.mxu0 0.0
      %1970 = vmatprep.subr.mxu0 0.0
      %1971 = vmatpush1.msra.mxu0 0.0
      %1972 = vmatprep.subr.mxu0 0.0
      %1973 = vmatpush1.msra.mxu0 0.0
      %1974 = vmatprep.subr.mxu0 0.0
      %1975 = vmatpush1.msra.mxu0 0.0
      %1976 = vmatprep.subr.mxu0 0.0
      %1977 = vmatpush1.msra.mxu0 0.0
      %1978 = vmatprep.subr.mxu0 0.0
      %1979 = vmatpush1.msra.mxu0 0.0
      %1980 = vmatprep.subr.mxu0 0.0
      %1981 = vmatpush1.msra.mxu0 0.0
      %1982 = vmatprep.subr.mxu0 0.0
      %1983 = vmatpush1.msra.mxu0 0.0
      %1984 = vmatprep.subr.mxu0 0.0
      %1985 = vmatpush1.msra.mxu0 0.0
      %1986 = vmatprep.subr.mxu0 0.0
      %1987 = vmatpush1.msra.mxu0 0.0
      %1988 = vmatprep.subr.mxu0 0.0
      %1989 = vmatpush1.msra.mxu0 0.0
      %1990 = vmatprep.subr.mxu0 0.0
      %1991 = vmatpush1.msra.mxu0 0.0
      %1992 = vmatprep.subr.mxu0 0.0
      %1993 = vmatpush1.msra.mxu0 0.0
      %1994 = vmatprep.subr.mxu0 0.0
      %1995 = vmatpush1.msra.mxu0 0.0
      %1996 = vmatprep.subr.mxu0 0.0
      %1997 = vmatpush1.msra.mxu0 0.0
      %1998 = vmatprep.subr.mxu0 0.0
      %1999 = vmatpush1.msra.mxu0 0.0
      %2000 = vmatprep.subr.mxu0 0.0
      %2001 = vmatpush1.msra.mxu0 0.0
      %2002 = vmatprep.subr.mxu0 0.0
      %2003 = vmatpush1.msra.mxu0 0.0
      %2004 = vmatprep.subr.mxu0 0.0
      %2005 = vmatpush1.msra.mxu0 0.0
      %2006 = vmatprep.subr.mxu0 0.0
      %2007 = vmatpush1.msra.mxu0 0.0
      %2008 = vmatprep.subr.mxu0 0.0
      %2009 = vmatpush1.msra.mxu0 0.0
      %2010 = vmatprep.subr.mxu0 0.0
      %2011 = vmatpush1.msra.mxu0 0.0
      %2012 = vmatprep.mubr.f32.mxu0 0.0
      %2013 = vmatmul.mubr.f32.gmra.mrb[0].mxu0 %v356
      %v2014 = vpop.f32.mrb[0].mxu0
      %v2015 = vadd.f32 0.0, %v2014
      %v2016 = vpop.f32.mrb[0].mxu0
      %2017 = vmatprep.mubr.f32.mxu0 0.0
      %2018 = vmatmul.mubr.f32.gmra.mrb[0].mxu0 %v359
      %v2019 = vpop.f32.mrb[0].mxu0
      %v2020 = vadd.f32 0.0, %v2019
      %v2021 = vpop.f32.mrb[0].mxu0
      %2022 = vmatprep.mubr.f32.mxu0 0.0
      %2023 = vmatmul.mubr.f32.gmra.mrb[0].mxu0 %v362
      %v2024 = vpop.f32.mrb[0].mxu0
      %v2025 = vadd.f32 0.0, %v2024
      %v2026 = vpop.f32.mrb[0].mxu0
      %2027 = vmatprep.mubr.f32.mxu0 0.0
      %2028 = vmatmul.mubr.f32.gmra.mrb[0].mxu0 %v365
      %v2029 = vpop.f32.mrb[0].mxu0
      %v2030 = vadd.f32 0.0, %v2029
      %v2031 = vpop.f32.mrb[0].mxu0
      %2032 = vmatprep.mubr.f32.mxu0 0.0
      %2033 = vmatmul.mubr.f32.gmra.mrb[0].mxu0 %v368
      %v2034 = vpop.f32.mrb[0].mxu0
      %v2035 = vadd.f32 0.0, %v2034
      %v2036 = vpop.f32.mrb[0].mxu0
      %2037 = vmatprep.mubr.f32.mxu0 0.0
      %2038 = vmatmul.mubr.f32.gmra.mrb[0].mxu0 %v371
      %v2039 = vpop.f32.mrb[0].mxu0
      %v2040 = vadd.f32 0.0, %v2039
      %v2041 = vpop.f32.mrb[0].mxu0
      %2042 = vmatprep.mubr.f32.mxu0 0.0
      %2043 = vmatmul.mubr.f32.gmra.mrb[0].mxu0 %v374
      %v2044 = vpop.f32.mrb[0].mxu0
      %v2045 = vadd.f32 0.0, %v2044
      %v2046 = vpop.f32.mrb[0].mxu0
      %2047 = vmatprep.mubr.f32.mxu0 0.0
      %2048 = vmatmul.mubr.f32.gmra.mrb[0].mxu0 %v377
      %v2049 = vpop.f32.mrb[0].mxu0
      %v2050 = vadd.f32 0.0, %v2049
      %v2051 = vpop.f32.mrb[0].mxu0
      %2052 = vmatprep.mubr.f32.mxu0 0.0
      %2053 = vmatmul.mubr.f32.gmra.mrb[0].mxu0 %v380
      %v2054 = vpop.f32.mrb[0].mxu0
      %v2055 = vadd.f32 0.0, %v2054
      %v2056 = vpop.f32.mrb[0].mxu0
      %2057 = vmatprep.mubr.f32.mxu0 0.0
      %2058 = vmatmul.mubr.f32.gmra.mrb[0].mxu0 %v383
      %v2059 = vpop.f32.mrb[0].mxu0
      %v2060 = vadd.f32 0.0, %v2059
      %v2061 = vpop.f32.mrb[0].mxu0
      %2062 = vmatprep.mubr.f32.mxu0 0.0
      %2063 = vmatmul.mubr.f32.gmra.mrb[0].mxu0 %v386
      %v2064 = vpop.f32.mrb[0].mxu0
      %v2065 = vadd.f32 0.0, %v2064
      %v2066 = vpop.f32.mrb[0].mxu0
      %2067 = vmatprep.mubr.f32.mxu0 0.0
      %2068 = vmatmul.mubr.f32.gmra.mrb[0].mxu0 %v389
      %v2069 = vpop.f32.mrb[0].mxu0
      %v2070 = vadd.f32 0.0, %v2069
      %v2071 = vpop.f32.mrb[0].mxu0
      %2072 = vmatprep.mubr.f32.mxu0 0.0
      %2073 = vmatmul.mubr.f32.gmra.mrb[0].mxu0 %v392
      %v2074 = vpop.f32.mrb[0].mxu0
      %v2075 = vadd.f32 0.0, %v2074
      %v2076 = vpop.f32.mrb[0].mxu0
      %2077 = vmatprep.mubr.f32.mxu0 0.0
      %2078 = vmatmul.mubr.f32.gmra.mrb[0].mxu0 %v395
      %v2079 = vpop.f32.mrb[0].mxu0
      %v2080 = vadd.f32 0.0, %v2079
      %v2081 = vpop.f32.mrb[0].mxu0
      %2082 = vmatprep.mubr.f32.mxu0 0.0
      %2083 = vmatmul.mubr.f32.gmra.mrb[0].mxu0 %v398
      %v2084 = vpop.f32.mrb[0].mxu0
      %v2085 = vadd.f32 0.0, %v2084
      %v2086 = vpop.f32.mrb[0].mxu0
      %2087 = vmatprep.mubr.f32.mxu0 0.0
      %2088 = vmatmul.mubr.f32.gmra.mrb[0].mxu0 %v401
      %v2089 = vpop.f32.mrb[0].mxu0
      %v2090 = vadd.f32 0.0, %v2089
      %v2091 = vpop.f32.mrb[0].mxu0
      %2092 = vdwg.mxu0
      %2093 = vst.msk [vmem:[#allocation3 + $0x100] sm:$0xff] %vm351, %v2015
      %2094 = vst.msk [vmem:[#allocation3 + $0x108] sm:$0xff] %vm351, %v2020
      %2095 = vst.msk [vmem:[#allocation3 + $0x110] sm:$0xff] %vm351, %v2025
      %2096 = vst.msk [vmem:[#allocation3 + $0x118] sm:$0xff] %vm351, %v2030
      %2097 = vst.msk [vmem:[#allocation3 + $0x120] sm:$0xff] %vm351, %v2035
      %2098 = vst.msk [vmem:[#allocation3 + $0x128] sm:$0xff] %vm351, %v2040
      %2099 = vst.msk [vmem:[#allocation3 + $0x130] sm:$0xff] %vm351, %v2045
      %2100 = vst.msk [vmem:[#allocation3 + $0x138] sm:$0xff] %vm351, %v2050
      %2101 = vst.msk [vmem:[#allocation3 + $0x140] sm:$0xff] %vm351, %v2055
      %2102 = vst.msk [vmem:[#allocation3 + $0x148] sm:$0xff] %vm351, %v2060
      %2103 = vst.msk [vmem:[#allocation3 + $0x150] sm:$0xff] %vm351, %v2065
      %2104 = vst.msk [vmem:[#allocation3 + $0x158] sm:$0xff] %vm351, %v2070
      %2105 = vst.msk [vmem:[#allocation3 + $0x160] sm:$0xff] %vm351, %v2075
      %2106 = vst.msk [vmem:[#allocation3 + $0x168] sm:$0xff] %vm351, %v2080
      %2107 = vst.msk [vmem:[#allocation3 + $0x170] sm:$0xff] %vm351, %v2085
      %2108 = vst.msk [vmem:[#allocation3 + $0x178] sm:$0xff] %vm351, %v2090
      %v2109 = vld [vmem:[#allocation2] sm:$0xff]
      %v2110 = vld [vmem:[#allocation2 + $0x8] sm:$0xff]
      %v2111 = vld [vmem:[#allocation2 + $0x10] sm:$0xff]
      %v2112 = vld [vmem:[#allocation2 + $0x18] sm:$0xff]
      %v2113 = vld [vmem:[#allocation2 + $0x20] sm:$0xff]
      %v2114 = vld [vmem:[#allocation2 + $0x28] sm:$0xff]
      %v2115 = vld [vmem:[#allocation2 + $0x30] sm:$0xff]
      %v2116 = vld [vmem:[#allocation2 + $0x38] sm:$0xff]
      %v2117 = vld [vmem:[#allocation2 + $0x40] sm:$0xff]
      %v2118 = vld [vmem:[#allocation2 + $0x48] sm:$0xff]
      %v2119 = vld [vmem:[#allocation2 + $0x50] sm:$0xff]
      %v2120 = vld [vmem:[#allocation2 + $0x58] sm:$0xff]
      %v2121 = vld [vmem:[#allocation2 + $0x60] sm:$0xff]
      %v2122 = vld [vmem:[#allocation2 + $0x68] sm:$0xff]
      %v2123 = vld [vmem:[#allocation2 + $0x70] sm:$0xff]
      %v2124 = vld [vmem:[#allocation2 + $0x78] sm:$0xff]
      %v2125 = vld [vmem:[#allocation2 + $0x80] sm:$0xff]
      %v2126 = vld [vmem:[#allocation2 + $0x88] sm:$0xff]
      %v2127 = vld [vmem:[#allocation2 + $0x90] sm:$0xff]
      %v2128 = vld [vmem:[#allocation2 + $0x98] sm:$0xff]
      %v2129 = vld [vmem:[#allocation2 + $0xa0] sm:$0xff]
      %v2130 = vld [vmem:[#allocation2 + $0xa8] sm:$0xff]
      %v2131 = vld [vmem:[#allocation2 + $0xb0] sm:$0xff]
      %v2132 = vld [vmem:[#allocation2 + $0xb8] sm:$0xff]
      %v2133 = vld [vmem:[#allocation2 + $0xc0] sm:$0xff]
      %v2134 = vld [vmem:[#allocation2 + $0xc8] sm:$0xff]
      %v2135 = vld [vmem:[#allocation2 + $0xd0] sm:$0xff]
      %v2136 = vld [vmem:[#allocation2 + $0xd8] sm:$0xff]
      %v2137 = vld [vmem:[#allocation2 + $0xe0] sm:$0xff]
      %v2138 = vld [vmem:[#allocation2 + $0xe8] sm:$0xff]
      %v2139 = vld [vmem:[#allocation2 + $0xf0] sm:$0xff]
      %v2140 = vld [vmem:[#allocation2 + $0xf8] sm:$0xff]
      %v2141 = vld [vmem:[#allocation2 + $0x100] sm:$0xff]
      %v2142 = vld [vmem:[#allocation2 + $0x108] sm:$0xff]
      %v2143 = vld [vmem:[#allocation2 + $0x110] sm:$0xff]
      %v2144 = vld [vmem:[#allocation2 + $0x118] sm:$0xff]
      %v2145 = vld [vmem:[#allocation2 + $0x120] sm:$0xff]
      %v2146 = vld [vmem:[#allocation2 + $0x128] sm:$0xff]
      %v2147 = vld [vmem:[#allocation2 + $0x130] sm:$0xff]
      %v2148 = vld [vmem:[#allocation2 + $0x138] sm:$0xff]
      %v2149 = vld [vmem:[#allocation2 + $0x140] sm:$0xff]
      %v2150 = vld [vmem:[#allocation2 + $0x148] sm:$0xff]
      %v2151 = vld [vmem:[#allocation2 + $0x150] sm:$0xff]
      %v2152 = vld [vmem:[#allocation2 + $0x158] sm:$0xff]
      %v2153 = vld [vmem:[#allocation2 + $0x160] sm:$0xff]
      %v2154 = vld [vmem:[#allocation2 + $0x168] sm:$0xff]
      %v2155 = vld [vmem:[#allocation2 + $0x170] sm:$0xff]
      %v2156 = vld [vmem:[#allocation2 + $0x178] sm:$0xff]
      %v2157 = vld [vmem:[#allocation3] sm:$0xff]
      %v2158 = vld [vmem:[#allocation3 + $0x8] sm:$0xff]
      %v2159 = vld [vmem:[#allocation3 + $0x10] sm:$0xff]
      %v2160 = vld [vmem:[#allocation3 + $0x18] sm:$0xff]
      %v2161 = vld [vmem:[#allocation3 + $0x20] sm:$0xff]
      %v2162 = vld [vmem:[#allocation3 + $0x28] sm:$0xff]
      %v2163 = vld [vmem:[#allocation3 + $0x30] sm:$0xff]
      %v2164 = vld [vmem:[#allocation3 + $0x38] sm:$0xff]
      %v2165 = vld [vmem:[#allocation3 + $0x40] sm:$0xff]
      %v2166 = vld [vmem:[#allocation3 + $0x48] sm:$0xff]
      %v2167 = vld [vmem:[#allocation3 + $0x50] sm:$0xff]
      %v2168 = vld [vmem:[#allocation3 + $0x58] sm:$0xff]
      %v2169 = vld [vmem:[#allocation3 + $0x60] sm:$0xff]
      %v2170 = vld [vmem:[#allocation3 + $0x68] sm:$0xff]
      %v2171 = vld [vmem:[#allocation3 + $0x70] sm:$0xff]
      %v2172 = vld [vmem:[#allocation3 + $0x78] sm:$0xff]
      %v2173 = vld [vmem:[#allocation3 + $0x80] sm:$0xff]
      %v2174 = vld [vmem:[#allocation3 + $0x88] sm:$0xff]
      %v2175 = vld [vmem:[#allocation3 + $0x90] sm:$0xff]
      %v2176 = vld [vmem:[#allocation3 + $0x98] sm:$0xff]
      %v2177 = vld [vmem:[#allocation3 + $0xa0] sm:$0xff]
      %v2178 = vld [vmem:[#allocation3 + $0xa8] sm:$0xff]
      %v2179 = vld [vmem:[#allocation3 + $0xb0] sm:$0xff]
      %v2180 = vld [vmem:[#allocation3 + $0xb8] sm:$0xff]
      %v2181 = vld [vmem:[#allocation3 + $0xc0] sm:$0xff]
      %v2182 = vld [vmem:[#allocation3 + $0xc8] sm:$0xff]
      %v2183 = vld [vmem:[#allocation3 + $0xd0] sm:$0xff]
      %v2184 = vld [vmem:[#allocation3 + $0xd8] sm:$0xff]
      %v2185 = vld [vmem:[#allocation3 + $0xe0] sm:$0xff]
      %v2186 = vld [vmem:[#allocation3 + $0xe8] sm:$0xff]
      %v2187 = vld [vmem:[#allocation3 + $0xf0] sm:$0xff]
      %v2188 = vld [vmem:[#allocation3 + $0xf8] sm:$0xff]
      %v2189 = vld [vmem:[#allocation3 + $0x100] sm:$0xff]
      %v2190 = vld [vmem:[#allocation3 + $0x108] sm:$0xff]
      %v2191 = vld [vmem:[#allocation3 + $0x110] sm:$0xff]
      %v2192 = vld [vmem:[#allocation3 + $0x118] sm:$0xff]
      %v2193 = vld [vmem:[#allocation3 + $0x120] sm:$0xff]
      %v2194 = vld [vmem:[#allocation3 + $0x128] sm:$0xff]
      %v2195 = vld [vmem:[#allocation3 + $0x130] sm:$0xff]
      %v2196 = vld [vmem:[#allocation3 + $0x138] sm:$0xff]
      %v2197 = vld [vmem:[#allocation3 + $0x140] sm:$0xff]
      %v2198 = vld [vmem:[#allocation3 + $0x148] sm:$0xff]
      %v2199 = vld [vmem:[#allocation3 + $0x150] sm:$0xff]
      %v2200 = vld [vmem:[#allocation3 + $0x158] sm:$0xff]
      %v2201 = vld [vmem:[#allocation3 + $0x160] sm:$0xff]
      %v2202 = vld [vmem:[#allocation3 + $0x168] sm:$0xff]
      %v2203 = vld [vmem:[#allocation3 + $0x170] sm:$0xff]
      %v2204 = vld [vmem:[#allocation3 + $0x178] sm:$0xff]
      %v2205 = vld [vmem:[%s5] sm:$0x1]
      %v2207 = vlaneseq
      %v2208 = vshrl.u32 %v2207, 7
      %v2209 = vsub.s32 0, %v2208
      %v2210 = vrot.slane %v2205, %v2209
      %2212 = vmatprep.subr.mxu0 0.0
      %2213 = vmatpush1.msra.mxu0 %v2157
      %2214 = vmatprep.subr.mxu0 0.0
      %2215 = vmatpush1.msra.mxu0 %v2158
      %2216 = vmatprep.subr.mxu0 0.0
      %2217 = vmatpush1.msra.mxu0 %v2159
      %2218 = vmatprep.subr.mxu0 0.0
      %2219 = vmatpush1.msra.mxu0 %v2160
      %2220 = vmatprep.subr.mxu0 0.0
      %2221 = vmatpush1.msra.mxu0 %v2161
      %2222 = vmatprep.subr.mxu0 0.0
      %2223 = vmatpush1.msra.mxu0 %v2162
      %2224 = vmatprep.subr.mxu0 0.0
      %2225 = vmatpush1.msra.mxu0 %v2163
      %2226 = vmatprep.subr.mxu0 0.0
      %2227 = vmatpush1.msra.mxu0 %v2164
      %2228 = vmatprep.subr.mxu0 0.0
      %2229 = vmatpush1.msra.mxu0 %v2165
      %2230 = vmatprep.subr.mxu0 0.0
      %2231 = vmatpush1.msra.mxu0 %v2166
      %2232 = vmatprep.subr.mxu0 0.0
      %2233 = vmatpush1.msra.mxu0 %v2167
      %2234 = vmatprep.subr.mxu0 0.0
      %2235 = vmatpush1.msra.mxu0 %v2168
      %2236 = vmatprep.subr.mxu0 0.0
      %2237 = vmatpush1.msra.mxu0 %v2169
      %2238 = vmatprep.subr.mxu0 0.0
      %2239 = vmatpush1.msra.mxu0 %v2170
      %2240 = vmatprep.subr.mxu0 0.0
      %2241 = vmatpush1.msra.mxu0 %v2171
      %2242 = vmatprep.subr.mxu0 0.0
      %2243 = vmatpush1.msra.mxu0 %v2172
      %2244 = vmatprep.subr.mxu0 0.0
      %2245 = vmatpush1.msra.mxu0 %v2173
      %2246 = vmatprep.subr.mxu0 0.0
      %2247 = vmatpush1.msra.mxu0 %v2174
      %2248 = vmatprep.subr.mxu0 0.0
      %2249 = vmatpush1.msra.mxu0 %v2175
      %2250 = vmatprep.subr.mxu0 0.0
      %2251 = vmatpush1.msra.mxu0 %v2176
      %2252 = vmatprep.subr.mxu0 0.0
      %2253 = vmatpush1.msra.mxu0 %v2177
      %2254 = vmatprep.subr.mxu0 0.0
      %2255 = vmatpush1.msra.mxu0 %v2178
      %2256 = vmatprep.subr.mxu0 0.0
      %2257 = vmatpush1.msra.mxu0 %v2179
      %2258 = vmatprep.subr.mxu0 0.0
      %2259 = vmatpush1.msra.mxu0 %v2180
      %2260 = vmatprep.subr.mxu0 0.0
      %2261 = vmatpush1.msra.mxu0 %v2181
      %2262 = vmatprep.subr.mxu0 0.0
      %2263 = vmatpush1.msra.mxu0 %v2182
      %2264 = vmatprep.subr.mxu0 0.0
      %2265 = vmatpush1.msra.mxu0 %v2183
      %2266 = vmatprep.subr.mxu0 0.0
      %2267 = vmatpush1.msra.mxu0 %v2184
      %2268 = vmatprep.subr.mxu0 0.0
      %2269 = vmatpush1.msra.mxu0 %v2185
      %2270 = vmatprep.subr.mxu0 0.0
      %2271 = vmatpush1.msra.mxu0 %v2186
      %2272 = vmatprep.subr.mxu0 0.0
      %2273 = vmatpush1.msra.mxu0 %v2187
      %2274 = vmatprep.subr.mxu0 0.0
      %2275 = vmatpush1.msra.mxu0 %v2188
      %2276 = vmatprep.mubr.f32.mxu0 %v2110
      %2277 = vmatmul.mubr.f32.gmra.mrb[0].mxu0 %v2109
      %v2278 = vpop.f32.mrb[0].mxu0
      %v2279 = vadd.f32 %v2210, %v2278
      %v2280 = vpop.f32.mrb[0].mxu0
      %2281 = vmatprep.mubr.f32.mxu0 %v2113
      %2282 = vmatmul.mubr.f32.gmra.mrb[0].mxu0 %v2112
      %v2283 = vpop.f32.mrb[0].mxu0
      %v2284 = vadd.f32 %v2210, %v2283
      %v2285 = vpop.f32.mrb[0].mxu0
      %2286 = vmatprep.mubr.f32.mxu0 %v2116
      %2287 = vmatmul.mubr.f32.gmra.mrb[0].mxu0 %v2115
      %v2288 = vpop.f32.mrb[0].mxu0
      %v2289 = vadd.f32 %v2210, %v2288
      %v2290 = vpop.f32.mrb[0].mxu0
      %2291 = vmatprep.mubr.f32.mxu0 %v2119
      %2292 = vmatmul.mubr.f32.gmra.mrb[0].mxu0 %v2118
      %v2293 = vpop.f32.mrb[0].mxu0
      %v2294 = vadd.f32 %v2210, %v2293
      %v2295 = vpop.f32.mrb[0].mxu0
      %2296 = vmatprep.mubr.f32.mxu0 %v2122
      %2297 = vmatmul.mubr.f32.gmra.mrb[0].mxu0 %v2121
      %v2298 = vpop.f32.mrb[0].mxu0
      %v2299 = vadd.f32 %v2210, %v2298
      %v2300 = vpop.f32.mrb[0].mxu0
      %2301 = vmatprep.mubr.f32.mxu0 %v2125
      %2302 = vmatmul.mubr.f32.gmra.mrb[0].mxu0 %v2124
      %v2303 = vpop.f32.mrb[0].mxu0
      %v2304 = vadd.f32 %v2210, %v2303
      %v2305 = vpop.f32.mrb[0].mxu0
      %2306 = vmatprep.mubr.f32.mxu0 %v2128
      %2307 = vmatmul.mubr.f32.gmra.mrb[0].mxu0 %v2127
      %v2308 = vpop.f32.mrb[0].mxu0
      %v2309 = vadd.f32 %v2210, %v2308
      %v2310 = vpop.f32.mrb[0].mxu0
      %2311 = vmatprep.mubr.f32.mxu0 %v2131
      %2312 = vmatmul.mubr.f32.gmra.mrb[0].mxu0 %v2130
      %v2313 = vpop.f32.mrb[0].mxu0
      %v2314 = vadd.f32 %v2210, %v2313
      %v2315 = vpop.f32.mrb[0].mxu0
      %2316 = vmatprep.mubr.f32.mxu0 %v2134
      %2317 = vmatmul.mubr.f32.gmra.mrb[0].mxu0 %v2133
      %v2318 = vpop.f32.mrb[0].mxu0
      %v2319 = vadd.f32 %v2210, %v2318
      %v2320 = vpop.f32.mrb[0].mxu0
      %2321 = vmatprep.mubr.f32.mxu0 %v2137
      %2322 = vmatmul.mubr.f32.gmra.mrb[0].mxu0 %v2136
      %v2323 = vpop.f32.mrb[0].mxu0
      %v2324 = vadd.f32 %v2210, %v2323
      %v2325 = vpop.f32.mrb[0].mxu0
      %2326 = vmatprep.mubr.f32.mxu0 %v2140
      %2327 = vmatmul.mubr.f32.gmra.mrb[0].mxu0 %v2139
      %v2328 = vpop.f32.mrb[0].mxu0
      %v2329 = vadd.f32 %v2210, %v2328
      %v2330 = vpop.f32.mrb[0].mxu0
      %2331 = vmatprep.mubr.f32.mxu0 %v2143
      %2332 = vmatmul.mubr.f32.gmra.mrb[0].mxu0 %v2142
      %v2333 = vpop.f32.mrb[0].mxu0
      %v2334 = vadd.f32 %v2210, %v2333
      %v2335 = vpop.f32.mrb[0].mxu0
      %2336 = vmatprep.mubr.f32.mxu0 %v2146
      %2337 = vmatmul.mubr.f32.gmra.mrb[0].mxu0 %v2145
      %v2338 = vpop.f32.mrb[0].mxu0
      %v2339 = vadd.f32 %v2210, %v2338
      %v2340 = vpop.f32.mrb[0].mxu0
      %2341 = vmatprep.mubr.f32.mxu0 %v2149
      %2342 = vmatmul.mubr.f32.gmra.mrb[0].mxu0 %v2148
      %v2343 = vpop.f32.mrb[0].mxu0
      %v2344 = vadd.f32 %v2210, %v2343
      %v2345 = vpop.f32.mrb[0].mxu0
      %2346 = vmatprep.mubr.f32.mxu0 %v2152
      %2347 = vmatmul.mubr.f32.gmra.mrb[0].mxu0 %v2151
      %v2348 = vpop.f32.mrb[0].mxu0
      %v2349 = vadd.f32 %v2210, %v2348
      %v2350 = vpop.f32.mrb[0].mxu0
      %2351 = vmatprep.mubr.f32.mxu0 %v2155
      %2352 = vmatmul.mubr.f32.gmra.mrb[0].mxu0 %v2154
      %v2353 = vpop.f32.mrb[0].mxu0
      %v2354 = vadd.f32 %v2210, %v2353
      %v2355 = vpop.f32.mrb[0].mxu0
      %2356 = vdwg.mxu0
      %2357 = vmatprep.subr.mxu0 0.0
      %2358 = vmatpush1.msra.mxu0 %v2189
      %2359 = vmatprep.subr.mxu0 0.0
      %2360 = vmatpush1.msra.mxu0 %v2190
      %2361 = vmatprep.subr.mxu0 0.0
      %2362 = vmatpush1.msra.mxu0 %v2191
      %2363 = vmatprep.subr.mxu0 0.0
      %2364 = vmatpush1.msra.mxu0 %v2192
      %2365 = vmatprep.subr.mxu0 0.0
      %2366 = vmatpush1.msra.mxu0 %v2193
      %2367 = vmatprep.subr.mxu0 0.0
      %2368 = vmatpush1.msra.mxu0 %v2194
      %2369 = vmatprep.subr.mxu0 0.0
      %2370 = vmatpush1.msra.mxu0 %v2195
      %2371 = vmatprep.subr.mxu0 0.0
      %2372 = vmatpush1.msra.mxu0 %v2196
      %2373 = vmatprep.subr.mxu0 0.0
      %2374 = vmatpush1.msra.mxu0 %v2197
      %2375 = vmatprep.subr.mxu0 0.0
      %2376 = vmatpush1.msra.mxu0 %v2198
      %2377 = vmatprep.subr.mxu0 0.0
      %2378 = vmatpush1.msra.mxu0 %v2199
      %2379 = vmatprep.subr.mxu0 0.0
      %2380 = vmatpush1.msra.mxu0 %v2200
      %2381 = vmatprep.subr.mxu0 0.0
      %2382 = vmatpush1.msra.mxu0 %v2201
      %2383 = vmatprep.subr.mxu0 0.0
      %2384 = vmatpush1.msra.mxu0 %v2202
      %2385 = vmatprep.subr.mxu0 0.0
      %2386 = vmatpush1.msra.mxu0 %v2203
      %2387 = vmatprep.subr.mxu0 0.0
      %2388 = vmatpush1.msra.mxu0 %v2204
      %2389 = vmatprep.subr.mxu0 0.0
      %2390 = vmatpush1.msra.mxu0 0.0
      %2391 = vmatprep.subr.mxu0 0.0
      %2392 = vmatpush1.msra.mxu0 0.0
      %2393 = vmatprep.subr.mxu0 0.0
      %2394 = vmatpush1.msra.mxu0 0.0
      %2395 = vmatprep.subr.mxu0 0.0
      %2396 = vmatpush1.msra.mxu0 0.0
      %2397 = vmatprep.subr.mxu0 0.0
      %2398 = vmatpush1.msra.mxu0 0.0
      %2399 = vmatprep.subr.mxu0 0.0
      %2400 = vmatpush1.msra.mxu0 0.0
      %2401 = vmatprep.subr.mxu0 0.0
      %2402 = vmatpush1.msra.mxu0 0.0
      %2403 = vmatprep.subr.mxu0 0.0
      %2404 = vmatpush1.msra.mxu0 0.0
      %2405 = vmatprep.subr.mxu0 0.0
      %2406 = vmatpush1.msra.mxu0 0.0
      %2407 = vmatprep.subr.mxu0 0.0
      %2408 = vmatpush1.msra.mxu0 0.0
      %2409 = vmatprep.subr.mxu0 0.0
      %2410 = vmatpush1.msra.mxu0 0.0
      %2411 = vmatprep.subr.mxu0 0.0
      %2412 = vmatpush1.msra.mxu0 0.0
      %2413 = vmatprep.subr.mxu0 0.0
      %2414 = vmatpush1.msra.mxu0 0.0
      %2415 = vmatprep.subr.mxu0 0.0
      %2416 = vmatpush1.msra.mxu0 0.0
      %2417 = vmatprep.subr.mxu0 0.0
      %2418 = vmatpush1.msra.mxu0 0.0
      %2419 = vmatprep.subr.mxu0 0.0
      %2420 = vmatpush1.msra.mxu0 0.0
      %2421 = vmatprep.mubr.f32.mxu0 0.0
      %2422 = vmatmul.mubr.f32.gmra.mrb[0].mxu0 %v2111
      %v2423 = vpop.f32.mrb[0].mxu0
      %v2424 = vadd.f32 %v2279, %v2423
      %v2425 = vpop.f32.mrb[0].mxu0
      %2426 = vmatprep.mubr.f32.mxu0 0.0
      %2427 = vmatmul.mubr.f32.gmra.mrb[0].mxu0 %v2114
      %v2428 = vpop.f32.mrb[0].mxu0
      %v2429 = vadd.f32 %v2284, %v2428
      %v2430 = vpop.f32.mrb[0].mxu0
      %2431 = vmatprep.mubr.f32.mxu0 0.0
      %2432 = vmatmul.mubr.f32.gmra.mrb[0].mxu0 %v2117
      %v2433 = vpop.f32.mrb[0].mxu0
      %v2434 = vadd.f32 %v2289, %v2433
      %v2435 = vpop.f32.mrb[0].mxu0
      %2436 = vmatprep.mubr.f32.mxu0 0.0
      %2437 = vmatmul.mubr.f32.gmra.mrb[0].mxu0 %v2120
      %v2438 = vpop.f32.mrb[0].mxu0
      %v2439 = vadd.f32 %v2294, %v2438
      %v2440 = vpop.f32.mrb[0].mxu0
      %2441 = vmatprep.mubr.f32.mxu0 0.0
      %2442 = vmatmul.mubr.f32.gmra.mrb[0].mxu0 %v2123
      %v2443 = vpop.f32.mrb[0].mxu0
      %v2444 = vadd.f32 %v2299, %v2443
      %v2445 = vpop.f32.mrb[0].mxu0
      %2446 = vmatprep.mubr.f32.mxu0 0.0
      %2447 = vmatmul.mubr.f32.gmra.mrb[0].mxu0 %v2126
      %v2448 = vpop.f32.mrb[0].mxu0
      %v2449 = vadd.f32 %v2304, %v2448
      %v2450 = vpop.f32.mrb[0].mxu0
      %2451 = vmatprep.mubr.f32.mxu0 0.0
      %2452 = vmatmul.mubr.f32.gmra.mrb[0].mxu0 %v2129
      %v2453 = vpop.f32.mrb[0].mxu0
      %v2454 = vadd.f32 %v2309, %v2453
      %v2455 = vpop.f32.mrb[0].mxu0
      %2456 = vmatprep.mubr.f32.mxu0 0.0
      %2457 = vmatmul.mubr.f32.gmra.mrb[0].mxu0 %v2132
      %v2458 = vpop.f32.mrb[0].mxu0
      %v2459 = vadd.f32 %v2314, %v2458
      %v2460 = vpop.f32.mrb[0].mxu0
      %2461 = vmatprep.mubr.f32.mxu0 0.0
      %2462 = vmatmul.mubr.f32.gmra.mrb[0].mxu0 %v2135
      %v2463 = vpop.f32.mrb[0].mxu0
      %v2464 = vadd.f32 %v2319, %v2463
      %v2465 = vpop.f32.mrb[0].mxu0
      %2466 = vmatprep.mubr.f32.mxu0 0.0
      %2467 = vmatmul.mubr.f32.gmra.mrb[0].mxu0 %v2138
      %v2468 = vpop.f32.mrb[0].mxu0
      %v2469 = vadd.f32 %v2324, %v2468
      %v2470 = vpop.f32.mrb[0].mxu0
      %2471 = vmatprep.mubr.f32.mxu0 0.0
      %2472 = vmatmul.mubr.f32.gmra.mrb[0].mxu0 %v2141
      %v2473 = vpop.f32.mrb[0].mxu0
      %v2474 = vadd.f32 %v2329, %v2473
      %v2475 = vpop.f32.mrb[0].mxu0
      %2476 = vmatprep.mubr.f32.mxu0 0.0
      %2477 = vmatmul.mubr.f32.gmra.mrb[0].mxu0 %v2144
      %v2478 = vpop.f32.mrb[0].mxu0
      %v2479 = vadd.f32 %v2334, %v2478
      %v2480 = vpop.f32.mrb[0].mxu0
      %2481 = vmatprep.mubr.f32.mxu0 0.0
      %2482 = vmatmul.mubr.f32.gmra.mrb[0].mxu0 %v2147
      %v2483 = vpop.f32.mrb[0].mxu0
      %v2484 = vadd.f32 %v2339, %v2483
      %v2485 = vpop.f32.mrb[0].mxu0
      %2486 = vmatprep.mubr.f32.mxu0 0.0
      %2487 = vmatmul.mubr.f32.gmra.mrb[0].mxu0 %v2150
      %v2488 = vpop.f32.mrb[0].mxu0
      %v2489 = vadd.f32 %v2344, %v2488
      %v2490 = vpop.f32.mrb[0].mxu0
      %2491 = vmatprep.mubr.f32.mxu0 0.0
      %2492 = vmatmul.mubr.f32.gmra.mrb[0].mxu0 %v2153
      %v2493 = vpop.f32.mrb[0].mxu0
      %v2494 = vadd.f32 %v2349, %v2493
      %v2495 = vpop.f32.mrb[0].mxu0
      %2496 = vmatprep.mubr.f32.mxu0 0.0
      %2497 = vmatmul.mubr.f32.gmra.mrb[0].mxu0 %v2156
      %v2498 = vpop.f32.mrb[0].mxu0
      %v2499 = vadd.f32 %v2354, %v2498
      %v2500 = vpop.f32.mrb[0].mxu0
      %2501 = vdwg.mxu0
      %v2502 = vadd.f32 %v334, %v2424
      %v2503 = vadd.f32 %v335, %v2429
      %v2504 = vadd.f32 %v336, %v2434
      %v2505 = vadd.f32 %v337, %v2439
      %v2506 = vadd.f32 %v338, %v2444
      %v2507 = vadd.f32 %v339, %v2449
      %v2508 = vadd.f32 %v340, %v2454
      %v2509 = vadd.f32 %v341, %v2459
      %v2510 = vadd.f32 %v342, %v2464
      %v2511 = vadd.f32 %v343, %v2469
      %v2512 = vadd.f32 %v344, %v2474
      %v2513 = vadd.f32 %v345, %v2479
      %v2514 = vadd.f32 %v346, %v2484
      %v2515 = vadd.f32 %v347, %v2489
      %v2516 = vadd.f32 %v348, %v2494
      %v2517 = vadd.f32 %v349, %v2499
      %v2518 = vsel %vm351, %v2502, 0.0
      %2519 = vadd.xlane.f32.xlu0 %v2518
      %v2520 = vpop.xlane.xlu0 %2519
      %v2521 = vsel %vm351, %v2503, 0.0
      %2522 = vadd.xlane.f32.xlu0 %v2521
      %v2523 = vpop.xlane.xlu0 %2522
      %v2524 = vsel %vm351, %v2504, 0.0
      %2525 = vadd.xlane.f32.xlu0 %v2524
      %v2526 = vpop.xlane.xlu0 %2525
      %v2527 = vsel %vm351, %v2505, 0.0
      %2528 = vadd.xlane.f32.xlu0 %v2527
      %v2529 = vpop.xlane.xlu0 %2528
      %v2530 = vsel %vm351, %v2506, 0.0
      %2531 = vadd.xlane.f32.xlu0 %v2530
      %v2532 = vpop.xlane.xlu0 %2531
      %v2533 = vsel %vm351, %v2507, 0.0
      %2534 = vadd.xlane.f32.xlu0 %v2533
      %v2535 = vpop.xlane.xlu0 %2534
      %v2536 = vsel %vm351, %v2508, 0.0
      %2537 = vadd.xlane.f32.xlu0 %v2536
      %v2538 = vpop.xlane.xlu0 %2537
      %v2539 = vsel %vm351, %v2509, 0.0
      %2540 = vadd.xlane.f32.xlu0 %v2539
      %v2541 = vpop.xlane.xlu0 %2540
      %v2542 = vsel %vm351, %v2510, 0.0
      %2543 = vadd.xlane.f32.xlu0 %v2542
      %v2544 = vpop.xlane.xlu0 %2543
      %v2545 = vsel %vm351, %v2511, 0.0
      %2546 = vadd.xlane.f32.xlu0 %v2545
      %v2547 = vpop.xlane.xlu0 %2546
      %v2548 = vsel %vm351, %v2512, 0.0
      %2549 = vadd.xlane.f32.xlu0 %v2548
      %v2550 = vpop.xlane.xlu0 %2549
      %v2551 = vsel %vm351, %v2513, 0.0
      %2552 = vadd.xlane.f32.xlu0 %v2551
      %v2553 = vpop.xlane.xlu0 %2552
      %v2554 = vsel %vm351, %v2514, 0.0
      %2555 = vadd.xlane.f32.xlu0 %v2554
      %v2556 = vpop.xlane.xlu0 %2555
      %v2557 = vsel %vm351, %v2515, 0.0
      %2558 = vadd.xlane.f32.xlu0 %v2557
      %v2559 = vpop.xlane.xlu0 %2558
      %v2560 = vsel %vm351, %v2516, 0.0
      %2561 = vadd.xlane.f32.xlu0 %v2560
      %v2562 = vpop.xlane.xlu0 %2561
      %v2563 = vsel %vm351, %v2517, 0.0
      %2564 = vadd.xlane.f32.xlu0 %v2563
      %v2565 = vpop.xlane.xlu0 %2564
      %v2566 = vrcp.pop 32.0
      %v2567 = vmul.f32 %v2520, %v2566
      %v2568 = vmul.f32 %v2523, %v2566
      %v2569 = vmul.f32 %v2526, %v2566
      %v2570 = vmul.f32 %v2529, %v2566
      %v2571 = vmul.f32 %v2532, %v2566
      %v2572 = vmul.f32 %v2535, %v2566
      %v2573 = vmul.f32 %v2538, %v2566
      %v2574 = vmul.f32 %v2541, %v2566
      %v2575 = vmul.f32 %v2544, %v2566
      %v2576 = vmul.f32 %v2547, %v2566
      %v2577 = vmul.f32 %v2550, %v2566
      %v2578 = vmul.f32 %v2553, %v2566
      %v2579 = vmul.f32 %v2556, %v2566
      %v2580 = vmul.f32 %v2559, %v2566
      %v2581 = vmul.f32 %v2562, %v2566
      %v2582 = vmul.f32 %v2565, %v2566
      %v2583 = vsub.f32 %v2502, %v2567
      %v2584 = vsub.f32 %v2503, %v2568
      %v2585 = vsub.f32 %v2504, %v2569
      %v2586 = vsub.f32 %v2505, %v2570
      %v2587 = vsub.f32 %v2506, %v2571
      %v2588 = vsub.f32 %v2507, %v2572
      %v2589 = vsub.f32 %v2508, %v2573
      %v2590 = vsub.f32 %v2509, %v2574
      %v2591 = vsub.f32 %v2510, %v2575
      %v2592 = vsub.f32 %v2511, %v2576
      %v2593 = vsub.f32 %v2512, %v2577
      %v2594 = vsub.f32 %v2513, %v2578
      %v2595 = vsub.f32 %v2514, %v2579
      %v2596 = vsub.f32 %v2515, %v2580
      %v2597 = vsub.f32 %v2516, %v2581
      %v2598 = vsub.f32 %v2517, %v2582
      %v2599 = vmul.f32 %v2583, %v2583
      %v2600 = vmul.f32 %v2584, %v2584
      %v2601 = vmul.f32 %v2585, %v2585
      %v2602 = vmul.f32 %v2586, %v2586
      %v2603 = vmul.f32 %v2587, %v2587
      %v2604 = vmul.f32 %v2588, %v2588
      %v2605 = vmul.f32 %v2589, %v2589
      %v2606 = vmul.f32 %v2590, %v2590
      %v2607 = vmul.f32 %v2591, %v2591
      %v2608 = vmul.f32 %v2592, %v2592
      %v2609 = vmul.f32 %v2593, %v2593
      %v2610 = vmul.f32 %v2594, %v2594
      %v2611 = vmul.f32 %v2595, %v2595
      %v2612 = vmul.f32 %v2596, %v2596
      %v2613 = vmul.f32 %v2597, %v2597
      %v2614 = vmul.f32 %v2598, %v2598
      %v2615 = vsel %vm351, %v2599, 0.0
      %2616 = vadd.xlane.f32.xlu0 %v2615
      %v2617 = vpop.xlane.xlu0 %2616
      %v2618 = vsel %vm351, %v2600, 0.0
      %2619 = vadd.xlane.f32.xlu0 %v2618
      %v2620 = vpop.xlane.xlu0 %2619
      %v2621 = vsel %vm351, %v2601, 0.0
      %2622 = vadd.xlane.f32.xlu0 %v2621
      %v2623 = vpop.xlane.xlu0 %2622
      %v2624 = vsel %vm351, %v2602, 0.0
      %2625 = vadd.xlane.f32.xlu0 %v2624
      %v2626 = vpop.xlane.xlu0 %2625
      %v2627 = vsel %vm351, %v2603, 0.0
      %2628 = vadd.xlane.f32.xlu0 %v2627
      %v2629 = vpop.xlane.xlu0 %2628
      %v2630 = vsel %vm351, %v2604, 0.0
      %2631 = vadd.xlane.f32.xlu0 %v2630
      %v2632 = vpop.xlane.xlu0 %2631
      %v2633 = vsel %vm351, %v2605, 0.0
      %2634 = vadd.xlane.f32.xlu0 %v2633
      %v2635 = vpop.xlane.xlu0 %2634
      %v2636 = vsel %vm351, %v2606, 0.0
      %2637 = vadd.xlane.f32.xlu0 %v2636
      %v2638 = vpop.xlane.xlu0 %2637
      %v2639 = vsel %vm351, %v2607, 0.0
      %2640 = vadd.xlane.f32.xlu0 %v2639
      %v2641 = vpop.xlane.xlu0 %2640
      %v2642 = vsel %vm351, %v2608, 0.0
      %2643 = vadd.xlane.f32.xlu0 %v2642
      %v2644 = vpop.xlane.xlu0 %2643
      %v2645 = vsel %vm351, %v2609, 0.0
      %2646 = vadd.xlane.f32.xlu0 %v2645
      %v2647 = vpop.xlane.xlu0 %2646
      %v2648 = vsel %vm351, %v2610, 0.0
      %2649 = vadd.xlane.f32.xlu0 %v2648
      %v2650 = vpop.xlane.xlu0 %2649
      %v2651 = vsel %vm351, %v2611, 0.0
      %2652 = vadd.xlane.f32.xlu0 %v2651
      %v2653 = vpop.xlane.xlu0 %2652
      %v2654 = vsel %vm351, %v2612, 0.0
      %2655 = vadd.xlane.f32.xlu0 %v2654
      %v2656 = vpop.xlane.xlu0 %2655
      %v2657 = vsel %vm351, %v2613, 0.0
      %2658 = vadd.xlane.f32.xlu0 %v2657
      %v2659 = vpop.xlane.xlu0 %2658
      %v2660 = vsel %vm351, %v2614, 0.0
      %2661 = vadd.xlane.f32.xlu0 %v2660
      %v2662 = vpop.xlane.xlu0 %2661
      %v2663 = vmul.f32 %v2617, %v2566
      %v2664 = vmul.f32 %v2620, %v2566
      %v2665 = vmul.f32 %v2623, %v2566
      %v2666 = vmul.f32 %v2626, %v2566
      %v2667 = vmul.f32 %v2629, %v2566
      %v2668 = vmul.f32 %v2632, %v2566
      %v2669 = vmul.f32 %v2635, %v2566
      %v2670 = vmul.f32 %v2638, %v2566
      %v2671 = vmul.f32 %v2641, %v2566
      %v2672 = vmul.f32 %v2644, %v2566
      %v2673 = vmul.f32 %v2647, %v2566
      %v2674 = vmul.f32 %v2650, %v2566
      %v2675 = vmul.f32 %v2653, %v2566
      %v2676 = vmul.f32 %v2656, %v2566
      %v2677 = vmul.f32 %v2659, %v2566
      %v2678 = vmul.f32 %v2662, %v2566
      %v2679 = vadd.f32 %v2663, 1e-05
      %v2680 = vadd.f32 %v2664, 1e-05
      %v2681 = vadd.f32 %v2665, 1e-05
      %v2682 = vadd.f32 %v2666, 1e-05
      %v2683 = vadd.f32 %v2667, 1e-05
      %v2684 = vadd.f32 %v2668, 1e-05
      %v2685 = vadd.f32 %v2669, 1e-05
      %v2686 = vadd.f32 %v2670, 1e-05
      %v2687 = vadd.f32 %v2671, 1e-05
      %v2688 = vadd.f32 %v2672, 1e-05
      %v2689 = vadd.f32 %v2673, 1e-05
      %v2690 = vadd.f32 %v2674, 1e-05
      %v2691 = vadd.f32 %v2675, 1e-05
      %v2692 = vadd.f32 %v2676, 1e-05
      %v2693 = vadd.f32 %v2677, 1e-05
      %v2694 = vadd.f32 %v2678, 1e-05
      %v2695 = vrsqrt.pop %v2679
      %v2696 = vrsqrt.pop %v2680
      %v2697 = vrsqrt.pop %v2681
      %v2698 = vrsqrt.pop %v2682
      %v2699 = vrsqrt.pop %v2683
      %v2700 = vrsqrt.pop %v2684
      %v2701 = vrsqrt.pop %v2685
      %v2702 = vrsqrt.pop %v2686
      %v2703 = vrsqrt.pop %v2687
      %v2704 = vrsqrt.pop %v2688
      %v2705 = vrsqrt.pop %v2689
      %v2706 = vrsqrt.pop %v2690
      %v2707 = vrsqrt.pop %v2691
      %v2708 = vrsqrt.pop %v2692
      %v2709 = vrsqrt.pop %v2693
      %v2710 = vrsqrt.pop %v2694
      %v2711 = vmul.f32 %v2583, %v2695
      %v2712 = vmul.f32 %v2584, %v2696
      %v2713 = vmul.f32 %v2585, %v2697
      %v2714 = vmul.f32 %v2586, %v2698
      %v2715 = vmul.f32 %v2587, %v2699
      %v2716 = vmul.f32 %v2588, %v2700
      %v2717 = vmul.f32 %v2589, %v2701
      %v2718 = vmul.f32 %v2590, %v2702
      %v2719 = vmul.f32 %v2591, %v2703
      %v2720 = vmul.f32 %v2592, %v2704
      %v2721 = vmul.f32 %v2593, %v2705
      %v2722 = vmul.f32 %v2594, %v2706
      %v2723 = vmul.f32 %v2595, %v2707
      %v2724 = vmul.f32 %v2596, %v2708
      %v2725 = vmul.f32 %v2597, %v2709
      %v2726 = vmul.f32 %v2598, %v2710
      %v2727 = vld [vmem:[%s6] sm:$0x1]
      %v2729 = vlaneseq
      %v2730 = vshrl.u32 %v2729, 7
      %v2731 = vsub.s32 0, %v2730
      %v2732 = vrot.slane %v2727, %v2731
      %v2734 = vmul.f32 %v2711, %v2732
      %v2735 = vmul.f32 %v2712, %v2732
      %v2736 = vmul.f32 %v2713, %v2732
      %v2737 = vmul.f32 %v2714, %v2732
      %v2738 = vmul.f32 %v2715, %v2732
      %v2739 = vmul.f32 %v2716, %v2732
      %v2740 = vmul.f32 %v2717, %v2732
      %v2741 = vmul.f32 %v2718, %v2732
      %v2742 = vmul.f32 %v2719, %v2732
      %v2743 = vmul.f32 %v2720, %v2732
      %v2744 = vmul.f32 %v2721, %v2732
      %v2745 = vmul.f32 %v2722, %v2732
      %v2746 = vmul.f32 %v2723, %v2732
      %v2747 = vmul.f32 %v2724, %v2732
      %v2748 = vmul.f32 %v2725, %v2732
      %v2749 = vmul.f32 %v2726, %v2732
      %v2750 = vld [vmem:[%s7] sm:$0x1]
      %v2752 = vlaneseq
      %v2753 = vshrl.u32 %v2752, 7
      %v2754 = vsub.s32 0, %v2753
      %v2755 = vrot.slane %v2750, %v2754
      %v2757 = vadd.f32 %v2734, %v2755
      %v2758 = vadd.f32 %v2735, %v2755
      %v2759 = vadd.f32 %v2736, %v2755
      %v2760 = vadd.f32 %v2737, %v2755
      %v2761 = vadd.f32 %v2738, %v2755
      %v2762 = vadd.f32 %v2739, %v2755
      %v2763 = vadd.f32 %v2740, %v2755
      %v2764 = vadd.f32 %v2741, %v2755
      %v2765 = vadd.f32 %v2742, %v2755
      %v2766 = vadd.f32 %v2743, %v2755
      %v2767 = vadd.f32 %v2744, %v2755
      %v2768 = vadd.f32 %v2745, %v2755
      %v2769 = vadd.f32 %v2746, %v2755
      %v2770 = vadd.f32 %v2747, %v2755
      %v2771 = vadd.f32 %v2748, %v2755
      %v2772 = vadd.f32 %v2749, %v2755
      %2773 = vst.msk [vmem:[%s332] sm:$0xff] %vm351, %v2757
      %2774 = vst.msk [vmem:[%s332 + $0x8] sm:$0xff] %vm351, %v2758
      %2775 = vst.msk [vmem:[%s332 + $0x10] sm:$0xff] %vm351, %v2759
      %2776 = vst.msk [vmem:[%s332 + $0x18] sm:$0xff] %vm351, %v2760
      %2777 = vst.msk [vmem:[%s332 + $0x20] sm:$0xff] %vm351, %v2761
      %2778 = vst.msk [vmem:[%s332 + $0x28] sm:$0xff] %vm351, %v2762
      %2779 = vst.msk [vmem:[%s332 + $0x30] sm:$0xff] %vm351, %v2763
      %2780 = vst.msk [vmem:[%s332 + $0x38] sm:$0xff] %vm351, %v2764
      %2781 = vst.msk [vmem:[%s332 + $0x40] sm:$0xff] %vm351, %v2765
      %2782 = vst.msk [vmem:[%s332 + $0x48] sm:$0xff] %vm351, %v2766
      %2783 = vst.msk [vmem:[%s332 + $0x50] sm:$0xff] %vm351, %v2767
      %2784 = vst.msk [vmem:[%s332 + $0x58] sm:$0xff] %vm351, %v2768
      %2785 = vst.msk [vmem:[%s332 + $0x60] sm:$0xff] %vm351, %v2769
      %2786 = vst.msk [vmem:[%s332 + $0x68] sm:$0xff] %vm351, %v2770
      %2787 = vst.msk [vmem:[%s332 + $0x70] sm:$0xff] %vm351, %v2771
      %2788 = vst.msk [vmem:[%s332 + $0x78] sm:$0xff] %vm351, %v2772
      %s2789 = smul.u32 16, %s19
      %p2790 = scmp.lt.s32.totalorder %s2789, 63
      %s2791 = scalar_select %p2790, %s2789, 63
      %s2792 = smul.addr %s2791, 8
      %s2793 = scalar_lea.vmem %s8, %s2792
      // Predicated region
      $region53: #{graph_transformer_block.1} parent=51 // pred_check
        %p2794 = pneg %p215
      $region54: #{graph_transformer_block.1} parent=51 // pred_check_branch
        %2796 = sbr.rel (%p2794) target = $region56
      $region55: #{graph_transformer_block.1} parent=51 // pred_region
        %s2797 = smul.u32 16, %s19
      $region56: #{graph_transformer_block.1} parent=51 // pred_fallthru
        _
    $region52: #{graph_transformer_block.1} parent=5 // pred_fallthru
      _
    %p2798 = scmp.le.s32.totalorder 2, %s14
    // Predicated region
    $region57: #{graph_transformer_block.1} parent=5 // pred_check
      %p2799 = pneg %p2798
    $region58: #{graph_transformer_block.1} parent=5 // pred_check_branch
      %2801 = sbr.rel (%p2799) target = $region60
    $region59: #{graph_transformer_block.1} parent=5 // pred_region
      %s2802 = ssub.s32 %s14, 2
      // Predicated region
      $region61: #{graph_transformer_block.1} parent=59 // pred_check
        %p2803 = pneg %p221
      $region62: #{graph_transformer_block.1} parent=59 // pred_check_branch
        %2805 = sbr.rel (%p2803) target = $region64
      $region63: #{graph_transformer_block.1} parent=59 // pred_region
        %s2806 = smul.u32 16, %s20
        %p2807 = scmp.lt.s32.totalorder %s2806, 63
        %s2808 = scalar_select %p2807, %s2806, 63
        %s2809 = smul.addr %s2808, 8
        %s2810 = scalar_lea.vmem %s8, %s2809
      $region64: #{graph_transformer_block.1} parent=59 // pred_fallthru
        _
    $region60: #{graph_transformer_block.1} parent=5 // pred_fallthru
      _
  $region6: #{graph_transformer_block.1} parent=0 // loop_footer
    %s18 = sadd.s32 1, %s14
  $region7: #{graph_transformer_block.1} parent=0 // loop_footer_branch
    %13 = sbr.rel target = $region3
  $region8: #{graph_transformer_block.1} parent=0 // loop_exit
    _

</llo_original>
